<compile_context>
chip_gen: v7x
topology: tpu7x:2x2x1
jax: 0.10.0
libtpu: 0.0.40
codegen_flags: <defaults>
</compile_context>

<pallas_src>
import functools

import jax
import jax.numpy as jnp
from jax import lax
from jax.experimental import pallas as pl
from jax.experimental.pallas import tpu as pltpu


def _cgn_kernel(eps, inv_gs, inv_gsm1,
                xr_ref, xi_ref, gsum_ref, gbc_ref, w_ref, b_ref,
                or_ref, oi_ref):
    """One (tn, C) row tile of complex group norm.

    xr/xi : (tn, C) real / imag planes (lane-dense).
    gsum  : (C, G) 0/1 indicator -> per-group sum via MXU.
    gbc   : (G, C) 0/1 indicator -> broadcast per-group value back to C lanes.
    w/b   : (1, C) real weight / bias (sublane-broadcast, no materialization).
    """
    dot = functools.partial(jnp.dot, precision=lax.Precision.HIGHEST,
                            preferred_element_type=jnp.float32)

    xr = xr_ref[...]
    xi = xi_ref[...]
    gsum = gsum_ref[...]
    gbc = gbc_ref[...]

    # Per-group complex mean (per-component), reduced on the idle MXU.
    mean_r = dot(xr, gsum) * inv_gs           # (tn, G)
    mean_i = dot(xi, gsum) * inv_gs
    dr = xr - dot(mean_r, gbc)                # (tn, C)
    di = xi - dot(mean_i, gbc)

    # torch.var on complex input: unbiased mean of |x - mean|^2 (real).
    var = dot(dr * dr + di * di, gsum) * inv_gsm1     # (tn, G)
    inv = lax.rsqrt(var + eps)                        # EUP rsqrt
    inv_full = dot(inv, gbc)                          # (tn, C)

    w = w_ref[...]                                    # (1, C)
    b = b_ref[...]
    or_ref[...] = dr * inv_full * w + b   # real bias affects real part only
    oi_ref[...] = di * inv_full * w


def _round_up(x, m):
    return (x + m - 1) // m * m


def _pick_row_tile(n_rows, n_cols, vmem_budget_bytes):
    """Largest multiple-of-8 row tile whose double-buffered working set
    (2 input + 2 output f32 planes, x2 buffers) fits the VMEM budget."""
    bytes_per_row = 4 * n_cols * (2 + 2) * 2
    tn = max(8, min(vmem_budget_bytes // bytes_per_row, 2048))
    # Keep a handful of grid steps when there is enough work so both v7x
    # TensorCores stay busy (no-op on v5e/v6e).
    if n_rows >= 1024:
        tn = min(tn, _round_up(-(-n_rows // 4), 8))
    tn = min(tn, _round_up(n_rows, 8))
    return max(8, (tn // 8) * 8)


def complex_group_norm(x, weight, bias, num_groups, eps=1e-5):
    """x: (batch, seq, hidden) complex64 -> (batch*seq, hidden) complex64."""
    B, S, C = x.shape
    G = num_groups
    assert C % G == 0, "hidden size must be divisible by num_groups"
    GS = C // G
    N = B * S

    # TODO(synk): XLA bitcast-convert does not support complex64<->float32, so
    # the re/im split here and the recombine below remain separate XLA ops
    # (one extra HBM pass each way) instead of being fused into the kernel.
    xr = jnp.real(x).astype(jnp.float32).reshape(N, C)
    xi = jnp.imag(x).astype(jnp.float32).reshape(N, C)
    w = weight.astype(jnp.float32).reshape(1, C)
    b = bias.astype(jnp.float32).reshape(1, C)

    # 0/1 group-indicator matrices: gsum[c, g] = 1 iff channel c is in group g.
    gsum = (jnp.arange(C)[:, None] // GS ==
            jnp.arange(G)[None, :]).astype(jnp.float32)          # (C, G)
    gbc = gsum.T                                                 # (G, C)

    # Per-generation VMEM budget (v5e/v6e: 128 MiB physical, v7x: 64 MiB).
    try:
        vmem_cap = int(getattr(pltpu.get_tpu_info(), "vmem_capacity_bytes",
                               64 * 1024 * 1024))
    except Exception:
        vmem_cap = 64 * 1024 * 1024
    vmem_budget = (vmem_cap * 3) // 8      # target pipeline working set
    vmem_limit = (vmem_cap * 5) // 8       # scoped limit with headroom

    tn = _pick_row_tile(N, C, vmem_budget)
    grid = (pl.cdiv(N, tn),)

    inv_gs = 1.0 / GS
    # GS == 1 yields NaN (0 * inf), matching torch.var's unbiased behaviour.
    inv_gsm1 = (1.0 / (GS - 1)) if GS > 1 else float("inf")

    # eps/constants are closure-bound compile-time constants (distinct eps
    # values recompile; numerically identical to the module).
    kernel = functools.partial(_cgn_kernel, float(eps), inv_gs, inv_gsm1)

    cost = pl.CostEstimate(
        flops=int(N * C * (6 * G + 12)),
        transcendentals=int(N * G),
        bytes_accessed=int(16 * N * C),
    )

    out_r, out_i = pl.pallas_call(
        kernel,
        out_shape=(
            jax.ShapeDtypeStruct((N, C), jnp.float32),
            jax.ShapeDtypeStruct((N, C), jnp.float32),
        ),
        grid=grid,
        in_specs=[
            pl.BlockSpec((tn, C), lambda i: (i, 0)),   # xr
            pl.BlockSpec((tn, C), lambda i: (i, 0)),   # xi
            pl.BlockSpec((C, G), lambda i: (0, 0)),    # gsum (fetched once)
            pl.BlockSpec((G, C), lambda i: (0, 0)),    # gbc  (fetched once)
            pl.BlockSpec((1, C), lambda i: (0, 0)),    # weight
            pl.BlockSpec((1, C), lambda i: (0, 0)),    # bias
        ],
        out_specs=(
            pl.BlockSpec((tn, C), lambda i: (i, 0)),
            pl.BlockSpec((tn, C), lambda i: (i, 0)),
        ),
        compiler_params=pltpu.CompilerParams(
            dimension_semantics=("parallel",),
            vmem_limit_bytes=int(vmem_limit),
        ),
        cost_estimate=cost,
    )(xr, xi, gsum, gbc, w, b)

    return lax.complex(out_r, out_i)


if __name__ == "__main__":
    # Small shapes consistent with the module's forward: (batch, seq, hidden).
    B, S, H = 2, 8, 32
    num_groups = 4
    eps = 1e-5

    key = jax.random.PRNGKey(0)
    kr, ki = jax.random.split(key)
    x_re = jax.random.normal(kr, (B, S, H), dtype=jnp.float32)
    x_im = jax.random.normal(ki, (B, S, H), dtype=jnp.float32)
    x = lax.complex(x_re, x_im)                       # complex64

    # Deterministic, non-trivial params (exercise the scale/bias path).
    weight = 1.0 + 0.01 * jnp.arange(H, dtype=jnp.float32)
    bias = 0.01 * jnp.arange(H, dtype=jnp.float32)

    out = complex_group_norm(x, weight, bias, num_groups, eps)
    out = jax.block_until_ready(out)

    # Pure-JAX reference mirroring the PyTorch forward exactly.
    gs = H // num_groups
    xc = x.reshape(-1, num_groups, gs)
    mean = jnp.mean(xc, axis=2, keepdims=True)
    d = xc - mean
    var = jnp.sum(jnp.abs(d) ** 2, axis=2, keepdims=True) / (gs - 1)  # unbiased
    ref = (d / jnp.sqrt(var + eps)).reshape(-1, H) * weight + bias

    assert out.shape == (B * S, H) and out.dtype == jnp.complex64
    assert jnp.allclose(out, ref, atol=2e-5, rtol=2e-5), "mismatch vs reference"

    print("KERNEL_OK")
</pallas_src>

<mosaic_0001>
module attributes {stable_mosaic.version = 11 : i64} {
  func.func @_cgn_kernel(%arg0: i32, %arg1: memref<16x32xf32, #tpu.memory_space<vmem>>, %arg2: memref<16x32xf32, #tpu.memory_space<vmem>>, %arg3: memref<32x4xf32, #tpu.memory_space<vmem>>, %arg4: memref<4x32xf32, #tpu.memory_space<vmem>>, %arg5: memref<1x32xf32, #tpu.memory_space<vmem>>, %arg6: memref<1x32xf32, #tpu.memory_space<vmem>>, %arg7: memref<16x32xf32, #tpu.memory_space<vmem>>, %arg8: memref<16x32xf32, #tpu.memory_space<vmem>>) attributes {dimension_semantics = [#tpu.dimension_semantics<parallel>], iteration_bounds = array<i64: 1>, scalar_prefetch = 0 : i64, scratch_operands = 0 : i64, tpu.core_type = #tpu.core_type<tc>, window_params = [{transform_indices = @transform_0, window_bounds = array<i64: 16, 32>}, {transform_indices = @transform_1, window_bounds = array<i64: 16, 32>}, {pipeline_mode = #tpu.pipeline_mode<synchronous>, transform_indices = @transform_2, window_bounds = array<i64: 32, 4>}, {pipeline_mode = #tpu.pipeline_mode<synchronous>, transform_indices = @transform_3, window_bounds = array<i64: 4, 32>}, {pipeline_mode = #tpu.pipeline_mode<synchronous>, transform_indices = @transform_4, window_bounds = array<i64: 1, 32>}, {pipeline_mode = #tpu.pipeline_mode<synchronous>, transform_indices = @transform_5, window_bounds = array<i64: 1, 32>}, {transform_indices = @transform_6, window_bounds = array<i64: 16, 32>}, {transform_indices = @transform_7, window_bounds = array<i64: 16, 32>}]} {
    %c0 = arith.constant 0 : index
    %c0_0 = arith.constant 0 : index
    %0 = vector.load %arg1[%c0, %c0_0] : memref<16x32xf32, #tpu.memory_space<vmem>>, vector<16x32xf32>
    %c0_1 = arith.constant 0 : index
    %c0_2 = arith.constant 0 : index
    %1 = vector.load %arg2[%c0_1, %c0_2] : memref<16x32xf32, #tpu.memory_space<vmem>>, vector<16x32xf32>
    %c0_3 = arith.constant 0 : index
    %c0_4 = arith.constant 0 : index
    %2 = vector.load %arg3[%c0_3, %c0_4] : memref<32x4xf32, #tpu.memory_space<vmem>>, vector<32x4xf32>
    %c0_5 = arith.constant 0 : index
    %c0_6 = arith.constant 0 : index
    %3 = vector.load %arg4[%c0_5, %c0_6] : memref<4x32xf32, #tpu.memory_space<vmem>>, vector<4x32xf32>
    %cst = arith.constant dense<0.000000e+00> : vector<16x4xf32>
    %4 = tpu.matmul %0, %2, %cst {dimension_numbers = #tpu.dot_dimension_numbers<[1], [0], [0], [1], [0, 0, 1, 1], [], []>, precision = #tpu.contract_precision<fp32>} : vector<16x32xf32>, vector<32x4xf32>, vector<16x4xf32> -> vector<16x4xf32>
    %cst_7 = arith.constant 1.250000e-01 : f32
    %5 = vector.broadcast %cst_7 : f32 to vector<16x4xf32>
    %6 = arith.mulf %4, %5 : vector<16x4xf32>
    %cst_8 = arith.constant dense<0.000000e+00> : vector<16x4xf32>
    %7 = tpu.matmul %1, %2, %cst_8 {dimension_numbers = #tpu.dot_dimension_numbers<[1], [0], [0], [1], [0, 0, 1, 1], [], []>, precision = #tpu.contract_precision<fp32>} : vector<16x32xf32>, vector<32x4xf32>, vector<16x4xf32> -> vector<16x4xf32>
    %cst_9 = arith.constant 1.250000e-01 : f32
    %8 = vector.broadcast %cst_9 : f32 to vector<16x4xf32>
    %9 = arith.mulf %7, %8 : vector<16x4xf32>
    %cst_10 = arith.constant dense<0.000000e+00> : vector<16x32xf32>
    %10 = tpu.matmul %6, %3, %cst_10 {dimension_numbers = #tpu.dot_dimension_numbers<[1], [0], [0], [1], [0, 0, 1, 1], [], []>, precision = #tpu.contract_precision<fp32>} : vector<16x4xf32>, vector<4x32xf32>, vector<16x32xf32> -> vector<16x32xf32>
    %11 = arith.subf %0, %10 : vector<16x32xf32>
    %cst_11 = arith.constant dense<0.000000e+00> : vector<16x32xf32>
    %12 = tpu.matmul %9, %3, %cst_11 {dimension_numbers = #tpu.dot_dimension_numbers<[1], [0], [0], [1], [0, 0, 1, 1], [], []>, precision = #tpu.contract_precision<fp32>} : vector<16x4xf32>, vector<4x32xf32>, vector<16x32xf32> -> vector<16x32xf32>
    %13 = arith.subf %1, %12 : vector<16x32xf32>
    %14 = arith.mulf %11, %11 : vector<16x32xf32>
    %15 = arith.mulf %13, %13 : vector<16x32xf32>
    %16 = arith.addf %14, %15 : vector<16x32xf32>
    %cst_12 = arith.constant dense<0.000000e+00> : vector<16x4xf32>
    %17 = tpu.matmul %16, %2, %cst_12 {dimension_numbers = #tpu.dot_dimension_numbers<[1], [0], [0], [1], [0, 0, 1, 1], [], []>, precision = #tpu.contract_precision<fp32>} : vector<16x32xf32>, vector<32x4xf32>, vector<16x4xf32> -> vector<16x4xf32>
    %cst_13 = arith.constant 0.142857149 : f32
    %18 = vector.broadcast %cst_13 : f32 to vector<16x4xf32>
    %19 = arith.mulf %17, %18 : vector<16x4xf32>
    %cst_14 = arith.constant 9.99999974E-6 : f32
    %20 = vector.broadcast %cst_14 : f32 to vector<16x4xf32>
    %21 = arith.addf %19, %20 : vector<16x4xf32>
    %22 = math.rsqrt %21 : vector<16x4xf32>
    %cst_15 = arith.constant dense<0.000000e+00> : vector<16x32xf32>
    %23 = tpu.matmul %22, %3, %cst_15 {dimension_numbers = #tpu.dot_dimension_numbers<[1], [0], [0], [1], [0, 0, 1, 1], [], []>, precision = #tpu.contract_precision<fp32>} : vector<16x4xf32>, vector<4x32xf32>, vector<16x32xf32> -> vector<16x32xf32>
    %c0_16 = arith.constant 0 : index
    %c0_17 = arith.constant 0 : index
    %24 = vector.load %arg5[%c0_16, %c0_17] : memref<1x32xf32, #tpu.memory_space<vmem>>, vector<1x32xf32>
    %c0_18 = arith.constant 0 : index
    %c0_19 = arith.constant 0 : index
    %25 = vector.load %arg6[%c0_18, %c0_19] : memref<1x32xf32, #tpu.memory_space<vmem>>, vector<1x32xf32>
    %26 = arith.mulf %11, %23 : vector<16x32xf32>
    %27 = vector.broadcast %24 : vector<1x32xf32> to vector<16x32xf32>
    %28 = arith.mulf %26, %27 : vector<16x32xf32>
    %29 = vector.broadcast %25 : vector<1x32xf32> to vector<16x32xf32>
    %30 = arith.addf %28, %29 : vector<16x32xf32>
    %c0_20 = arith.constant 0 : index
    %c0_21 = arith.constant 0 : index
    %31 = vector.load %arg7[%c0_20, %c0_21] : memref<16x32xf32, #tpu.memory_space<vmem>>, vector<16x32xf32>
    tpu.vector_store %arg7[%c0_20, %c0_21], %30 {strides = array<i32>} : memref<16x32xf32, #tpu.memory_space<vmem>>, vector<16x32xf32>,
    %32 = arith.mulf %13, %23 : vector<16x32xf32>
    %33 = vector.broadcast %24 : vector<1x32xf32> to vector<16x32xf32>
    %34 = arith.mulf %32, %33 : vector<16x32xf32>
    %c0_22 = arith.constant 0 : index
    %c0_23 = arith.constant 0 : index
    %35 = vector.load %arg8[%c0_22, %c0_23] : memref<16x32xf32, #tpu.memory_space<vmem>>, vector<16x32xf32>
    tpu.vector_store %arg8[%c0_22, %c0_23], %34 {strides = array<i32>} : memref<16x32xf32, #tpu.memory_space<vmem>>, vector<16x32xf32>,
    return
  }
  func.func @transform_0(%arg0: i32) -> (i32, i32) {
    %c0_i32 = arith.constant 0 : i32
    %c0_i32_0 = arith.constant 0 : i32
    return %arg0, %c0_i32 : i32, i32
  }
  func.func @transform_1(%arg0: i32) -> (i32, i32) {
    %c0_i32 = arith.constant 0 : i32
    %c0_i32_0 = arith.constant 0 : i32
    return %arg0, %c0_i32 : i32, i32
  }
  func.func @transform_2(%arg0: i32) -> (i32, i32) {
    %c0_i32 = arith.constant 0 : i32
    %c0_i32_0 = arith.constant 0 : i32
    %c0_i32_1 = arith.constant 0 : i32
    return %c0_i32, %c0_i32_0 : i32, i32
  }
  func.func @transform_3(%arg0: i32) -> (i32, i32) {
    %c0_i32 = arith.constant 0 : i32
    %c0_i32_0 = arith.constant 0 : i32
    %c0_i32_1 = arith.constant 0 : i32
    return %c0_i32, %c0_i32_0 : i32, i32
  }
  func.func @transform_4(%arg0: i32) -> (i32, i32) {
    %c0_i32 = arith.constant 0 : i32
    %c0_i32_0 = arith.constant 0 : i32
    %c0_i32_1 = arith.constant 0 : i32
    return %c0_i32, %c0_i32_0 : i32, i32
  }
  func.func @transform_5(%arg0: i32) -> (i32, i32) {
    %c0_i32 = arith.constant 0 : i32
    %c0_i32_0 = arith.constant 0 : i32
    %c0_i32_1 = arith.constant 0 : i32
    return %c0_i32, %c0_i32_0 : i32, i32
  }
  func.func @transform_6(%arg0: i32) -> (i32, i32) {
    %c0_i32 = arith.constant 0 : i32
    %c0_i32_0 = arith.constant 0 : i32
    return %arg0, %c0_i32 : i32, i32
  }
  func.func @transform_7(%arg0: i32) -> (i32, i32) {
    %c0_i32 = arith.constant 0 : i32
    %c0_i32_0 = arith.constant 0 : i32
    return %arg0, %c0_i32 : i32, i32
  }
}

</mosaic_0001>

<llo_original>
// kernel: tpu_custom_call.1
$region0: #{tpu_custom_call.1}
  #allocation0 [shape = 'u32[]', space=smem, size = 0x4, offset = 0x4, fixed_abs, tag = 'smem constant byte address 0x4 - core index']
  #allocation1 [shape = 'u32[144,128]{1,0:T(1,128)}', space=vmem, size = 0x12000, scoped, tag = 'internal scratch']
  %s0 = inlined_call_operand.vmem [shape: f32[16,32], index: 0, kind: input, shape index: {}]
  %s1 = inlined_call_operand.vmem [shape: f32[16,32], index: 1, kind: input, shape index: {}]
  %s2 = inlined_call_operand.vmem [shape: f32[32,4], index: 2, kind: input, shape index: {}]
  %s3 = inlined_call_operand.vmem [shape: f32[4,32], index: 3, kind: input, shape index: {}]
  %s4 = inlined_call_operand.vmem [shape: f32[1,32], index: 4, kind: input, shape index: {}]
  %s5 = inlined_call_operand.vmem [shape: f32[1,32], index: 5, kind: input, shape index: {}]
  %s6 = inlined_call_operand.hbm [shape: f32[16,32], index: 6, kind: output, shape index: {0}]
  %s7 = inlined_call_operand.hbm [shape: f32[16,32], index: 7, kind: output, shape index: {1}]
  %8 = xla_tuple %s6, %s7
  %s9 = sld [smem:[#allocation0]]
  $region42: #{tpu_custom_call.1} parent=0
    _
  %s11 = ssub.s32 1, %s9
  %s12 = scalar_select 0, %s11, %s9
  $region1: #{tpu_custom_call.1} parent=0
    #allocation2 [shape = 'u8[8192]{0}', space=vmem, size = 0x2000, scoped, tag = 'output window, operand 0, single buffered']
    #allocation3 [shape = 's32[1]{0}', space=sflag, size = 0x4, scoped, tag = 'scoped memory for tpu_custom_call.1']
    #allocation4 [shape = 'u8[8192]{0}', space=vmem, size = 0x2000, scoped, tag = 'output window, operand 1, single buffered']
    #allocation5 [shape = 's32[1]{0}', space=sflag, size = 0x4, scoped, tag = 'scoped memory for tpu_custom_call.1']
    %13 = vsyncpa [#allocation3], 0
    %14 = vsyncpa [#allocation5], 0
    // Predicated region
    $region2: #{tpu_custom_call.1} parent=1 // pred_check
      _
    $region3: #{tpu_custom_call.1} parent=1 // pred_check_branch
      %16 = sbr.rel (0) target = $region5
    $region4: #{tpu_custom_call.1} parent=1 // pred_region
      _
    $region5: #{tpu_custom_call.1} parent=1 // pred_fallthru
      _
    // Predicated region
    $region6: #{tpu_custom_call.1} parent=1 // pred_check
      _
    $region7: #{tpu_custom_call.1} parent=1 // pred_check_branch
      %18 = sbr.rel (0) target = $region9
    $region8: #{tpu_custom_call.1} parent=1 // pred_region
      _
    $region9: #{tpu_custom_call.1} parent=1 // pred_fallthru
      _
    // Predicated region
    $region10: #{tpu_custom_call.1} parent=1 // pred_check
      _
    $region11: #{tpu_custom_call.1} parent=1 // pred_check_branch
      %20 = sbr.rel (0) target = $region13
    $region12: #{tpu_custom_call.1} parent=1 // pred_region
      _
    $region13: #{tpu_custom_call.1} parent=1 // pred_fallthru
      _
    // Predicated region
    $region14: #{tpu_custom_call.1} parent=1 // pred_check
      _
    $region15: #{tpu_custom_call.1} parent=1 // pred_check_branch
      %22 = sbr.rel (0) target = $region17
    $region16: #{tpu_custom_call.1} parent=1 // pred_region
      _
    $region17: #{tpu_custom_call.1} parent=1 // pred_fallthru
      _
    // Predicated region
    $region18: #{tpu_custom_call.1} parent=1 // pred_check
      _
    $region19: #{tpu_custom_call.1} parent=1 // pred_check_branch
      %24 = sbr.rel (0) target = $region21
    $region20: #{tpu_custom_call.1} parent=1 // pred_region
      _
    $region21: #{tpu_custom_call.1} parent=1 // pred_fallthru
      _
    // Predicated region
    $region22: #{tpu_custom_call.1} parent=1 // pred_check
      _
    $region23: #{tpu_custom_call.1} parent=1 // pred_check_branch
      %26 = sbr.rel (0) target = $region25
    $region24: #{tpu_custom_call.1} parent=1 // pred_region
      _
    $region25: #{tpu_custom_call.1} parent=1 // pred_fallthru
      _
    %v27 = vld [vmem:[%s0] sm:$0xff]
    %v28 = vld [vmem:[%s0 + $0x8] sm:$0xff]
    %v29 = vld [vmem:[%s1] sm:$0xff]
    %v30 = vld [vmem:[%s1 + $0x8] sm:$0xff]
    %v31 = vld [vmem:[%s2] sm:$0xff]
    %v32 = vld [vmem:[%s2 + $0x8] sm:$0xff]
    %v33 = vld [vmem:[%s2 + $0x10] sm:$0xff]
    %v34 = vld [vmem:[%s2 + $0x18] sm:$0xff]
    %v35 = vld [vmem:[%s3] sm:$0xf]
    %vm36 = vcmask 261120
    %v38 = vsel %vm36, %v27, 0
    %v41 = vsel %vm36, %v28, 0
    %43 = vmatprep.subr.mxu0 0.0
    %v44 = vand.u32 %v31, 4294901760
    %45 = vmatpush1.msra.mxu0 %v44
    %46 = vmatprep.subr.mxu0 0.0
    %v47 = vand.u32 %v32, 4294901760
    %48 = vmatpush1.msra.mxu0 %v47
    %49 = vmatprep.subr.mxu0 0.0
    %v50 = vand.u32 %v33, 4294901760
    %51 = vmatpush1.msra.mxu0 %v50
    %52 = vmatprep.subr.mxu0 0.0
    %v53 = vand.u32 %v34, 4294901760
    %54 = vmatpush1.msra.mxu0 %v53
    %55 = vmatprep.subr.mxu0 0.0
    %56 = vmatpush1.msra.mxu0 0.0
    %57 = vmatprep.subr.mxu0 0.0
    %58 = vmatpush1.msra.mxu0 0.0
    %59 = vmatprep.subr.mxu0 0.0
    %60 = vmatpush1.msra.mxu0 0.0
    %61 = vmatprep.subr.mxu0 0.0
    %62 = vmatpush1.msra.mxu0 0.0
    %63 = vmatprep.subr.mxu0 0.0
    %64 = vmatpush1.msra.mxu0 0.0
    %65 = vmatprep.subr.mxu0 0.0
    %66 = vmatpush1.msra.mxu0 0.0
    %67 = vmatprep.subr.mxu0 0.0
    %68 = vmatpush1.msra.mxu0 0.0
    %69 = vmatprep.subr.mxu0 0.0
    %70 = vmatpush1.msra.mxu0 0.0
    %71 = vmatprep.subr.mxu0 0.0
    %72 = vmatpush1.msra.mxu0 0.0
    %73 = vmatprep.subr.mxu0 0.0
    %74 = vmatpush1.msra.mxu0 0.0
    %75 = vmatprep.subr.mxu0 0.0
    %76 = vmatpush1.msra.mxu0 0.0
    %77 = vmatprep.subr.mxu0 0.0
    %78 = vmatpush1.msra.mxu0 0.0
    %79 = vmatprep.subr.mxu0 0.0
    %80 = vmatpush1.msra.mxu0 0.0
    %81 = vmatprep.subr.mxu0 0.0
    %82 = vmatpush1.msra.mxu0 0.0
    %83 = vmatprep.subr.mxu0 0.0
    %84 = vmatpush1.msra.mxu0 0.0
    %85 = vmatprep.subr.mxu0 0.0
    %86 = vmatpush1.msra.mxu0 0.0
    %87 = vmatprep.subr.mxu0 0.0
    %88 = vmatpush1.msra.mxu0 0.0
    %89 = vmatprep.subr.mxu0 0.0
    %90 = vmatpush1.msra.mxu0 0.0
    %91 = vmatprep.subr.mxu0 0.0
    %92 = vmatpush1.msra.mxu0 0.0
    %93 = vmatprep.subr.mxu0 0.0
    %94 = vmatpush1.msra.mxu0 0.0
    %95 = vmatprep.subr.mxu0 0.0
    %96 = vmatpush1.msra.mxu0 0.0
    %97 = vmatprep.subr.mxu0 0.0
    %98 = vmatpush1.msra.mxu0 0.0
    %99 = vmatprep.subr.mxu0 0.0
    %100 = vmatpush1.msra.mxu0 0.0
    %101 = vmatprep.subr.mxu0 0.0
    %102 = vmatpush1.msra.mxu0 0.0
    %103 = vmatprep.subr.mxu0 0.0
    %104 = vmatpush1.msra.mxu0 0.0
    %105 = vmatprep.subr.mxu0 0.0
    %106 = vmatpush1.msra.mxu0 0.0
    %107 = vmatprep.subr.mxu0 0.0
    %108 = vmatpush1.msra.mxu0 0.0
    %109 = vmatprep.subr.mxu0 0.0
    %110 = vmatpush1.msra.mxu0 0.0
    %111 = vmatprep.mubr.f32.mxu0 0.0
    %v112 = vand.u32 %v38, 4294901760
    %v113 = vsub.f32 %v38, %v112
    %v114 = vand.u32 %v113, 4294901760
    %v115 = vsub.f32 %v113, %v114
    %v116 = vand.u32 %v115, 4294901760
    %117 = vmatmul.mubr.f32.gmra.mrb[0].mxu0 %v116
    %v118 = vpop.f32.mrb[0].mxu0
    %v119 = vadd.f32 0.0, %v118
    %v120 = vpop.f32.mrb[0].mxu0
    %121 = vmatprep.mubr.f32.mxu0 0.0
    %v122 = vand.u32 %v41, 4294901760
    %v123 = vsub.f32 %v41, %v122
    %v124 = vand.u32 %v123, 4294901760
    %v125 = vsub.f32 %v123, %v124
    %v126 = vand.u32 %v125, 4294901760
    %127 = vmatmul.mubr.f32.gmra.mrb[0].mxu0 %v126
    %v128 = vpop.f32.mrb[0].mxu0
    %v129 = vadd.f32 0.0, %v128
    %v130 = vpop.f32.mrb[0].mxu0
    %131 = vdwg.mxu0
    %132 = vmatprep.subr.mxu0 0.0
    %v133 = vand.u32 %v31, 4294901760
    %v134 = vsub.f32 %v31, %v133
    %v135 = vand.u32 %v134, 4294901760
    %v136 = vsub.f32 %v134, %v135
    %v137 = vand.u32 %v136, 4294901760
    %138 = vmatpush1.msra.mxu0 %v137
    %139 = vmatprep.subr.mxu0 0.0
    %v140 = vand.u32 %v32, 4294901760
    %v141 = vsub.f32 %v32, %v140
    %v142 = vand.u32 %v141, 4294901760
    %v143 = vsub.f32 %v141, %v142
    %v144 = vand.u32 %v143, 4294901760
    %145 = vmatpush1.msra.mxu0 %v144
    %146 = vmatprep.subr.mxu0 0.0
    %v147 = vand.u32 %v33, 4294901760
    %v148 = vsub.f32 %v33, %v147
    %v149 = vand.u32 %v148, 4294901760
    %v150 = vsub.f32 %v148, %v149
    %v151 = vand.u32 %v150, 4294901760
    %152 = vmatpush1.msra.mxu0 %v151
    %153 = vmatprep.subr.mxu0 0.0
    %v154 = vand.u32 %v34, 4294901760
    %v155 = vsub.f32 %v34, %v154
    %v156 = vand.u32 %v155, 4294901760
    %v157 = vsub.f32 %v155, %v156
    %v158 = vand.u32 %v157, 4294901760
    %159 = vmatpush1.msra.mxu0 %v158
    %160 = vmatprep.subr.mxu0 0.0
    %161 = vmatpush1.msra.mxu0 0.0
    %162 = vmatprep.subr.mxu0 0.0
    %163 = vmatpush1.msra.mxu0 0.0
    %164 = vmatprep.subr.mxu0 0.0
    %165 = vmatpush1.msra.mxu0 0.0
    %166 = vmatprep.subr.mxu0 0.0
    %167 = vmatpush1.msra.mxu0 0.0
    %168 = vmatprep.subr.mxu0 0.0
    %169 = vmatpush1.msra.mxu0 0.0
    %170 = vmatprep.subr.mxu0 0.0
    %171 = vmatpush1.msra.mxu0 0.0
    %172 = vmatprep.subr.mxu0 0.0
    %173 = vmatpush1.msra.mxu0 0.0
    %174 = vmatprep.subr.mxu0 0.0
    %175 = vmatpush1.msra.mxu0 0.0
    %176 = vmatprep.subr.mxu0 0.0
    %177 = vmatpush1.msra.mxu0 0.0
    %178 = vmatprep.subr.mxu0 0.0
    %179 = vmatpush1.msra.mxu0 0.0
    %180 = vmatprep.subr.mxu0 0.0
    %181 = vmatpush1.msra.mxu0 0.0
    %182 = vmatprep.subr.mxu0 0.0
    %183 = vmatpush1.msra.mxu0 0.0
    %184 = vmatprep.subr.mxu0 0.0
    %185 = vmatpush1.msra.mxu0 0.0
    %186 = vmatprep.subr.mxu0 0.0
    %187 = vmatpush1.msra.mxu0 0.0
    %188 = vmatprep.subr.mxu0 0.0
    %189 = vmatpush1.msra.mxu0 0.0
    %190 = vmatprep.subr.mxu0 0.0
    %191 = vmatpush1.msra.mxu0 0.0
    %192 = vmatprep.subr.mxu0 0.0
    %193 = vmatpush1.msra.mxu0 0.0
    %194 = vmatprep.subr.mxu0 0.0
    %195 = vmatpush1.msra.mxu0 0.0
    %196 = vmatprep.subr.mxu0 0.0
    %197 = vmatpush1.msra.mxu0 0.0
    %198 = vmatprep.subr.mxu0 0.0
    %199 = vmatpush1.msra.mxu0 0.0
    %200 = vmatprep.subr.mxu0 0.0
    %201 = vmatpush1.msra.mxu0 0.0
    %202 = vmatprep.subr.mxu0 0.0
    %203 = vmatpush1.msra.mxu0 0.0
    %204 = vmatprep.subr.mxu0 0.0
    %205 = vmatpush1.msra.mxu0 0.0
    %206 = vmatprep.subr.mxu0 0.0
    %207 = vmatpush1.msra.mxu0 0.0
    %208 = vmatprep.subr.mxu0 0.0
    %209 = vmatpush1.msra.mxu0 0.0
    %210 = vmatprep.subr.mxu0 0.0
    %211 = vmatpush1.msra.mxu0 0.0
    %212 = vmatprep.subr.mxu0 0.0
    %213 = vmatpush1.msra.mxu0 0.0
    %214 = vmatprep.subr.mxu0 0.0
    %215 = vmatpush1.msra.mxu0 0.0
    %216 = vmatprep.mubr.f32.mxu0 0.0
    %v217 = vand.u32 %v38, 4294901760
    %218 = vmatmul.mubr.f32.gmra.mrb[0].mxu0 %v217
    %v219 = vpop.f32.mrb[0].mxu0
    %v220 = vadd.f32 %v119, %v219
    %v221 = vpop.f32.mrb[0].mxu0
    %222 = vmatprep.mubr.f32.mxu0 0.0
    %v223 = vand.u32 %v41, 4294901760
    %224 = vmatmul.mubr.f32.gmra.mrb[0].mxu0 %v223
    %v225 = vpop.f32.mrb[0].mxu0
    %v226 = vadd.f32 %v129, %v225
    %v227 = vpop.f32.mrb[0].mxu0
    %228 = vdwg.mxu0
    %229 = vmatprep.subr.mxu0 0.0
    %v230 = vand.u32 %v31, 4294901760
    %v231 = vsub.f32 %v31, %v230
    %232 = vmatpush1.msra.mxu0 %v231
    %233 = vmatprep.subr.mxu0 0.0
    %v234 = vand.u32 %v32, 4294901760
    %v235 = vsub.f32 %v32, %v234
    %236 = vmatpush1.msra.mxu0 %v235
    %237 = vmatprep.subr.mxu0 0.0
    %v238 = vand.u32 %v33, 4294901760
    %v239 = vsub.f32 %v33, %v238
    %240 = vmatpush1.msra.mxu0 %v239
    %241 = vmatprep.subr.mxu0 0.0
    %v242 = vand.u32 %v34, 4294901760
    %v243 = vsub.f32 %v34, %v242
    %244 = vmatpush1.msra.mxu0 %v243
    %245 = vmatprep.subr.mxu0 0.0
    %246 = vmatpush1.msra.mxu0 0.0
    %247 = vmatprep.subr.mxu0 0.0
    %248 = vmatpush1.msra.mxu0 0.0
    %249 = vmatprep.subr.mxu0 0.0
    %250 = vmatpush1.msra.mxu0 0.0
    %251 = vmatprep.subr.mxu0 0.0
    %252 = vmatpush1.msra.mxu0 0.0
    %253 = vmatprep.subr.mxu0 0.0
    %254 = vmatpush1.msra.mxu0 0.0
    %255 = vmatprep.subr.mxu0 0.0
    %256 = vmatpush1.msra.mxu0 0.0
    %257 = vmatprep.subr.mxu0 0.0
    %258 = vmatpush1.msra.mxu0 0.0
    %259 = vmatprep.subr.mxu0 0.0
    %260 = vmatpush1.msra.mxu0 0.0
    %261 = vmatprep.subr.mxu0 0.0
    %262 = vmatpush1.msra.mxu0 0.0
    %263 = vmatprep.subr.mxu0 0.0
    %264 = vmatpush1.msra.mxu0 0.0
    %265 = vmatprep.subr.mxu0 0.0
    %266 = vmatpush1.msra.mxu0 0.0
    %267 = vmatprep.subr.mxu0 0.0
    %268 = vmatpush1.msra.mxu0 0.0
    %269 = vmatprep.subr.mxu0 0.0
    %270 = vmatpush1.msra.mxu0 0.0
    %271 = vmatprep.subr.mxu0 0.0
    %272 = vmatpush1.msra.mxu0 0.0
    %273 = vmatprep.subr.mxu0 0.0
    %274 = vmatpush1.msra.mxu0 0.0
    %275 = vmatprep.subr.mxu0 0.0
    %276 = vmatpush1.msra.mxu0 0.0
    %277 = vmatprep.subr.mxu0 0.0
    %278 = vmatpush1.msra.mxu0 0.0
    %279 = vmatprep.subr.mxu0 0.0
    %280 = vmatpush1.msra.mxu0 0.0
    %281 = vmatprep.subr.mxu0 0.0
    %282 = vmatpush1.msra.mxu0 0.0
    %283 = vmatprep.subr.mxu0 0.0
    %284 = vmatpush1.msra.mxu0 0.0
    %285 = vmatprep.subr.mxu0 0.0
    %286 = vmatpush1.msra.mxu0 0.0
    %287 = vmatprep.subr.mxu0 0.0
    %288 = vmatpush1.msra.mxu0 0.0
    %289 = vmatprep.subr.mxu0 0.0
    %290 = vmatpush1.msra.mxu0 0.0
    %291 = vmatprep.subr.mxu0 0.0
    %292 = vmatpush1.msra.mxu0 0.0
    %293 = vmatprep.subr.mxu0 0.0
    %294 = vmatpush1.msra.mxu0 0.0
    %295 = vmatprep.subr.mxu0 0.0
    %296 = vmatpush1.msra.mxu0 0.0
    %297 = vmatprep.subr.mxu0 0.0
    %298 = vmatpush1.msra.mxu0 0.0
    %299 = vmatprep.subr.mxu0 0.0
    %300 = vmatpush1.msra.mxu0 0.0
    %301 = vmatprep.mubr.f32.mxu0 0.0
    %v302 = vand.u32 %v38, 4294901760
    %v303 = vsub.f32 %v38, %v302
    %304 = vmatmul.mubr.f32.gmra.mrb[0].mxu0 %v303
    %v305 = vpop.f32.mrb[0].mxu0
    %v306 = vadd.f32 %v220, %v305
    %v307 = vpop.f32.mrb[0].mxu0
    %308 = vmatprep.mubr.f32.mxu0 0.0
    %v309 = vand.u32 %v41, 4294901760
    %v310 = vsub.f32 %v41, %v309
    %311 = vmatmul.mubr.f32.gmra.mrb[0].mxu0 %v310
    %v312 = vpop.f32.mrb[0].mxu0
    %v313 = vadd.f32 %v226, %v312
    %v314 = vpop.f32.mrb[0].mxu0
    %315 = vdwg.mxu0
    %316 = vmatprep.subr.mxu0 0.0
    %v317 = vand.u32 %v31, 4294901760
    %318 = vmatpush1.msra.mxu0 %v317
    %319 = vmatprep.subr.mxu0 0.0
    %v320 = vand.u32 %v32, 4294901760
    %321 = vmatpush1.msra.mxu0 %v320
    %322 = vmatprep.subr.mxu0 0.0
    %v323 = vand.u32 %v33, 4294901760
    %324 = vmatpush1.msra.mxu0 %v323
    %325 = vmatprep.subr.mxu0 0.0
    %v326 = vand.u32 %v34, 4294901760
    %327 = vmatpush1.msra.mxu0 %v326
    %328 = vmatprep.subr.mxu0 0.0
    %329 = vmatpush1.msra.mxu0 0.0
    %330 = vmatprep.subr.mxu0 0.0
    %331 = vmatpush1.msra.mxu0 0.0
    %332 = vmatprep.subr.mxu0 0.0
    %333 = vmatpush1.msra.mxu0 0.0
    %334 = vmatprep.subr.mxu0 0.0
    %335 = vmatpush1.msra.mxu0 0.0
    %336 = vmatprep.subr.mxu0 0.0
    %337 = vmatpush1.msra.mxu0 0.0
    %338 = vmatprep.subr.mxu0 0.0
    %339 = vmatpush1.msra.mxu0 0.0
    %340 = vmatprep.subr.mxu0 0.0
    %341 = vmatpush1.msra.mxu0 0.0
    %342 = vmatprep.subr.mxu0 0.0
    %343 = vmatpush1.msra.mxu0 0.0
    %344 = vmatprep.subr.mxu0 0.0
    %345 = vmatpush1.msra.mxu0 0.0
    %346 = vmatprep.subr.mxu0 0.0
    %347 = vmatpush1.msra.mxu0 0.0
    %348 = vmatprep.subr.mxu0 0.0
    %349 = vmatpush1.msra.mxu0 0.0
    %350 = vmatprep.subr.mxu0 0.0
    %351 = vmatpush1.msra.mxu0 0.0
    %352 = vmatprep.subr.mxu0 0.0
    %353 = vmatpush1.msra.mxu0 0.0
    %354 = vmatprep.subr.mxu0 0.0
    %355 = vmatpush1.msra.mxu0 0.0
    %356 = vmatprep.subr.mxu0 0.0
    %357 = vmatpush1.msra.mxu0 0.0
    %358 = vmatprep.subr.mxu0 0.0
    %359 = vmatpush1.msra.mxu0 0.0
    %360 = vmatprep.subr.mxu0 0.0
    %361 = vmatpush1.msra.mxu0 0.0
    %362 = vmatprep.subr.mxu0 0.0
    %363 = vmatpush1.msra.mxu0 0.0
    %364 = vmatprep.subr.mxu0 0.0
    %365 = vmatpush1.msra.mxu0 0.0
    %366 = vmatprep.subr.mxu0 0.0
    %367 = vmatpush1.msra.mxu0 0.0
    %368 = vmatprep.subr.mxu0 0.0
    %369 = vmatpush1.msra.mxu0 0.0
    %370 = vmatprep.subr.mxu0 0.0
    %371 = vmatpush1.msra.mxu0 0.0
    %372 = vmatprep.subr.mxu0 0.0
    %373 = vmatpush1.msra.mxu0 0.0
    %374 = vmatprep.subr.mxu0 0.0
    %375 = vmatpush1.msra.mxu0 0.0
    %376 = vmatprep.subr.mxu0 0.0
    %377 = vmatpush1.msra.mxu0 0.0
    %378 = vmatprep.subr.mxu0 0.0
    %379 = vmatpush1.msra.mxu0 0.0
    %380 = vmatprep.subr.mxu0 0.0
    %381 = vmatpush1.msra.mxu0 0.0
    %382 = vmatprep.subr.mxu0 0.0
    %383 = vmatpush1.msra.mxu0 0.0
    %384 = vmatprep.mubr.f32.mxu0 0.0
    %v385 = vand.u32 %v38, 4294901760
    %v386 = vsub.f32 %v38, %v385
    %v387 = vand.u32 %v386, 4294901760
    %388 = vmatmul.mubr.f32.gmra.mrb[0].mxu0 %v387
    %v389 = vpop.f32.mrb[0].mxu0
    %v390 = vadd.f32 %v306, %v389
    %v391 = vpop.f32.mrb[0].mxu0
    %392 = vmatprep.mubr.f32.mxu0 0.0
    %v393 = vand.u32 %v41, 4294901760
    %v394 = vsub.f32 %v41, %v393
    %v395 = vand.u32 %v394, 4294901760
    %396 = vmatmul.mubr.f32.gmra.mrb[0].mxu0 %v395
    %v397 = vpop.f32.mrb[0].mxu0
    %v398 = vadd.f32 %v313, %v397
    %v399 = vpop.f32.mrb[0].mxu0
    %400 = vdwg.mxu0
    %401 = vmatprep.subr.mxu0 0.0
    %v402 = vand.u32 %v31, 4294901760
    %v403 = vsub.f32 %v31, %v402
    %v404 = vand.u32 %v403, 4294901760
    %405 = vmatpush1.msra.mxu0 %v404
    %406 = vmatprep.subr.mxu0 0.0
    %v407 = vand.u32 %v32, 4294901760
    %v408 = vsub.f32 %v32, %v407
    %v409 = vand.u32 %v408, 4294901760
    %410 = vmatpush1.msra.mxu0 %v409
    %411 = vmatprep.subr.mxu0 0.0
    %v412 = vand.u32 %v33, 4294901760
    %v413 = vsub.f32 %v33, %v412
    %v414 = vand.u32 %v413, 4294901760
    %415 = vmatpush1.msra.mxu0 %v414
    %416 = vmatprep.subr.mxu0 0.0
    %v417 = vand.u32 %v34, 4294901760
    %v418 = vsub.f32 %v34, %v417
    %v419 = vand.u32 %v418, 4294901760
    %420 = vmatpush1.msra.mxu0 %v419
    %421 = vmatprep.subr.mxu0 0.0
    %422 = vmatpush1.msra.mxu0 0.0
    %423 = vmatprep.subr.mxu0 0.0
    %424 = vmatpush1.msra.mxu0 0.0
    %425 = vmatprep.subr.mxu0 0.0
    %426 = vmatpush1.msra.mxu0 0.0
    %427 = vmatprep.subr.mxu0 0.0
    %428 = vmatpush1.msra.mxu0 0.0
    %429 = vmatprep.subr.mxu0 0.0
    %430 = vmatpush1.msra.mxu0 0.0
    %431 = vmatprep.subr.mxu0 0.0
    %432 = vmatpush1.msra.mxu0 0.0
    %433 = vmatprep.subr.mxu0 0.0
    %434 = vmatpush1.msra.mxu0 0.0
    %435 = vmatprep.subr.mxu0 0.0
    %436 = vmatpush1.msra.mxu0 0.0
    %437 = vmatprep.subr.mxu0 0.0
    %438 = vmatpush1.msra.mxu0 0.0
    %439 = vmatprep.subr.mxu0 0.0
    %440 = vmatpush1.msra.mxu0 0.0
    %441 = vmatprep.subr.mxu0 0.0
    %442 = vmatpush1.msra.mxu0 0.0
    %443 = vmatprep.subr.mxu0 0.0
    %444 = vmatpush1.msra.mxu0 0.0
    %445 = vmatprep.subr.mxu0 0.0
    %446 = vmatpush1.msra.mxu0 0.0
    %447 = vmatprep.subr.mxu0 0.0
    %448 = vmatpush1.msra.mxu0 0.0
    %449 = vmatprep.subr.mxu0 0.0
    %450 = vmatpush1.msra.mxu0 0.0
    %451 = vmatprep.subr.mxu0 0.0
    %452 = vmatpush1.msra.mxu0 0.0
    %453 = vmatprep.subr.mxu0 0.0
    %454 = vmatpush1.msra.mxu0 0.0
    %455 = vmatprep.subr.mxu0 0.0
    %456 = vmatpush1.msra.mxu0 0.0
    %457 = vmatprep.subr.mxu0 0.0
    %458 = vmatpush1.msra.mxu0 0.0
    %459 = vmatprep.subr.mxu0 0.0
    %460 = vmatpush1.msra.mxu0 0.0
    %461 = vmatprep.subr.mxu0 0.0
    %462 = vmatpush1.msra.mxu0 0.0
    %463 = vmatprep.subr.mxu0 0.0
    %464 = vmatpush1.msra.mxu0 0.0
    %465 = vmatprep.subr.mxu0 0.0
    %466 = vmatpush1.msra.mxu0 0.0
    %467 = vmatprep.subr.mxu0 0.0
    %468 = vmatpush1.msra.mxu0 0.0
    %469 = vmatprep.subr.mxu0 0.0
    %470 = vmatpush1.msra.mxu0 0.0
    %471 = vmatprep.subr.mxu0 0.0
    %472 = vmatpush1.msra.mxu0 0.0
    %473 = vmatprep.subr.mxu0 0.0
    %474 = vmatpush1.msra.mxu0 0.0
    %475 = vmatprep.subr.mxu0 0.0
    %476 = vmatpush1.msra.mxu0 0.0
    %477 = vmatprep.mubr.f32.mxu0 0.0
    %v478 = vand.u32 %v38, 4294901760
    %479 = vmatmul.mubr.f32.gmra.mrb[0].mxu0 %v478
    %v480 = vpop.f32.mrb[0].mxu0
    %v481 = vadd.f32 %v390, %v480
    %v482 = vpop.f32.mrb[0].mxu0
    %483 = vmatprep.mubr.f32.mxu0 0.0
    %v484 = vand.u32 %v41, 4294901760
    %485 = vmatmul.mubr.f32.gmra.mrb[0].mxu0 %v484
    %v486 = vpop.f32.mrb[0].mxu0
    %v487 = vadd.f32 %v398, %v486
    %v488 = vpop.f32.mrb[0].mxu0
    %489 = vdwg.mxu0
    %490 = vmatprep.subr.mxu0 0.0
    %v491 = vand.u32 %v31, 4294901760
    %492 = vmatpush1.msra.mxu0 %v491
    %493 = vmatprep.subr.mxu0 0.0
    %v494 = vand.u32 %v32, 4294901760
    %495 = vmatpush1.msra.mxu0 %v494
    %496 = vmatprep.subr.mxu0 0.0
    %v497 = vand.u32 %v33, 4294901760
    %498 = vmatpush1.msra.mxu0 %v497
    %499 = vmatprep.subr.mxu0 0.0
    %v500 = vand.u32 %v34, 4294901760
    %501 = vmatpush1.msra.mxu0 %v500
    %502 = vmatprep.subr.mxu0 0.0
    %503 = vmatpush1.msra.mxu0 0.0
    %504 = vmatprep.subr.mxu0 0.0
    %505 = vmatpush1.msra.mxu0 0.0
    %506 = vmatprep.subr.mxu0 0.0
    %507 = vmatpush1.msra.mxu0 0.0
    %508 = vmatprep.subr.mxu0 0.0
    %509 = vmatpush1.msra.mxu0 0.0
    %510 = vmatprep.subr.mxu0 0.0
    %511 = vmatpush1.msra.mxu0 0.0
    %512 = vmatprep.subr.mxu0 0.0
    %513 = vmatpush1.msra.mxu0 0.0
    %514 = vmatprep.subr.mxu0 0.0
    %515 = vmatpush1.msra.mxu0 0.0
    %516 = vmatprep.subr.mxu0 0.0
    %517 = vmatpush1.msra.mxu0 0.0
    %518 = vmatprep.subr.mxu0 0.0
    %519 = vmatpush1.msra.mxu0 0.0
    %520 = vmatprep.subr.mxu0 0.0
    %521 = vmatpush1.msra.mxu0 0.0
    %522 = vmatprep.subr.mxu0 0.0
    %523 = vmatpush1.msra.mxu0 0.0
    %524 = vmatprep.subr.mxu0 0.0
    %525 = vmatpush1.msra.mxu0 0.0
    %526 = vmatprep.subr.mxu0 0.0
    %527 = vmatpush1.msra.mxu0 0.0
    %528 = vmatprep.subr.mxu0 0.0
    %529 = vmatpush1.msra.mxu0 0.0
    %530 = vmatprep.subr.mxu0 0.0
    %531 = vmatpush1.msra.mxu0 0.0
    %532 = vmatprep.subr.mxu0 0.0
    %533 = vmatpush1.msra.mxu0 0.0
    %534 = vmatprep.subr.mxu0 0.0
    %535 = vmatpush1.msra.mxu0 0.0
    %536 = vmatprep.subr.mxu0 0.0
    %537 = vmatpush1.msra.mxu0 0.0
    %538 = vmatprep.subr.mxu0 0.0
    %539 = vmatpush1.msra.mxu0 0.0
    %540 = vmatprep.subr.mxu0 0.0
    %541 = vmatpush1.msra.mxu0 0.0
    %542 = vmatprep.subr.mxu0 0.0
    %543 = vmatpush1.msra.mxu0 0.0
    %544 = vmatprep.subr.mxu0 0.0
    %545 = vmatpush1.msra.mxu0 0.0
    %546 = vmatprep.subr.mxu0 0.0
    %547 = vmatpush1.msra.mxu0 0.0
    %548 = vmatprep.subr.mxu0 0.0
    %549 = vmatpush1.msra.mxu0 0.0
    %550 = vmatprep.subr.mxu0 0.0
    %551 = vmatpush1.msra.mxu0 0.0
    %552 = vmatprep.subr.mxu0 0.0
    %553 = vmatpush1.msra.mxu0 0.0
    %554 = vmatprep.subr.mxu0 0.0
    %555 = vmatpush1.msra.mxu0 0.0
    %556 = vmatprep.subr.mxu0 0.0
    %557 = vmatpush1.msra.mxu0 0.0
    %558 = vmatprep.mubr.f32.mxu0 0.0
    %v559 = vand.u32 %v38, 4294901760
    %560 = vmatmul.mubr.f32.gmra.mrb[0].mxu0 %v559
    %v561 = vpop.f32.mrb[0].mxu0
    %v562 = vadd.f32 %v481, %v561
    %v563 = vpop.f32.mrb[0].mxu0
    %564 = vmatprep.mubr.f32.mxu0 0.0
    %v565 = vand.u32 %v41, 4294901760
    %566 = vmatmul.mubr.f32.gmra.mrb[0].mxu0 %v565
    %v567 = vpop.f32.mrb[0].mxu0
    %v568 = vadd.f32 %v487, %v567
    %v569 = vpop.f32.mrb[0].mxu0
    %570 = vdwg.mxu0
    %v571 = vmul.f32 %v562, 0.125
    %v572 = vmul.f32 %v568, 0.125
    %v574 = vsel %vm36, %v29, 0
    %v577 = vsel %vm36, %v30, 0
    %579 = vmatprep.subr.mxu0 0.0
    %v580 = vand.u32 %v31, 4294901760
    %581 = vmatpush1.msra.mxu0 %v580
    %582 = vmatprep.subr.mxu0 0.0
    %v583 = vand.u32 %v32, 4294901760
    %584 = vmatpush1.msra.mxu0 %v583
    %585 = vmatprep.subr.mxu0 0.0
    %v586 = vand.u32 %v33, 4294901760
    %587 = vmatpush1.msra.mxu0 %v586
    %588 = vmatprep.subr.mxu0 0.0
    %v589 = vand.u32 %v34, 4294901760
    %590 = vmatpush1.msra.mxu0 %v589
    %591 = vmatprep.subr.mxu0 0.0
    %592 = vmatpush1.msra.mxu0 0.0
    %593 = vmatprep.subr.mxu0 0.0
    %594 = vmatpush1.msra.mxu0 0.0
    %595 = vmatprep.subr.mxu0 0.0
    %596 = vmatpush1.msra.mxu0 0.0
    %597 = vmatprep.subr.mxu0 0.0
    %598 = vmatpush1.msra.mxu0 0.0
    %599 = vmatprep.subr.mxu0 0.0
    %600 = vmatpush1.msra.mxu0 0.0
    %601 = vmatprep.subr.mxu0 0.0
    %602 = vmatpush1.msra.mxu0 0.0
    %603 = vmatprep.subr.mxu0 0.0
    %604 = vmatpush1.msra.mxu0 0.0
    %605 = vmatprep.subr.mxu0 0.0
    %606 = vmatpush1.msra.mxu0 0.0
    %607 = vmatprep.subr.mxu0 0.0
    %608 = vmatpush1.msra.mxu0 0.0
    %609 = vmatprep.subr.mxu0 0.0
    %610 = vmatpush1.msra.mxu0 0.0
    %611 = vmatprep.subr.mxu0 0.0
    %612 = vmatpush1.msra.mxu0 0.0
    %613 = vmatprep.subr.mxu0 0.0
    %614 = vmatpush1.msra.mxu0 0.0
    %615 = vmatprep.subr.mxu0 0.0
    %616 = vmatpush1.msra.mxu0 0.0
    %617 = vmatprep.subr.mxu0 0.0
    %618 = vmatpush1.msra.mxu0 0.0
    %619 = vmatprep.subr.mxu0 0.0
    %620 = vmatpush1.msra.mxu0 0.0
    %621 = vmatprep.subr.mxu0 0.0
    %622 = vmatpush1.msra.mxu0 0.0
    %623 = vmatprep.subr.mxu0 0.0
    %624 = vmatpush1.msra.mxu0 0.0
    %625 = vmatprep.subr.mxu0 0.0
    %626 = vmatpush1.msra.mxu0 0.0
    %627 = vmatprep.subr.mxu0 0.0
    %628 = vmatpush1.msra.mxu0 0.0
    %629 = vmatprep.subr.mxu0 0.0
    %630 = vmatpush1.msra.mxu0 0.0
    %631 = vmatprep.subr.mxu0 0.0
    %632 = vmatpush1.msra.mxu0 0.0
    %633 = vmatprep.subr.mxu0 0.0
    %634 = vmatpush1.msra.mxu0 0.0
    %635 = vmatprep.subr.mxu0 0.0
    %636 = vmatpush1.msra.mxu0 0.0
    %637 = vmatprep.subr.mxu0 0.0
    %638 = vmatpush1.msra.mxu0 0.0
    %639 = vmatprep.subr.mxu0 0.0
    %640 = vmatpush1.msra.mxu0 0.0
    %641 = vmatprep.subr.mxu0 0.0
    %642 = vmatpush1.msra.mxu0 0.0
    %643 = vmatprep.subr.mxu0 0.0
    %644 = vmatpush1.msra.mxu0 0.0
    %645 = vmatprep.subr.mxu0 0.0
    %646 = vmatpush1.msra.mxu0 0.0
    %647 = vmatprep.mubr.f32.mxu0 0.0
    %v648 = vand.u32 %v574, 4294901760
    %v649 = vsub.f32 %v574, %v648
    %v650 = vand.u32 %v649, 4294901760
    %v651 = vsub.f32 %v649, %v650
    %v652 = vand.u32 %v651, 4294901760
    %653 = vmatmul.mubr.f32.gmra.mrb[0].mxu0 %v652
    %v654 = vpop.f32.mrb[0].mxu0
    %v655 = vadd.f32 0.0, %v654
    %v656 = vpop.f32.mrb[0].mxu0
    %657 = vmatprep.mubr.f32.mxu0 0.0
    %v658 = vand.u32 %v577, 4294901760
    %v659 = vsub.f32 %v577, %v658
    %v660 = vand.u32 %v659, 4294901760
    %v661 = vsub.f32 %v659, %v660
    %v662 = vand.u32 %v661, 4294901760
    %663 = vmatmul.mubr.f32.gmra.mrb[0].mxu0 %v662
    %v664 = vpop.f32.mrb[0].mxu0
    %v665 = vadd.f32 0.0, %v664
    %v666 = vpop.f32.mrb[0].mxu0
    %667 = vdwg.mxu0
    %668 = vmatprep.subr.mxu0 0.0
    %v669 = vand.u32 %v31, 4294901760
    %v670 = vsub.f32 %v31, %v669
    %v671 = vand.u32 %v670, 4294901760
    %v672 = vsub.f32 %v670, %v671
    %v673 = vand.u32 %v672, 4294901760
    %674 = vmatpush1.msra.mxu0 %v673
    %675 = vmatprep.subr.mxu0 0.0
    %v676 = vand.u32 %v32, 4294901760
    %v677 = vsub.f32 %v32, %v676
    %v678 = vand.u32 %v677, 4294901760
    %v679 = vsub.f32 %v677, %v678
    %v680 = vand.u32 %v679, 4294901760
    %681 = vmatpush1.msra.mxu0 %v680
    %682 = vmatprep.subr.mxu0 0.0
    %v683 = vand.u32 %v33, 4294901760
    %v684 = vsub.f32 %v33, %v683
    %v685 = vand.u32 %v684, 4294901760
    %v686 = vsub.f32 %v684, %v685
    %v687 = vand.u32 %v686, 4294901760
    %688 = vmatpush1.msra.mxu0 %v687
    %689 = vmatprep.subr.mxu0 0.0
    %v690 = vand.u32 %v34, 4294901760
    %v691 = vsub.f32 %v34, %v690
    %v692 = vand.u32 %v691, 4294901760
    %v693 = vsub.f32 %v691, %v692
    %v694 = vand.u32 %v693, 4294901760
    %695 = vmatpush1.msra.mxu0 %v694
    %696 = vmatprep.subr.mxu0 0.0
    %697 = vmatpush1.msra.mxu0 0.0
    %698 = vmatprep.subr.mxu0 0.0
    %699 = vmatpush1.msra.mxu0 0.0
    %700 = vmatprep.subr.mxu0 0.0
    %701 = vmatpush1.msra.mxu0 0.0
    %702 = vmatprep.subr.mxu0 0.0
    %703 = vmatpush1.msra.mxu0 0.0
    %704 = vmatprep.subr.mxu0 0.0
    %705 = vmatpush1.msra.mxu0 0.0
    %706 = vmatprep.subr.mxu0 0.0
    %707 = vmatpush1.msra.mxu0 0.0
    %708 = vmatprep.subr.mxu0 0.0
    %709 = vmatpush1.msra.mxu0 0.0
    %710 = vmatprep.subr.mxu0 0.0
    %711 = vmatpush1.msra.mxu0 0.0
    %712 = vmatprep.subr.mxu0 0.0
    %713 = vmatpush1.msra.mxu0 0.0
    %714 = vmatprep.subr.mxu0 0.0
    %715 = vmatpush1.msra.mxu0 0.0
    %716 = vmatprep.subr.mxu0 0.0
    %717 = vmatpush1.msra.mxu0 0.0
    %718 = vmatprep.subr.mxu0 0.0
    %719 = vmatpush1.msra.mxu0 0.0
    %720 = vmatprep.subr.mxu0 0.0
    %721 = vmatpush1.msra.mxu0 0.0
    %722 = vmatprep.subr.mxu0 0.0
    %723 = vmatpush1.msra.mxu0 0.0
    %724 = vmatprep.subr.mxu0 0.0
    %725 = vmatpush1.msra.mxu0 0.0
    %726 = vmatprep.subr.mxu0 0.0
    %727 = vmatpush1.msra.mxu0 0.0
    %728 = vmatprep.subr.mxu0 0.0
    %729 = vmatpush1.msra.mxu0 0.0
    %730 = vmatprep.subr.mxu0 0.0
    %731 = vmatpush1.msra.mxu0 0.0
    %732 = vmatprep.subr.mxu0 0.0
    %733 = vmatpush1.msra.mxu0 0.0
    %734 = vmatprep.subr.mxu0 0.0
    %735 = vmatpush1.msra.mxu0 0.0
    %736 = vmatprep.subr.mxu0 0.0
    %737 = vmatpush1.msra.mxu0 0.0
    %738 = vmatprep.subr.mxu0 0.0
    %739 = vmatpush1.msra.mxu0 0.0
    %740 = vmatprep.subr.mxu0 0.0
    %741 = vmatpush1.msra.mxu0 0.0
    %742 = vmatprep.subr.mxu0 0.0
    %743 = vmatpush1.msra.mxu0 0.0
    %744 = vmatprep.subr.mxu0 0.0
    %745 = vmatpush1.msra.mxu0 0.0
    %746 = vmatprep.subr.mxu0 0.0
    %747 = vmatpush1.msra.mxu0 0.0
    %748 = vmatprep.subr.mxu0 0.0
    %749 = vmatpush1.msra.mxu0 0.0
    %750 = vmatprep.subr.mxu0 0.0
    %751 = vmatpush1.msra.mxu0 0.0
    %752 = vmatprep.mubr.f32.mxu0 0.0
    %v753 = vand.u32 %v574, 4294901760
    %754 = vmatmul.mubr.f32.gmra.mrb[0].mxu0 %v753
    %v755 = vpop.f32.mrb[0].mxu0
    %v756 = vadd.f32 %v655, %v755
    %v757 = vpop.f32.mrb[0].mxu0
    %758 = vmatprep.mubr.f32.mxu0 0.0
    %v759 = vand.u32 %v577, 4294901760
    %760 = vmatmul.mubr.f32.gmra.mrb[0].mxu0 %v759
    %v761 = vpop.f32.mrb[0].mxu0
    %v762 = vadd.f32 %v665, %v761
    %v763 = vpop.f32.mrb[0].mxu0
    %764 = vdwg.mxu0
    %765 = vmatprep.subr.mxu0 0.0
    %v766 = vand.u32 %v31, 4294901760
    %v767 = vsub.f32 %v31, %v766
    %768 = vmatpush1.msra.mxu0 %v767
    %769 = vmatprep.subr.mxu0 0.0
    %v770 = vand.u32 %v32, 4294901760
    %v771 = vsub.f32 %v32, %v770
    %772 = vmatpush1.msra.mxu0 %v771
    %773 = vmatprep.subr.mxu0 0.0
    %v774 = vand.u32 %v33, 4294901760
    %v775 = vsub.f32 %v33, %v774
    %776 = vmatpush1.msra.mxu0 %v775
    %777 = vmatprep.subr.mxu0 0.0
    %v778 = vand.u32 %v34, 4294901760
    %v779 = vsub.f32 %v34, %v778
    %780 = vmatpush1.msra.mxu0 %v779
    %781 = vmatprep.subr.mxu0 0.0
    %782 = vmatpush1.msra.mxu0 0.0
    %783 = vmatprep.subr.mxu0 0.0
    %784 = vmatpush1.msra.mxu0 0.0
    %785 = vmatprep.subr.mxu0 0.0
    %786 = vmatpush1.msra.mxu0 0.0
    %787 = vmatprep.subr.mxu0 0.0
    %788 = vmatpush1.msra.mxu0 0.0
    %789 = vmatprep.subr.mxu0 0.0
    %790 = vmatpush1.msra.mxu0 0.0
    %791 = vmatprep.subr.mxu0 0.0
    %792 = vmatpush1.msra.mxu0 0.0
    %793 = vmatprep.subr.mxu0 0.0
    %794 = vmatpush1.msra.mxu0 0.0
    %795 = vmatprep.subr.mxu0 0.0
    %796 = vmatpush1.msra.mxu0 0.0
    %797 = vmatprep.subr.mxu0 0.0
    %798 = vmatpush1.msra.mxu0 0.0
    %799 = vmatprep.subr.mxu0 0.0
    %800 = vmatpush1.msra.mxu0 0.0
    %801 = vmatprep.subr.mxu0 0.0
    %802 = vmatpush1.msra.mxu0 0.0
    %803 = vmatprep.subr.mxu0 0.0
    %804 = vmatpush1.msra.mxu0 0.0
    %805 = vmatprep.subr.mxu0 0.0
    %806 = vmatpush1.msra.mxu0 0.0
    %807 = vmatprep.subr.mxu0 0.0
    %808 = vmatpush1.msra.mxu0 0.0
    %809 = vmatprep.subr.mxu0 0.0
    %810 = vmatpush1.msra.mxu0 0.0
    %811 = vmatprep.subr.mxu0 0.0
    %812 = vmatpush1.msra.mxu0 0.0
    %813 = vmatprep.subr.mxu0 0.0
    %814 = vmatpush1.msra.mxu0 0.0
    %815 = vmatprep.subr.mxu0 0.0
    %816 = vmatpush1.msra.mxu0 0.0
    %817 = vmatprep.subr.mxu0 0.0
    %818 = vmatpush1.msra.mxu0 0.0
    %819 = vmatprep.subr.mxu0 0.0
    %820 = vmatpush1.msra.mxu0 0.0
    %821 = vmatprep.subr.mxu0 0.0
    %822 = vmatpush1.msra.mxu0 0.0
    %823 = vmatprep.subr.mxu0 0.0
    %824 = vmatpush1.msra.mxu0 0.0
    %825 = vmatprep.subr.mxu0 0.0
    %826 = vmatpush1.msra.mxu0 0.0
    %827 = vmatprep.subr.mxu0 0.0
    %828 = vmatpush1.msra.mxu0 0.0
    %829 = vmatprep.subr.mxu0 0.0
    %830 = vmatpush1.msra.mxu0 0.0
    %831 = vmatprep.subr.mxu0 0.0
    %832 = vmatpush1.msra.mxu0 0.0
    %833 = vmatprep.subr.mxu0 0.0
    %834 = vmatpush1.msra.mxu0 0.0
    %835 = vmatprep.subr.mxu0 0.0
    %836 = vmatpush1.msra.mxu0 0.0
    %837 = vmatprep.mubr.f32.mxu0 0.0
    %v838 = vand.u32 %v574, 4294901760
    %v839 = vsub.f32 %v574, %v838
    %840 = vmatmul.mubr.f32.gmra.mrb[0].mxu0 %v839
    %v841 = vpop.f32.mrb[0].mxu0
    %v842 = vadd.f32 %v756, %v841
    %v843 = vpop.f32.mrb[0].mxu0
    %844 = vmatprep.mubr.f32.mxu0 0.0
    %v845 = vand.u32 %v577, 4294901760
    %v846 = vsub.f32 %v577, %v845
    %847 = vmatmul.mubr.f32.gmra.mrb[0].mxu0 %v846
    %v848 = vpop.f32.mrb[0].mxu0
    %v849 = vadd.f32 %v762, %v848
    %v850 = vpop.f32.mrb[0].mxu0
    %851 = vdwg.mxu0
    %852 = vmatprep.subr.mxu0 0.0
    %v853 = vand.u32 %v31, 4294901760
    %854 = vmatpush1.msra.mxu0 %v853
    %855 = vmatprep.subr.mxu0 0.0
    %v856 = vand.u32 %v32, 4294901760
    %857 = vmatpush1.msra.mxu0 %v856
    %858 = vmatprep.subr.mxu0 0.0
    %v859 = vand.u32 %v33, 4294901760
    %860 = vmatpush1.msra.mxu0 %v859
    %861 = vmatprep.subr.mxu0 0.0
    %v862 = vand.u32 %v34, 4294901760
    %863 = vmatpush1.msra.mxu0 %v862
    %864 = vmatprep.subr.mxu0 0.0
    %865 = vmatpush1.msra.mxu0 0.0
    %866 = vmatprep.subr.mxu0 0.0
    %867 = vmatpush1.msra.mxu0 0.0
    %868 = vmatprep.subr.mxu0 0.0
    %869 = vmatpush1.msra.mxu0 0.0
    %870 = vmatprep.subr.mxu0 0.0
    %871 = vmatpush1.msra.mxu0 0.0
    %872 = vmatprep.subr.mxu0 0.0
    %873 = vmatpush1.msra.mxu0 0.0
    %874 = vmatprep.subr.mxu0 0.0
    %875 = vmatpush1.msra.mxu0 0.0
    %876 = vmatprep.subr.mxu0 0.0
    %877 = vmatpush1.msra.mxu0 0.0
    %878 = vmatprep.subr.mxu0 0.0
    %879 = vmatpush1.msra.mxu0 0.0
    %880 = vmatprep.subr.mxu0 0.0
    %881 = vmatpush1.msra.mxu0 0.0
    %882 = vmatprep.subr.mxu0 0.0
    %883 = vmatpush1.msra.mxu0 0.0
    %884 = vmatprep.subr.mxu0 0.0
    %885 = vmatpush1.msra.mxu0 0.0
    %886 = vmatprep.subr.mxu0 0.0
    %887 = vmatpush1.msra.mxu0 0.0
    %888 = vmatprep.subr.mxu0 0.0
    %889 = vmatpush1.msra.mxu0 0.0
    %890 = vmatprep.subr.mxu0 0.0
    %891 = vmatpush1.msra.mxu0 0.0
    %892 = vmatprep.subr.mxu0 0.0
    %893 = vmatpush1.msra.mxu0 0.0
    %894 = vmatprep.subr.mxu0 0.0
    %895 = vmatpush1.msra.mxu0 0.0
    %896 = vmatprep.subr.mxu0 0.0
    %897 = vmatpush1.msra.mxu0 0.0
    %898 = vmatprep.subr.mxu0 0.0
    %899 = vmatpush1.msra.mxu0 0.0
    %900 = vmatprep.subr.mxu0 0.0
    %901 = vmatpush1.msra.mxu0 0.0
    %902 = vmatprep.subr.mxu0 0.0
    %903 = vmatpush1.msra.mxu0 0.0
    %904 = vmatprep.subr.mxu0 0.0
    %905 = vmatpush1.msra.mxu0 0.0
    %906 = vmatprep.subr.mxu0 0.0
    %907 = vmatpush1.msra.mxu0 0.0
    %908 = vmatprep.subr.mxu0 0.0
    %909 = vmatpush1.msra.mxu0 0.0
    %910 = vmatprep.subr.mxu0 0.0
    %911 = vmatpush1.msra.mxu0 0.0
    %912 = vmatprep.subr.mxu0 0.0
    %913 = vmatpush1.msra.mxu0 0.0
    %914 = vmatprep.subr.mxu0 0.0
    %915 = vmatpush1.msra.mxu0 0.0
    %916 = vmatprep.subr.mxu0 0.0
    %917 = vmatpush1.msra.mxu0 0.0
    %918 = vmatprep.subr.mxu0 0.0
    %919 = vmatpush1.msra.mxu0 0.0
    %920 = vmatprep.mubr.f32.mxu0 0.0
    %v921 = vand.u32 %v574, 4294901760
    %v922 = vsub.f32 %v574, %v921
    %v923 = vand.u32 %v922, 4294901760
    %924 = vmatmul.mubr.f32.gmra.mrb[0].mxu0 %v923
    %v925 = vpop.f32.mrb[0].mxu0
    %v926 = vadd.f32 %v842, %v925
    %v927 = vpop.f32.mrb[0].mxu0
    %928 = vmatprep.mubr.f32.mxu0 0.0
    %v929 = vand.u32 %v577, 4294901760
    %v930 = vsub.f32 %v577, %v929
    %v931 = vand.u32 %v930, 4294901760
    %932 = vmatmul.mubr.f32.gmra.mrb[0].mxu0 %v931
    %v933 = vpop.f32.mrb[0].mxu0
    %v934 = vadd.f32 %v849, %v933
    %v935 = vpop.f32.mrb[0].mxu0
    %936 = vdwg.mxu0
    %937 = vmatprep.subr.mxu0 0.0
    %v938 = vand.u32 %v31, 4294901760
    %v939 = vsub.f32 %v31, %v938
    %v940 = vand.u32 %v939, 4294901760
    %941 = vmatpush1.msra.mxu0 %v940
    %942 = vmatprep.subr.mxu0 0.0
    %v943 = vand.u32 %v32, 4294901760
    %v944 = vsub.f32 %v32, %v943
    %v945 = vand.u32 %v944, 4294901760
    %946 = vmatpush1.msra.mxu0 %v945
    %947 = vmatprep.subr.mxu0 0.0
    %v948 = vand.u32 %v33, 4294901760
    %v949 = vsub.f32 %v33, %v948
    %v950 = vand.u32 %v949, 4294901760
    %951 = vmatpush1.msra.mxu0 %v950
    %952 = vmatprep.subr.mxu0 0.0
    %v953 = vand.u32 %v34, 4294901760
    %v954 = vsub.f32 %v34, %v953
    %v955 = vand.u32 %v954, 4294901760
    %956 = vmatpush1.msra.mxu0 %v955
    %957 = vmatprep.subr.mxu0 0.0
    %958 = vmatpush1.msra.mxu0 0.0
    %959 = vmatprep.subr.mxu0 0.0
    %960 = vmatpush1.msra.mxu0 0.0
    %961 = vmatprep.subr.mxu0 0.0
    %962 = vmatpush1.msra.mxu0 0.0
    %963 = vmatprep.subr.mxu0 0.0
    %964 = vmatpush1.msra.mxu0 0.0
    %965 = vmatprep.subr.mxu0 0.0
    %966 = vmatpush1.msra.mxu0 0.0
    %967 = vmatprep.subr.mxu0 0.0
    %968 = vmatpush1.msra.mxu0 0.0
    %969 = vmatprep.subr.mxu0 0.0
    %970 = vmatpush1.msra.mxu0 0.0
    %971 = vmatprep.subr.mxu0 0.0
    %972 = vmatpush1.msra.mxu0 0.0
    %973 = vmatprep.subr.mxu0 0.0
    %974 = vmatpush1.msra.mxu0 0.0
    %975 = vmatprep.subr.mxu0 0.0
    %976 = vmatpush1.msra.mxu0 0.0
    %977 = vmatprep.subr.mxu0 0.0
    %978 = vmatpush1.msra.mxu0 0.0
    %979 = vmatprep.subr.mxu0 0.0
    %980 = vmatpush1.msra.mxu0 0.0
    %981 = vmatprep.subr.mxu0 0.0
    %982 = vmatpush1.msra.mxu0 0.0
    %983 = vmatprep.subr.mxu0 0.0
    %984 = vmatpush1.msra.mxu0 0.0
    %985 = vmatprep.subr.mxu0 0.0
    %986 = vmatpush1.msra.mxu0 0.0
    %987 = vmatprep.subr.mxu0 0.0
    %988 = vmatpush1.msra.mxu0 0.0
    %989 = vmatprep.subr.mxu0 0.0
    %990 = vmatpush1.msra.mxu0 0.0
    %991 = vmatprep.subr.mxu0 0.0
    %992 = vmatpush1.msra.mxu0 0.0
    %993 = vmatprep.subr.mxu0 0.0
    %994 = vmatpush1.msra.mxu0 0.0
    %995 = vmatprep.subr.mxu0 0.0
    %996 = vmatpush1.msra.mxu0 0.0
    %997 = vmatprep.subr.mxu0 0.0
    %998 = vmatpush1.msra.mxu0 0.0
    %999 = vmatprep.subr.mxu0 0.0
    %1000 = vmatpush1.msra.mxu0 0.0
    %1001 = vmatprep.subr.mxu0 0.0
    %1002 = vmatpush1.msra.mxu0 0.0
    %1003 = vmatprep.subr.mxu0 0.0
    %1004 = vmatpush1.msra.mxu0 0.0
    %1005 = vmatprep.subr.mxu0 0.0
    %1006 = vmatpush1.msra.mxu0 0.0
    %1007 = vmatprep.subr.mxu0 0.0
    %1008 = vmatpush1.msra.mxu0 0.0
    %1009 = vmatprep.subr.mxu0 0.0
    %1010 = vmatpush1.msra.mxu0 0.0
    %1011 = vmatprep.subr.mxu0 0.0
    %1012 = vmatpush1.msra.mxu0 0.0
    %1013 = vmatprep.mubr.f32.mxu0 0.0
    %v1014 = vand.u32 %v574, 4294901760
    %1015 = vmatmul.mubr.f32.gmra.mrb[0].mxu0 %v1014
    %v1016 = vpop.f32.mrb[0].mxu0
    %v1017 = vadd.f32 %v926, %v1016
    %v1018 = vpop.f32.mrb[0].mxu0
    %1019 = vmatprep.mubr.f32.mxu0 0.0
    %v1020 = vand.u32 %v577, 4294901760
    %1021 = vmatmul.mubr.f32.gmra.mrb[0].mxu0 %v1020
    %v1022 = vpop.f32.mrb[0].mxu0
    %v1023 = vadd.f32 %v934, %v1022
    %v1024 = vpop.f32.mrb[0].mxu0
    %1025 = vdwg.mxu0
    %1026 = vmatprep.subr.mxu0 0.0
    %v1027 = vand.u32 %v31, 4294901760
    %1028 = vmatpush1.msra.mxu0 %v1027
    %1029 = vmatprep.subr.mxu0 0.0
    %v1030 = vand.u32 %v32, 4294901760
    %1031 = vmatpush1.msra.mxu0 %v1030
    %1032 = vmatprep.subr.mxu0 0.0
    %v1033 = vand.u32 %v33, 4294901760
    %1034 = vmatpush1.msra.mxu0 %v1033
    %1035 = vmatprep.subr.mxu0 0.0
    %v1036 = vand.u32 %v34, 4294901760
    %1037 = vmatpush1.msra.mxu0 %v1036
    %1038 = vmatprep.subr.mxu0 0.0
    %1039 = vmatpush1.msra.mxu0 0.0
    %1040 = vmatprep.subr.mxu0 0.0
    %1041 = vmatpush1.msra.mxu0 0.0
    %1042 = vmatprep.subr.mxu0 0.0
    %1043 = vmatpush1.msra.mxu0 0.0
    %1044 = vmatprep.subr.mxu0 0.0
    %1045 = vmatpush1.msra.mxu0 0.0
    %1046 = vmatprep.subr.mxu0 0.0
    %1047 = vmatpush1.msra.mxu0 0.0
    %1048 = vmatprep.subr.mxu0 0.0
    %1049 = vmatpush1.msra.mxu0 0.0
    %1050 = vmatprep.subr.mxu0 0.0
    %1051 = vmatpush1.msra.mxu0 0.0
    %1052 = vmatprep.subr.mxu0 0.0
    %1053 = vmatpush1.msra.mxu0 0.0
    %1054 = vmatprep.subr.mxu0 0.0
    %1055 = vmatpush1.msra.mxu0 0.0
    %1056 = vmatprep.subr.mxu0 0.0
    %1057 = vmatpush1.msra.mxu0 0.0
    %1058 = vmatprep.subr.mxu0 0.0
    %1059 = vmatpush1.msra.mxu0 0.0
    %1060 = vmatprep.subr.mxu0 0.0
    %1061 = vmatpush1.msra.mxu0 0.0
    %1062 = vmatprep.subr.mxu0 0.0
    %1063 = vmatpush1.msra.mxu0 0.0
    %1064 = vmatprep.subr.mxu0 0.0
    %1065 = vmatpush1.msra.mxu0 0.0
    %1066 = vmatprep.subr.mxu0 0.0
    %1067 = vmatpush1.msra.mxu0 0.0
    %1068 = vmatprep.subr.mxu0 0.0
    %1069 = vmatpush1.msra.mxu0 0.0
    %1070 = vmatprep.subr.mxu0 0.0
    %1071 = vmatpush1.msra.mxu0 0.0
    %1072 = vmatprep.subr.mxu0 0.0
    %1073 = vmatpush1.msra.mxu0 0.0
    %1074 = vmatprep.subr.mxu0 0.0
    %1075 = vmatpush1.msra.mxu0 0.0
    %1076 = vmatprep.subr.mxu0 0.0
    %1077 = vmatpush1.msra.mxu0 0.0
    %1078 = vmatprep.subr.mxu0 0.0
    %1079 = vmatpush1.msra.mxu0 0.0
    %1080 = vmatprep.subr.mxu0 0.0
    %1081 = vmatpush1.msra.mxu0 0.0
    %1082 = vmatprep.subr.mxu0 0.0
    %1083 = vmatpush1.msra.mxu0 0.0
    %1084 = vmatprep.subr.mxu0 0.0
    %1085 = vmatpush1.msra.mxu0 0.0
    %1086 = vmatprep.subr.mxu0 0.0
    %1087 = vmatpush1.msra.mxu0 0.0
    %1088 = vmatprep.subr.mxu0 0.0
    %1089 = vmatpush1.msra.mxu0 0.0
    %1090 = vmatprep.subr.mxu0 0.0
    %1091 = vmatpush1.msra.mxu0 0.0
    %1092 = vmatprep.subr.mxu0 0.0
    %1093 = vmatpush1.msra.mxu0 0.0
    %1094 = vmatprep.mubr.f32.mxu0 0.0
    %v1095 = vand.u32 %v574, 4294901760
    %1096 = vmatmul.mubr.f32.gmra.mrb[0].mxu0 %v1095
    %v1097 = vpop.f32.mrb[0].mxu0
    %v1098 = vadd.f32 %v1017, %v1097
    %v1099 = vpop.f32.mrb[0].mxu0
    %1100 = vmatprep.mubr.f32.mxu0 0.0
    %v1101 = vand.u32 %v577, 4294901760
    %1102 = vmatmul.mubr.f32.gmra.mrb[0].mxu0 %v1101
    %v1103 = vpop.f32.mrb[0].mxu0
    %v1104 = vadd.f32 %v1023, %v1103
    %v1105 = vpop.f32.mrb[0].mxu0
    %1106 = vdwg.mxu0
    %v1107 = vmul.f32 %v1098, 0.125
    %v1108 = vmul.f32 %v1104, 0.125
    %vm1109 = vcmask 31744
    %v1111 = vsel %vm1109, %v571, 0
    %v1114 = vsel %vm1109, %v572, 0
    %vm1116 = vcmask 1043456
    %v1118 = vsel %vm1116, %v35, 0
    %1120 = vmatprep.subr.mxu0 0.0
    %v1121 = vand.u32 %v1118, 4294901760
    %1122 = vmatpush1.msra.mxu0 %v1121
    %1123 = vmatprep.subr.mxu0 0.0
    %1124 = vmatpush1.msra.mxu0 0.0
    %1125 = vmatprep.subr.mxu0 0.0
    %1126 = vmatpush1.msra.mxu0 0.0
    %1127 = vmatprep.subr.mxu0 0.0
    %1128 = vmatpush1.msra.mxu0 0.0
    %1129 = vmatprep.subr.mxu0 0.0
    %1130 = vmatpush1.msra.mxu0 0.0
    %1131 = vmatprep.subr.mxu0 0.0
    %1132 = vmatpush1.msra.mxu0 0.0
    %1133 = vmatprep.subr.mxu0 0.0
    %1134 = vmatpush1.msra.mxu0 0.0
    %1135 = vmatprep.subr.mxu0 0.0
    %1136 = vmatpush1.msra.mxu0 0.0
    %1137 = vmatprep.subr.mxu0 0.0
    %1138 = vmatpush1.msra.mxu0 0.0
    %1139 = vmatprep.subr.mxu0 0.0
    %1140 = vmatpush1.msra.mxu0 0.0
    %1141 = vmatprep.subr.mxu0 0.0
    %1142 = vmatpush1.msra.mxu0 0.0
    %1143 = vmatprep.subr.mxu0 0.0
    %1144 = vmatpush1.msra.mxu0 0.0
    %1145 = vmatprep.subr.mxu0 0.0
    %1146 = vmatpush1.msra.mxu0 0.0
    %1147 = vmatprep.subr.mxu0 0.0
    %1148 = vmatpush1.msra.mxu0 0.0
    %1149 = vmatprep.subr.mxu0 0.0
    %1150 = vmatpush1.msra.mxu0 0.0
    %1151 = vmatprep.subr.mxu0 0.0
    %1152 = vmatpush1.msra.mxu0 0.0
    %1153 = vmatprep.subr.mxu0 0.0
    %1154 = vmatpush1.msra.mxu0 0.0
    %1155 = vmatprep.subr.mxu0 0.0
    %1156 = vmatpush1.msra.mxu0 0.0
    %1157 = vmatprep.subr.mxu0 0.0
    %1158 = vmatpush1.msra.mxu0 0.0
    %1159 = vmatprep.subr.mxu0 0.0
    %1160 = vmatpush1.msra.mxu0 0.0
    %1161 = vmatprep.subr.mxu0 0.0
    %1162 = vmatpush1.msra.mxu0 0.0
    %1163 = vmatprep.subr.mxu0 0.0
    %1164 = vmatpush1.msra.mxu0 0.0
    %1165 = vmatprep.subr.mxu0 0.0
    %1166 = vmatpush1.msra.mxu0 0.0
    %1167 = vmatprep.subr.mxu0 0.0
    %1168 = vmatpush1.msra.mxu0 0.0
    %1169 = vmatprep.subr.mxu0 0.0
    %1170 = vmatpush1.msra.mxu0 0.0
    %1171 = vmatprep.subr.mxu0 0.0
    %1172 = vmatpush1.msra.mxu0 0.0
    %1173 = vmatprep.subr.mxu0 0.0
    %1174 = vmatpush1.msra.mxu0 0.0
    %1175 = vmatprep.subr.mxu0 0.0
    %1176 = vmatpush1.msra.mxu0 0.0
    %1177 = vmatprep.subr.mxu0 0.0
    %1178 = vmatpush1.msra.mxu0 0.0
    %1179 = vmatprep.subr.mxu0 0.0
    %1180 = vmatpush1.msra.mxu0 0.0
    %1181 = vmatprep.subr.mxu0 0.0
    %1182 = vmatpush1.msra.mxu0 0.0
    %1183 = vmatprep.subr.mxu0 0.0
    %1184 = vmatpush1.msra.mxu0 0.0
    %1185 = vmatprep.mubr.f32.mxu0 0.0
    %v1186 = vand.u32 %v1111, 4294901760
    %v1187 = vsub.f32 %v1111, %v1186
    %v1188 = vand.u32 %v1187, 4294901760
    %v1189 = vsub.f32 %v1187, %v1188
    %v1190 = vand.u32 %v1189, 4294901760
    %1191 = vmatmul.mubr.f32.gmra.mrb[0].mxu0 %v1190
    %v1192 = vpop.f32.mrb[0].mxu0
    %v1193 = vadd.f32 0.0, %v1192
    %v1194 = vpop.f32.mrb[0].mxu0
    %1195 = vmatprep.mubr.f32.mxu0 0.0
    %v1196 = vand.u32 %v1114, 4294901760
    %v1197 = vsub.f32 %v1114, %v1196
    %v1198 = vand.u32 %v1197, 4294901760
    %v1199 = vsub.f32 %v1197, %v1198
    %v1200 = vand.u32 %v1199, 4294901760
    %1201 = vmatmul.mubr.f32.gmra.mrb[0].mxu0 %v1200
    %v1202 = vpop.f32.mrb[0].mxu0
    %v1203 = vadd.f32 0.0, %v1202
    %v1204 = vpop.f32.mrb[0].mxu0
    %1205 = vdwg.mxu0
    %1206 = vmatprep.subr.mxu0 0.0
    %v1207 = vand.u32 %v1118, 4294901760
    %v1208 = vsub.f32 %v1118, %v1207
    %v1209 = vand.u32 %v1208, 4294901760
    %v1210 = vsub.f32 %v1208, %v1209
    %v1211 = vand.u32 %v1210, 4294901760
    %1212 = vmatpush1.msra.mxu0 %v1211
    %1213 = vmatprep.subr.mxu0 0.0
    %1214 = vmatpush1.msra.mxu0 0.0
    %1215 = vmatprep.subr.mxu0 0.0
    %1216 = vmatpush1.msra.mxu0 0.0
    %1217 = vmatprep.subr.mxu0 0.0
    %1218 = vmatpush1.msra.mxu0 0.0
    %1219 = vmatprep.subr.mxu0 0.0
    %1220 = vmatpush1.msra.mxu0 0.0
    %1221 = vmatprep.subr.mxu0 0.0
    %1222 = vmatpush1.msra.mxu0 0.0
    %1223 = vmatprep.subr.mxu0 0.0
    %1224 = vmatpush1.msra.mxu0 0.0
    %1225 = vmatprep.subr.mxu0 0.0
    %1226 = vmatpush1.msra.mxu0 0.0
    %1227 = vmatprep.subr.mxu0 0.0
    %1228 = vmatpush1.msra.mxu0 0.0
    %1229 = vmatprep.subr.mxu0 0.0
    %1230 = vmatpush1.msra.mxu0 0.0
    %1231 = vmatprep.subr.mxu0 0.0
    %1232 = vmatpush1.msra.mxu0 0.0
    %1233 = vmatprep.subr.mxu0 0.0
    %1234 = vmatpush1.msra.mxu0 0.0
    %1235 = vmatprep.subr.mxu0 0.0
    %1236 = vmatpush1.msra.mxu0 0.0
    %1237 = vmatprep.subr.mxu0 0.0
    %1238 = vmatpush1.msra.mxu0 0.0
    %1239 = vmatprep.subr.mxu0 0.0
    %1240 = vmatpush1.msra.mxu0 0.0
    %1241 = vmatprep.subr.mxu0 0.0
    %1242 = vmatpush1.msra.mxu0 0.0
    %1243 = vmatprep.subr.mxu0 0.0
    %1244 = vmatpush1.msra.mxu0 0.0
    %1245 = vmatprep.subr.mxu0 0.0
    %1246 = vmatpush1.msra.mxu0 0.0
    %1247 = vmatprep.subr.mxu0 0.0
    %1248 = vmatpush1.msra.mxu0 0.0
    %1249 = vmatprep.subr.mxu0 0.0
    %1250 = vmatpush1.msra.mxu0 0.0
    %1251 = vmatprep.subr.mxu0 0.0
    %1252 = vmatpush1.msra.mxu0 0.0
    %1253 = vmatprep.subr.mxu0 0.0
    %1254 = vmatpush1.msra.mxu0 0.0
    %1255 = vmatprep.subr.mxu0 0.0
    %1256 = vmatpush1.msra.mxu0 0.0
    %1257 = vmatprep.subr.mxu0 0.0
    %1258 = vmatpush1.msra.mxu0 0.0
    %1259 = vmatprep.subr.mxu0 0.0
    %1260 = vmatpush1.msra.mxu0 0.0
    %1261 = vmatprep.subr.mxu0 0.0
    %1262 = vmatpush1.msra.mxu0 0.0
    %1263 = vmatprep.subr.mxu0 0.0
    %1264 = vmatpush1.msra.mxu0 0.0
    %1265 = vmatprep.subr.mxu0 0.0
    %1266 = vmatpush1.msra.mxu0 0.0
    %1267 = vmatprep.subr.mxu0 0.0
    %1268 = vmatpush1.msra.mxu0 0.0
    %1269 = vmatprep.subr.mxu0 0.0
    %1270 = vmatpush1.msra.mxu0 0.0
    %1271 = vmatprep.subr.mxu0 0.0
    %1272 = vmatpush1.msra.mxu0 0.0
    %1273 = vmatprep.subr.mxu0 0.0
    %1274 = vmatpush1.msra.mxu0 0.0
    %1275 = vmatprep.mubr.f32.mxu0 0.0
    %v1276 = vand.u32 %v1111, 4294901760
    %1277 = vmatmul.mubr.f32.gmra.mrb[0].mxu0 %v1276
    %v1278 = vpop.f32.mrb[0].mxu0
    %v1279 = vadd.f32 %v1193, %v1278
    %v1280 = vpop.f32.mrb[0].mxu0
    %1281 = vmatprep.mubr.f32.mxu0 0.0
    %v1282 = vand.u32 %v1114, 4294901760
    %1283 = vmatmul.mubr.f32.gmra.mrb[0].mxu0 %v1282
    %v1284 = vpop.f32.mrb[0].mxu0
    %v1285 = vadd.f32 %v1203, %v1284
    %v1286 = vpop.f32.mrb[0].mxu0
    %1287 = vdwg.mxu0
    %1288 = vmatprep.subr.mxu0 0.0
    %v1289 = vand.u32 %v1118, 4294901760
    %v1290 = vsub.f32 %v1118, %v1289
    %1291 = vmatpush1.msra.mxu0 %v1290
    %1292 = vmatprep.subr.mxu0 0.0
    %1293 = vmatpush1.msra.mxu0 0.0
    %1294 = vmatprep.subr.mxu0 0.0
    %1295 = vmatpush1.msra.mxu0 0.0
    %1296 = vmatprep.subr.mxu0 0.0
    %1297 = vmatpush1.msra.mxu0 0.0
    %1298 = vmatprep.subr.mxu0 0.0
    %1299 = vmatpush1.msra.mxu0 0.0
    %1300 = vmatprep.subr.mxu0 0.0
    %1301 = vmatpush1.msra.mxu0 0.0
    %1302 = vmatprep.subr.mxu0 0.0
    %1303 = vmatpush1.msra.mxu0 0.0
    %1304 = vmatprep.subr.mxu0 0.0
    %1305 = vmatpush1.msra.mxu0 0.0
    %1306 = vmatprep.subr.mxu0 0.0
    %1307 = vmatpush1.msra.mxu0 0.0
    %1308 = vmatprep.subr.mxu0 0.0
    %1309 = vmatpush1.msra.mxu0 0.0
    %1310 = vmatprep.subr.mxu0 0.0
    %1311 = vmatpush1.msra.mxu0 0.0
    %1312 = vmatprep.subr.mxu0 0.0
    %1313 = vmatpush1.msra.mxu0 0.0
    %1314 = vmatprep.subr.mxu0 0.0
    %1315 = vmatpush1.msra.mxu0 0.0
    %1316 = vmatprep.subr.mxu0 0.0
    %1317 = vmatpush1.msra.mxu0 0.0
    %1318 = vmatprep.subr.mxu0 0.0
    %1319 = vmatpush1.msra.mxu0 0.0
    %1320 = vmatprep.subr.mxu0 0.0
    %1321 = vmatpush1.msra.mxu0 0.0
    %1322 = vmatprep.subr.mxu0 0.0
    %1323 = vmatpush1.msra.mxu0 0.0
    %1324 = vmatprep.subr.mxu0 0.0
    %1325 = vmatpush1.msra.mxu0 0.0
    %1326 = vmatprep.subr.mxu0 0.0
    %1327 = vmatpush1.msra.mxu0 0.0
    %1328 = vmatprep.subr.mxu0 0.0
    %1329 = vmatpush1.msra.mxu0 0.0
    %1330 = vmatprep.subr.mxu0 0.0
    %1331 = vmatpush1.msra.mxu0 0.0
    %1332 = vmatprep.subr.mxu0 0.0
    %1333 = vmatpush1.msra.mxu0 0.0
    %1334 = vmatprep.subr.mxu0 0.0
    %1335 = vmatpush1.msra.mxu0 0.0
    %1336 = vmatprep.subr.mxu0 0.0
    %1337 = vmatpush1.msra.mxu0 0.0
    %1338 = vmatprep.subr.mxu0 0.0
    %1339 = vmatpush1.msra.mxu0 0.0
    %1340 = vmatprep.subr.mxu0 0.0
    %1341 = vmatpush1.msra.mxu0 0.0
    %1342 = vmatprep.subr.mxu0 0.0
    %1343 = vmatpush1.msra.mxu0 0.0
    %1344 = vmatprep.subr.mxu0 0.0
    %1345 = vmatpush1.msra.mxu0 0.0
    %1346 = vmatprep.subr.mxu0 0.0
    %1347 = vmatpush1.msra.mxu0 0.0
    %1348 = vmatprep.subr.mxu0 0.0
    %1349 = vmatpush1.msra.mxu0 0.0
    %1350 = vmatprep.subr.mxu0 0.0
    %1351 = vmatpush1.msra.mxu0 0.0
    %1352 = vmatprep.subr.mxu0 0.0
    %1353 = vmatpush1.msra.mxu0 0.0
    %1354 = vmatprep.mubr.f32.mxu0 0.0
    %v1355 = vand.u32 %v1111, 4294901760
    %v1356 = vsub.f32 %v1111, %v1355
    %1357 = vmatmul.mubr.f32.gmra.mrb[0].mxu0 %v1356
    %v1358 = vpop.f32.mrb[0].mxu0
    %v1359 = vadd.f32 %v1279, %v1358
    %v1360 = vpop.f32.mrb[0].mxu0
    %1361 = vmatprep.mubr.f32.mxu0 0.0
    %v1362 = vand.u32 %v1114, 4294901760
    %v1363 = vsub.f32 %v1114, %v1362
    %1364 = vmatmul.mubr.f32.gmra.mrb[0].mxu0 %v1363
    %v1365 = vpop.f32.mrb[0].mxu0
    %v1366 = vadd.f32 %v1285, %v1365
    %v1367 = vpop.f32.mrb[0].mxu0
    %1368 = vdwg.mxu0
    %1369 = vmatprep.subr.mxu0 0.0
    %v1370 = vand.u32 %v1118, 4294901760
    %1371 = vmatpush1.msra.mxu0 %v1370
    %1372 = vmatprep.subr.mxu0 0.0
    %1373 = vmatpush1.msra.mxu0 0.0
    %1374 = vmatprep.subr.mxu0 0.0
    %1375 = vmatpush1.msra.mxu0 0.0
    %1376 = vmatprep.subr.mxu0 0.0
    %1377 = vmatpush1.msra.mxu0 0.0
    %1378 = vmatprep.subr.mxu0 0.0
    %1379 = vmatpush1.msra.mxu0 0.0
    %1380 = vmatprep.subr.mxu0 0.0
    %1381 = vmatpush1.msra.mxu0 0.0
    %1382 = vmatprep.subr.mxu0 0.0
    %1383 = vmatpush1.msra.mxu0 0.0
    %1384 = vmatprep.subr.mxu0 0.0
    %1385 = vmatpush1.msra.mxu0 0.0
    %1386 = vmatprep.subr.mxu0 0.0
    %1387 = vmatpush1.msra.mxu0 0.0
    %1388 = vmatprep.subr.mxu0 0.0
    %1389 = vmatpush1.msra.mxu0 0.0
    %1390 = vmatprep.subr.mxu0 0.0
    %1391 = vmatpush1.msra.mxu0 0.0
    %1392 = vmatprep.subr.mxu0 0.0
    %1393 = vmatpush1.msra.mxu0 0.0
    %1394 = vmatprep.subr.mxu0 0.0
    %1395 = vmatpush1.msra.mxu0 0.0
    %1396 = vmatprep.subr.mxu0 0.0
    %1397 = vmatpush1.msra.mxu0 0.0
    %1398 = vmatprep.subr.mxu0 0.0
    %1399 = vmatpush1.msra.mxu0 0.0
    %1400 = vmatprep.subr.mxu0 0.0
    %1401 = vmatpush1.msra.mxu0 0.0
    %1402 = vmatprep.subr.mxu0 0.0
    %1403 = vmatpush1.msra.mxu0 0.0
    %1404 = vmatprep.subr.mxu0 0.0
    %1405 = vmatpush1.msra.mxu0 0.0
    %1406 = vmatprep.subr.mxu0 0.0
    %1407 = vmatpush1.msra.mxu0 0.0
    %1408 = vmatprep.subr.mxu0 0.0
    %1409 = vmatpush1.msra.mxu0 0.0
    %1410 = vmatprep.subr.mxu0 0.0
    %1411 = vmatpush1.msra.mxu0 0.0
    %1412 = vmatprep.subr.mxu0 0.0
    %1413 = vmatpush1.msra.mxu0 0.0
    %1414 = vmatprep.subr.mxu0 0.0
    %1415 = vmatpush1.msra.mxu0 0.0
    %1416 = vmatprep.subr.mxu0 0.0
    %1417 = vmatpush1.msra.mxu0 0.0
    %1418 = vmatprep.subr.mxu0 0.0
    %1419 = vmatpush1.msra.mxu0 0.0
    %1420 = vmatprep.subr.mxu0 0.0
    %1421 = vmatpush1.msra.mxu0 0.0
    %1422 = vmatprep.subr.mxu0 0.0
    %1423 = vmatpush1.msra.mxu0 0.0
    %1424 = vmatprep.subr.mxu0 0.0
    %1425 = vmatpush1.msra.mxu0 0.0
    %1426 = vmatprep.subr.mxu0 0.0
    %1427 = vmatpush1.msra.mxu0 0.0
    %1428 = vmatprep.subr.mxu0 0.0
    %1429 = vmatpush1.msra.mxu0 0.0
    %1430 = vmatprep.subr.mxu0 0.0
    %1431 = vmatpush1.msra.mxu0 0.0
    %1432 = vmatprep.subr.mxu0 0.0
    %1433 = vmatpush1.msra.mxu0 0.0
    %1434 = vmatprep.mubr.f32.mxu0 0.0
    %v1435 = vand.u32 %v1111, 4294901760
    %v1436 = vsub.f32 %v1111, %v1435
    %v1437 = vand.u32 %v1436, 4294901760
    %1438 = vmatmul.mubr.f32.gmra.mrb[0].mxu0 %v1437
    %v1439 = vpop.f32.mrb[0].mxu0
    %v1440 = vadd.f32 %v1359, %v1439
    %v1441 = vpop.f32.mrb[0].mxu0
    %1442 = vmatprep.mubr.f32.mxu0 0.0
    %v1443 = vand.u32 %v1114, 4294901760
    %v1444 = vsub.f32 %v1114, %v1443
    %v1445 = vand.u32 %v1444, 4294901760
    %1446 = vmatmul.mubr.f32.gmra.mrb[0].mxu0 %v1445
    %v1447 = vpop.f32.mrb[0].mxu0
    %v1448 = vadd.f32 %v1366, %v1447
    %v1449 = vpop.f32.mrb[0].mxu0
    %1450 = vdwg.mxu0
    %1451 = vmatprep.subr.mxu0 0.0
    %v1452 = vand.u32 %v1118, 4294901760
    %v1453 = vsub.f32 %v1118, %v1452
    %v1454 = vand.u32 %v1453, 4294901760
    %1455 = vmatpush1.msra.mxu0 %v1454
    %1456 = vmatprep.subr.mxu0 0.0
    %1457 = vmatpush1.msra.mxu0 0.0
    %1458 = vmatprep.subr.mxu0 0.0
    %1459 = vmatpush1.msra.mxu0 0.0
    %1460 = vmatprep.subr.mxu0 0.0
    %1461 = vmatpush1.msra.mxu0 0.0
    %1462 = vmatprep.subr.mxu0 0.0
    %1463 = vmatpush1.msra.mxu0 0.0
    %1464 = vmatprep.subr.mxu0 0.0
    %1465 = vmatpush1.msra.mxu0 0.0
    %1466 = vmatprep.subr.mxu0 0.0
    %1467 = vmatpush1.msra.mxu0 0.0
    %1468 = vmatprep.subr.mxu0 0.0
    %1469 = vmatpush1.msra.mxu0 0.0
    %1470 = vmatprep.subr.mxu0 0.0
    %1471 = vmatpush1.msra.mxu0 0.0
    %1472 = vmatprep.subr.mxu0 0.0
    %1473 = vmatpush1.msra.mxu0 0.0
    %1474 = vmatprep.subr.mxu0 0.0
    %1475 = vmatpush1.msra.mxu0 0.0
    %1476 = vmatprep.subr.mxu0 0.0
    %1477 = vmatpush1.msra.mxu0 0.0
    %1478 = vmatprep.subr.mxu0 0.0
    %1479 = vmatpush1.msra.mxu0 0.0
    %1480 = vmatprep.subr.mxu0 0.0
    %1481 = vmatpush1.msra.mxu0 0.0
    %1482 = vmatprep.subr.mxu0 0.0
    %1483 = vmatpush1.msra.mxu0 0.0
    %1484 = vmatprep.subr.mxu0 0.0
    %1485 = vmatpush1.msra.mxu0 0.0
    %1486 = vmatprep.subr.mxu0 0.0
    %1487 = vmatpush1.msra.mxu0 0.0
    %1488 = vmatprep.subr.mxu0 0.0
    %1489 = vmatpush1.msra.mxu0 0.0
    %1490 = vmatprep.subr.mxu0 0.0
    %1491 = vmatpush1.msra.mxu0 0.0
    %1492 = vmatprep.subr.mxu0 0.0
    %1493 = vmatpush1.msra.mxu0 0.0
    %1494 = vmatprep.subr.mxu0 0.0
    %1495 = vmatpush1.msra.mxu0 0.0
    %1496 = vmatprep.subr.mxu0 0.0
    %1497 = vmatpush1.msra.mxu0 0.0
    %1498 = vmatprep.subr.mxu0 0.0
    %1499 = vmatpush1.msra.mxu0 0.0
    %1500 = vmatprep.subr.mxu0 0.0
    %1501 = vmatpush1.msra.mxu0 0.0
    %1502 = vmatprep.subr.mxu0 0.0
    %1503 = vmatpush1.msra.mxu0 0.0
    %1504 = vmatprep.subr.mxu0 0.0
    %1505 = vmatpush1.msra.mxu0 0.0
    %1506 = vmatprep.subr.mxu0 0.0
    %1507 = vmatpush1.msra.mxu0 0.0
    %1508 = vmatprep.subr.mxu0 0.0
    %1509 = vmatpush1.msra.mxu0 0.0
    %1510 = vmatprep.subr.mxu0 0.0
    %1511 = vmatpush1.msra.mxu0 0.0
    %1512 = vmatprep.subr.mxu0 0.0
    %1513 = vmatpush1.msra.mxu0 0.0
    %1514 = vmatprep.subr.mxu0 0.0
    %1515 = vmatpush1.msra.mxu0 0.0
    %1516 = vmatprep.subr.mxu0 0.0
    %1517 = vmatpush1.msra.mxu0 0.0
    %1518 = vmatprep.mubr.f32.mxu0 0.0
    %v1519 = vand.u32 %v1111, 4294901760
    %1520 = vmatmul.mubr.f32.gmra.mrb[0].mxu0 %v1519
    %v1521 = vpop.f32.mrb[0].mxu0
    %v1522 = vadd.f32 %v1440, %v1521
    %v1523 = vpop.f32.mrb[0].mxu0
    %1524 = vmatprep.mubr.f32.mxu0 0.0
    %v1525 = vand.u32 %v1114, 4294901760
    %1526 = vmatmul.mubr.f32.gmra.mrb[0].mxu0 %v1525
    %v1527 = vpop.f32.mrb[0].mxu0
    %v1528 = vadd.f32 %v1448, %v1527
    %v1529 = vpop.f32.mrb[0].mxu0
    %1530 = vdwg.mxu0
    %1531 = vmatprep.subr.mxu0 0.0
    %v1532 = vand.u32 %v1118, 4294901760
    %1533 = vmatpush1.msra.mxu0 %v1532
    %1534 = vmatprep.subr.mxu0 0.0
    %1535 = vmatpush1.msra.mxu0 0.0
    %1536 = vmatprep.subr.mxu0 0.0
    %1537 = vmatpush1.msra.mxu0 0.0
    %1538 = vmatprep.subr.mxu0 0.0
    %1539 = vmatpush1.msra.mxu0 0.0
    %1540 = vmatprep.subr.mxu0 0.0
    %1541 = vmatpush1.msra.mxu0 0.0
    %1542 = vmatprep.subr.mxu0 0.0
    %1543 = vmatpush1.msra.mxu0 0.0
    %1544 = vmatprep.subr.mxu0 0.0
    %1545 = vmatpush1.msra.mxu0 0.0
    %1546 = vmatprep.subr.mxu0 0.0
    %1547 = vmatpush1.msra.mxu0 0.0
    %1548 = vmatprep.subr.mxu0 0.0
    %1549 = vmatpush1.msra.mxu0 0.0
    %1550 = vmatprep.subr.mxu0 0.0
    %1551 = vmatpush1.msra.mxu0 0.0
    %1552 = vmatprep.subr.mxu0 0.0
    %1553 = vmatpush1.msra.mxu0 0.0
    %1554 = vmatprep.subr.mxu0 0.0
    %1555 = vmatpush1.msra.mxu0 0.0
    %1556 = vmatprep.subr.mxu0 0.0
    %1557 = vmatpush1.msra.mxu0 0.0
    %1558 = vmatprep.subr.mxu0 0.0
    %1559 = vmatpush1.msra.mxu0 0.0
    %1560 = vmatprep.subr.mxu0 0.0
    %1561 = vmatpush1.msra.mxu0 0.0
    %1562 = vmatprep.subr.mxu0 0.0
    %1563 = vmatpush1.msra.mxu0 0.0
    %1564 = vmatprep.subr.mxu0 0.0
    %1565 = vmatpush1.msra.mxu0 0.0
    %1566 = vmatprep.subr.mxu0 0.0
    %1567 = vmatpush1.msra.mxu0 0.0
    %1568 = vmatprep.subr.mxu0 0.0
    %1569 = vmatpush1.msra.mxu0 0.0
    %1570 = vmatprep.subr.mxu0 0.0
    %1571 = vmatpush1.msra.mxu0 0.0
    %1572 = vmatprep.subr.mxu0 0.0
    %1573 = vmatpush1.msra.mxu0 0.0
    %1574 = vmatprep.subr.mxu0 0.0
    %1575 = vmatpush1.msra.mxu0 0.0
    %1576 = vmatprep.subr.mxu0 0.0
    %1577 = vmatpush1.msra.mxu0 0.0
    %1578 = vmatprep.subr.mxu0 0.0
    %1579 = vmatpush1.msra.mxu0 0.0
    %1580 = vmatprep.subr.mxu0 0.0
    %1581 = vmatpush1.msra.mxu0 0.0
    %1582 = vmatprep.subr.mxu0 0.0
    %1583 = vmatpush1.msra.mxu0 0.0
    %1584 = vmatprep.subr.mxu0 0.0
    %1585 = vmatpush1.msra.mxu0 0.0
    %1586 = vmatprep.subr.mxu0 0.0
    %1587 = vmatpush1.msra.mxu0 0.0
    %1588 = vmatprep.subr.mxu0 0.0
    %1589 = vmatpush1.msra.mxu0 0.0
    %1590 = vmatprep.subr.mxu0 0.0
    %1591 = vmatpush1.msra.mxu0 0.0
    %1592 = vmatprep.subr.mxu0 0.0
    %1593 = vmatpush1.msra.mxu0 0.0
    %1594 = vmatprep.subr.mxu0 0.0
    %1595 = vmatpush1.msra.mxu0 0.0
    %1596 = vmatprep.mubr.f32.mxu0 0.0
    %v1597 = vand.u32 %v1111, 4294901760
    %1598 = vmatmul.mubr.f32.gmra.mrb[0].mxu0 %v1597
    %v1599 = vpop.f32.mrb[0].mxu0
    %v1600 = vadd.f32 %v1522, %v1599
    %v1601 = vpop.f32.mrb[0].mxu0
    %1602 = vmatprep.mubr.f32.mxu0 0.0
    %v1603 = vand.u32 %v1114, 4294901760
    %1604 = vmatmul.mubr.f32.gmra.mrb[0].mxu0 %v1603
    %v1605 = vpop.f32.mrb[0].mxu0
    %v1606 = vadd.f32 %v1528, %v1605
    %v1607 = vpop.f32.mrb[0].mxu0
    %1608 = vdwg.mxu0
    %v1609 = vsub.f32 %v27, %v1600
    %v1610 = vsub.f32 %v28, %v1606
    %v1612 = vsel %vm1109, %v1107, 0
    %v1615 = vsel %vm1109, %v1108, 0
    %1617 = vmatprep.subr.mxu0 0.0
    %v1618 = vand.u32 %v1118, 4294901760
    %1619 = vmatpush1.msra.mxu0 %v1618
    %1620 = vmatprep.subr.mxu0 0.0
    %1621 = vmatpush1.msra.mxu0 0.0
    %1622 = vmatprep.subr.mxu0 0.0
    %1623 = vmatpush1.msra.mxu0 0.0
    %1624 = vmatprep.subr.mxu0 0.0
    %1625 = vmatpush1.msra.mxu0 0.0
    %1626 = vmatprep.subr.mxu0 0.0
    %1627 = vmatpush1.msra.mxu0 0.0
    %1628 = vmatprep.subr.mxu0 0.0
    %1629 = vmatpush1.msra.mxu0 0.0
    %1630 = vmatprep.subr.mxu0 0.0
    %1631 = vmatpush1.msra.mxu0 0.0
    %1632 = vmatprep.subr.mxu0 0.0
    %1633 = vmatpush1.msra.mxu0 0.0
    %1634 = vmatprep.subr.mxu0 0.0
    %1635 = vmatpush1.msra.mxu0 0.0
    %1636 = vmatprep.subr.mxu0 0.0
    %1637 = vmatpush1.msra.mxu0 0.0
    %1638 = vmatprep.subr.mxu0 0.0
    %1639 = vmatpush1.msra.mxu0 0.0
    %1640 = vmatprep.subr.mxu0 0.0
    %1641 = vmatpush1.msra.mxu0 0.0
    %1642 = vmatprep.subr.mxu0 0.0
    %1643 = vmatpush1.msra.mxu0 0.0
    %1644 = vmatprep.subr.mxu0 0.0
    %1645 = vmatpush1.msra.mxu0 0.0
    %1646 = vmatprep.subr.mxu0 0.0
    %1647 = vmatpush1.msra.mxu0 0.0
    %1648 = vmatprep.subr.mxu0 0.0
    %1649 = vmatpush1.msra.mxu0 0.0
    %1650 = vmatprep.subr.mxu0 0.0
    %1651 = vmatpush1.msra.mxu0 0.0
    %1652 = vmatprep.subr.mxu0 0.0
    %1653 = vmatpush1.msra.mxu0 0.0
    %1654 = vmatprep.subr.mxu0 0.0
    %1655 = vmatpush1.msra.mxu0 0.0
    %1656 = vmatprep.subr.mxu0 0.0
    %1657 = vmatpush1.msra.mxu0 0.0
    %1658 = vmatprep.subr.mxu0 0.0
    %1659 = vmatpush1.msra.mxu0 0.0
    %1660 = vmatprep.subr.mxu0 0.0
    %1661 = vmatpush1.msra.mxu0 0.0
    %1662 = vmatprep.subr.mxu0 0.0
    %1663 = vmatpush1.msra.mxu0 0.0
    %1664 = vmatprep.subr.mxu0 0.0
    %1665 = vmatpush1.msra.mxu0 0.0
    %1666 = vmatprep.subr.mxu0 0.0
    %1667 = vmatpush1.msra.mxu0 0.0
    %1668 = vmatprep.subr.mxu0 0.0
    %1669 = vmatpush1.msra.mxu0 0.0
    %1670 = vmatprep.subr.mxu0 0.0
    %1671 = vmatpush1.msra.mxu0 0.0
    %1672 = vmatprep.subr.mxu0 0.0
    %1673 = vmatpush1.msra.mxu0 0.0
    %1674 = vmatprep.subr.mxu0 0.0
    %1675 = vmatpush1.msra.mxu0 0.0
    %1676 = vmatprep.subr.mxu0 0.0
    %1677 = vmatpush1.msra.mxu0 0.0
    %1678 = vmatprep.subr.mxu0 0.0
    %1679 = vmatpush1.msra.mxu0 0.0
    %1680 = vmatprep.subr.mxu0 0.0
    %1681 = vmatpush1.msra.mxu0 0.0
    %1682 = vmatprep.mubr.f32.mxu0 0.0
    %v1683 = vand.u32 %v1612, 4294901760
    %v1684 = vsub.f32 %v1612, %v1683
    %v1685 = vand.u32 %v1684, 4294901760
    %v1686 = vsub.f32 %v1684, %v1685
    %v1687 = vand.u32 %v1686, 4294901760
    %1688 = vmatmul.mubr.f32.gmra.mrb[0].mxu0 %v1687
    %v1689 = vpop.f32.mrb[0].mxu0
    %v1690 = vadd.f32 0.0, %v1689
    %v1691 = vpop.f32.mrb[0].mxu0
    %1692 = vmatprep.mubr.f32.mxu0 0.0
    %v1693 = vand.u32 %v1615, 4294901760
    %v1694 = vsub.f32 %v1615, %v1693
    %v1695 = vand.u32 %v1694, 4294901760
    %v1696 = vsub.f32 %v1694, %v1695
    %v1697 = vand.u32 %v1696, 4294901760
    %1698 = vmatmul.mubr.f32.gmra.mrb[0].mxu0 %v1697
    %v1699 = vpop.f32.mrb[0].mxu0
    %v1700 = vadd.f32 0.0, %v1699
    %v1701 = vpop.f32.mrb[0].mxu0
    %1702 = vdwg.mxu0
    %1703 = vmatprep.subr.mxu0 0.0
    %v1704 = vand.u32 %v1118, 4294901760
    %v1705 = vsub.f32 %v1118, %v1704
    %v1706 = vand.u32 %v1705, 4294901760
    %v1707 = vsub.f32 %v1705, %v1706
    %v1708 = vand.u32 %v1707, 4294901760
    %1709 = vmatpush1.msra.mxu0 %v1708
    %1710 = vmatprep.subr.mxu0 0.0
    %1711 = vmatpush1.msra.mxu0 0.0
    %1712 = vmatprep.subr.mxu0 0.0
    %1713 = vmatpush1.msra.mxu0 0.0
    %1714 = vmatprep.subr.mxu0 0.0
    %1715 = vmatpush1.msra.mxu0 0.0
    %1716 = vmatprep.subr.mxu0 0.0
    %1717 = vmatpush1.msra.mxu0 0.0
    %1718 = vmatprep.subr.mxu0 0.0
    %1719 = vmatpush1.msra.mxu0 0.0
    %1720 = vmatprep.subr.mxu0 0.0
    %1721 = vmatpush1.msra.mxu0 0.0
    %1722 = vmatprep.subr.mxu0 0.0
    %1723 = vmatpush1.msra.mxu0 0.0
    %1724 = vmatprep.subr.mxu0 0.0
    %1725 = vmatpush1.msra.mxu0 0.0
    %1726 = vmatprep.subr.mxu0 0.0
    %1727 = vmatpush1.msra.mxu0 0.0
    %1728 = vmatprep.subr.mxu0 0.0
    %1729 = vmatpush1.msra.mxu0 0.0
    %1730 = vmatprep.subr.mxu0 0.0
    %1731 = vmatpush1.msra.mxu0 0.0
    %1732 = vmatprep.subr.mxu0 0.0
    %1733 = vmatpush1.msra.mxu0 0.0
    %1734 = vmatprep.subr.mxu0 0.0
    %1735 = vmatpush1.msra.mxu0 0.0
    %1736 = vmatprep.subr.mxu0 0.0
    %1737 = vmatpush1.msra.mxu0 0.0
    %1738 = vmatprep.subr.mxu0 0.0
    %1739 = vmatpush1.msra.mxu0 0.0
    %1740 = vmatprep.subr.mxu0 0.0
    %1741 = vmatpush1.msra.mxu0 0.0
    %1742 = vmatprep.subr.mxu0 0.0
    %1743 = vmatpush1.msra.mxu0 0.0
    %1744 = vmatprep.subr.mxu0 0.0
    %1745 = vmatpush1.msra.mxu0 0.0
    %1746 = vmatprep.subr.mxu0 0.0
    %1747 = vmatpush1.msra.mxu0 0.0
    %1748 = vmatprep.subr.mxu0 0.0
    %1749 = vmatpush1.msra.mxu0 0.0
    %1750 = vmatprep.subr.mxu0 0.0
    %1751 = vmatpush1.msra.mxu0 0.0
    %1752 = vmatprep.subr.mxu0 0.0
    %1753 = vmatpush1.msra.mxu0 0.0
    %1754 = vmatprep.subr.mxu0 0.0
    %1755 = vmatpush1.msra.mxu0 0.0
    %1756 = vmatprep.subr.mxu0 0.0
    %1757 = vmatpush1.msra.mxu0 0.0
    %1758 = vmatprep.subr.mxu0 0.0
    %1759 = vmatpush1.msra.mxu0 0.0
    %1760 = vmatprep.subr.mxu0 0.0
    %1761 = vmatpush1.msra.mxu0 0.0
    %1762 = vmatprep.subr.mxu0 0.0
    %1763 = vmatpush1.msra.mxu0 0.0
    %1764 = vmatprep.subr.mxu0 0.0
    %1765 = vmatpush1.msra.mxu0 0.0
    %1766 = vmatprep.subr.mxu0 0.0
    %1767 = vmatpush1.msra.mxu0 0.0
    %1768 = vmatprep.subr.mxu0 0.0
    %1769 = vmatpush1.msra.mxu0 0.0
    %1770 = vmatprep.subr.mxu0 0.0
    %1771 = vmatpush1.msra.mxu0 0.0
    %1772 = vmatprep.mubr.f32.mxu0 0.0
    %v1773 = vand.u32 %v1612, 4294901760
    %1774 = vmatmul.mubr.f32.gmra.mrb[0].mxu0 %v1773
    %v1775 = vpop.f32.mrb[0].mxu0
    %v1776 = vadd.f32 %v1690, %v1775
    %v1777 = vpop.f32.mrb[0].mxu0
    %1778 = vmatprep.mubr.f32.mxu0 0.0
    %v1779 = vand.u32 %v1615, 4294901760
    %1780 = vmatmul.mubr.f32.gmra.mrb[0].mxu0 %v1779
    %v1781 = vpop.f32.mrb[0].mxu0
    %v1782 = vadd.f32 %v1700, %v1781
    %v1783 = vpop.f32.mrb[0].mxu0
    %1784 = vdwg.mxu0
    %1785 = vmatprep.subr.mxu0 0.0
    %v1786 = vand.u32 %v1118, 4294901760
    %v1787 = vsub.f32 %v1118, %v1786
    %1788 = vmatpush1.msra.mxu0 %v1787
    %1789 = vmatprep.subr.mxu0 0.0
    %1790 = vmatpush1.msra.mxu0 0.0
    %1791 = vmatprep.subr.mxu0 0.0
    %1792 = vmatpush1.msra.mxu0 0.0
    %1793 = vmatprep.subr.mxu0 0.0
    %1794 = vmatpush1.msra.mxu0 0.0
    %1795 = vmatprep.subr.mxu0 0.0
    %1796 = vmatpush1.msra.mxu0 0.0
    %1797 = vmatprep.subr.mxu0 0.0
    %1798 = vmatpush1.msra.mxu0 0.0
    %1799 = vmatprep.subr.mxu0 0.0
    %1800 = vmatpush1.msra.mxu0 0.0
    %1801 = vmatprep.subr.mxu0 0.0
    %1802 = vmatpush1.msra.mxu0 0.0
    %1803 = vmatprep.subr.mxu0 0.0
    %1804 = vmatpush1.msra.mxu0 0.0
    %1805 = vmatprep.subr.mxu0 0.0
    %1806 = vmatpush1.msra.mxu0 0.0
    %1807 = vmatprep.subr.mxu0 0.0
    %1808 = vmatpush1.msra.mxu0 0.0
    %1809 = vmatprep.subr.mxu0 0.0
    %1810 = vmatpush1.msra.mxu0 0.0
    %1811 = vmatprep.subr.mxu0 0.0
    %1812 = vmatpush1.msra.mxu0 0.0
    %1813 = vmatprep.subr.mxu0 0.0
    %1814 = vmatpush1.msra.mxu0 0.0
    %1815 = vmatprep.subr.mxu0 0.0
    %1816 = vmatpush1.msra.mxu0 0.0
    %1817 = vmatprep.subr.mxu0 0.0
    %1818 = vmatpush1.msra.mxu0 0.0
    %1819 = vmatprep.subr.mxu0 0.0
    %1820 = vmatpush1.msra.mxu0 0.0
    %1821 = vmatprep.subr.mxu0 0.0
    %1822 = vmatpush1.msra.mxu0 0.0
    %1823 = vmatprep.subr.mxu0 0.0
    %1824 = vmatpush1.msra.mxu0 0.0
    %1825 = vmatprep.subr.mxu0 0.0
    %1826 = vmatpush1.msra.mxu0 0.0
    %1827 = vmatprep.subr.mxu0 0.0
    %1828 = vmatpush1.msra.mxu0 0.0
    %1829 = vmatprep.subr.mxu0 0.0
    %1830 = vmatpush1.msra.mxu0 0.0
    %1831 = vmatprep.subr.mxu0 0.0
    %1832 = vmatpush1.msra.mxu0 0.0
    %1833 = vmatprep.subr.mxu0 0.0
    %1834 = vmatpush1.msra.mxu0 0.0
    %1835 = vmatprep.subr.mxu0 0.0
    %1836 = vmatpush1.msra.mxu0 0.0
    %1837 = vmatprep.subr.mxu0 0.0
    %1838 = vmatpush1.msra.mxu0 0.0
    %1839 = vmatprep.subr.mxu0 0.0
    %1840 = vmatpush1.msra.mxu0 0.0
    %1841 = vmatprep.subr.mxu0 0.0
    %1842 = vmatpush1.msra.mxu0 0.0
    %1843 = vmatprep.subr.mxu0 0.0
    %1844 = vmatpush1.msra.mxu0 0.0
    %1845 = vmatprep.subr.mxu0 0.0
    %1846 = vmatpush1.msra.mxu0 0.0
    %1847 = vmatprep.subr.mxu0 0.0
    %1848 = vmatpush1.msra.mxu0 0.0
    %1849 = vmatprep.subr.mxu0 0.0
    %1850 = vmatpush1.msra.mxu0 0.0
    %1851 = vmatprep.mubr.f32.mxu0 0.0
    %v1852 = vand.u32 %v1612, 4294901760
    %v1853 = vsub.f32 %v1612, %v1852
    %1854 = vmatmul.mubr.f32.gmra.mrb[0].mxu0 %v1853
    %v1855 = vpop.f32.mrb[0].mxu0
    %v1856 = vadd.f32 %v1776, %v1855
    %v1857 = vpop.f32.mrb[0].mxu0
    %1858 = vmatprep.mubr.f32.mxu0 0.0
    %v1859 = vand.u32 %v1615, 4294901760
    %v1860 = vsub.f32 %v1615, %v1859
    %1861 = vmatmul.mubr.f32.gmra.mrb[0].mxu0 %v1860
    %v1862 = vpop.f32.mrb[0].mxu0
    %v1863 = vadd.f32 %v1782, %v1862
    %v1864 = vpop.f32.mrb[0].mxu0
    %1865 = vdwg.mxu0
    %1866 = vmatprep.subr.mxu0 0.0
    %v1867 = vand.u32 %v1118, 4294901760
    %1868 = vmatpush1.msra.mxu0 %v1867
    %1869 = vmatprep.subr.mxu0 0.0
    %1870 = vmatpush1.msra.mxu0 0.0
    %1871 = vmatprep.subr.mxu0 0.0
    %1872 = vmatpush1.msra.mxu0 0.0
    %1873 = vmatprep.subr.mxu0 0.0
    %1874 = vmatpush1.msra.mxu0 0.0
    %1875 = vmatprep.subr.mxu0 0.0
    %1876 = vmatpush1.msra.mxu0 0.0
    %1877 = vmatprep.subr.mxu0 0.0
    %1878 = vmatpush1.msra.mxu0 0.0
    %1879 = vmatprep.subr.mxu0 0.0
    %1880 = vmatpush1.msra.mxu0 0.0
    %1881 = vmatprep.subr.mxu0 0.0
    %1882 = vmatpush1.msra.mxu0 0.0
    %1883 = vmatprep.subr.mxu0 0.0
    %1884 = vmatpush1.msra.mxu0 0.0
    %1885 = vmatprep.subr.mxu0 0.0
    %1886 = vmatpush1.msra.mxu0 0.0
    %1887 = vmatprep.subr.mxu0 0.0
    %1888 = vmatpush1.msra.mxu0 0.0
    %1889 = vmatprep.subr.mxu0 0.0
    %1890 = vmatpush1.msra.mxu0 0.0
    %1891 = vmatprep.subr.mxu0 0.0
    %1892 = vmatpush1.msra.mxu0 0.0
    %1893 = vmatprep.subr.mxu0 0.0
    %1894 = vmatpush1.msra.mxu0 0.0
    %1895 = vmatprep.subr.mxu0 0.0
    %1896 = vmatpush1.msra.mxu0 0.0
    %1897 = vmatprep.subr.mxu0 0.0
    %1898 = vmatpush1.msra.mxu0 0.0
    %1899 = vmatprep.subr.mxu0 0.0
    %1900 = vmatpush1.msra.mxu0 0.0
    %1901 = vmatprep.subr.mxu0 0.0
    %1902 = vmatpush1.msra.mxu0 0.0
    %1903 = vmatprep.subr.mxu0 0.0
    %1904 = vmatpush1.msra.mxu0 0.0
    %1905 = vmatprep.subr.mxu0 0.0
    %1906 = vmatpush1.msra.mxu0 0.0
    %1907 = vmatprep.subr.mxu0 0.0
    %1908 = vmatpush1.msra.mxu0 0.0
    %1909 = vmatprep.subr.mxu0 0.0
    %1910 = vmatpush1.msra.mxu0 0.0
    %1911 = vmatprep.subr.mxu0 0.0
    %1912 = vmatpush1.msra.mxu0 0.0
    %1913 = vmatprep.subr.mxu0 0.0
    %1914 = vmatpush1.msra.mxu0 0.0
    %1915 = vmatprep.subr.mxu0 0.0
    %1916 = vmatpush1.msra.mxu0 0.0
    %1917 = vmatprep.subr.mxu0 0.0
    %1918 = vmatpush1.msra.mxu0 0.0
    %1919 = vmatprep.subr.mxu0 0.0
    %1920 = vmatpush1.msra.mxu0 0.0
    %1921 = vmatprep.subr.mxu0 0.0
    %1922 = vmatpush1.msra.mxu0 0.0
    %1923 = vmatprep.subr.mxu0 0.0
    %1924 = vmatpush1.msra.mxu0 0.0
    %1925 = vmatprep.subr.mxu0 0.0
    %1926 = vmatpush1.msra.mxu0 0.0
    %1927 = vmatprep.subr.mxu0 0.0
    %1928 = vmatpush1.msra.mxu0 0.0
    %1929 = vmatprep.subr.mxu0 0.0
    %1930 = vmatpush1.msra.mxu0 0.0
    %1931 = vmatprep.mubr.f32.mxu0 0.0
    %v1932 = vand.u32 %v1612, 4294901760
    %v1933 = vsub.f32 %v1612, %v1932
    %v1934 = vand.u32 %v1933, 4294901760
    %1935 = vmatmul.mubr.f32.gmra.mrb[0].mxu0 %v1934
    %v1936 = vpop.f32.mrb[0].mxu0
    %v1937 = vadd.f32 %v1856, %v1936
    %v1938 = vpop.f32.mrb[0].mxu0
    %1939 = vmatprep.mubr.f32.mxu0 0.0
    %v1940 = vand.u32 %v1615, 4294901760
    %v1941 = vsub.f32 %v1615, %v1940
    %v1942 = vand.u32 %v1941, 4294901760
    %1943 = vmatmul.mubr.f32.gmra.mrb[0].mxu0 %v1942
    %v1944 = vpop.f32.mrb[0].mxu0
    %v1945 = vadd.f32 %v1863, %v1944
    %v1946 = vpop.f32.mrb[0].mxu0
    %1947 = vdwg.mxu0
    %1948 = vmatprep.subr.mxu0 0.0
    %v1949 = vand.u32 %v1118, 4294901760
    %v1950 = vsub.f32 %v1118, %v1949
    %v1951 = vand.u32 %v1950, 4294901760
    %1952 = vmatpush1.msra.mxu0 %v1951
    %1953 = vmatprep.subr.mxu0 0.0
    %1954 = vmatpush1.msra.mxu0 0.0
    %1955 = vmatprep.subr.mxu0 0.0
    %1956 = vmatpush1.msra.mxu0 0.0
    %1957 = vmatprep.subr.mxu0 0.0
    %1958 = vmatpush1.msra.mxu0 0.0
    %1959 = vmatprep.subr.mxu0 0.0
    %1960 = vmatpush1.msra.mxu0 0.0
    %1961 = vmatprep.subr.mxu0 0.0
    %1962 = vmatpush1.msra.mxu0 0.0
    %1963 = vmatprep.subr.mxu0 0.0
    %1964 = vmatpush1.msra.mxu0 0.0
    %1965 = vmatprep.subr.mxu0 0.0
    %1966 = vmatpush1.msra.mxu0 0.0
    %1967 = vmatprep.subr.mxu0 0.0
    %1968 = vmatpush1.msra.mxu0 0.0
    %1969 = vmatprep.subr.mxu0 0.0
    %1970 = vmatpush1.msra.mxu0 0.0
    %1971 = vmatprep.subr.mxu0 0.0
    %1972 = vmatpush1.msra.mxu0 0.0
    %1973 = vmatprep.subr.mxu0 0.0
    %1974 = vmatpush1.msra.mxu0 0.0
    %1975 = vmatprep.subr.mxu0 0.0
    %1976 = vmatpush1.msra.mxu0 0.0
    %1977 = vmatprep.subr.mxu0 0.0
    %1978 = vmatpush1.msra.mxu0 0.0
    %1979 = vmatprep.subr.mxu0 0.0
    %1980 = vmatpush1.msra.mxu0 0.0
    %1981 = vmatprep.subr.mxu0 0.0
    %1982 = vmatpush1.msra.mxu0 0.0
    %1983 = vmatprep.subr.mxu0 0.0
    %1984 = vmatpush1.msra.mxu0 0.0
    %1985 = vmatprep.subr.mxu0 0.0
    %1986 = vmatpush1.msra.mxu0 0.0
    %1987 = vmatprep.subr.mxu0 0.0
    %1988 = vmatpush1.msra.mxu0 0.0
    %1989 = vmatprep.subr.mxu0 0.0
    %1990 = vmatpush1.msra.mxu0 0.0
    %1991 = vmatprep.subr.mxu0 0.0
    %1992 = vmatpush1.msra.mxu0 0.0
    %1993 = vmatprep.subr.mxu0 0.0
    %1994 = vmatpush1.msra.mxu0 0.0
    %1995 = vmatprep.subr.mxu0 0.0
    %1996 = vmatpush1.msra.mxu0 0.0
    %1997 = vmatprep.subr.mxu0 0.0
    %1998 = vmatpush1.msra.mxu0 0.0
    %1999 = vmatprep.subr.mxu0 0.0
    %2000 = vmatpush1.msra.mxu0 0.0
    %2001 = vmatprep.subr.mxu0 0.0
    %2002 = vmatpush1.msra.mxu0 0.0
    %2003 = vmatprep.subr.mxu0 0.0
    %2004 = vmatpush1.msra.mxu0 0.0
    %2005 = vmatprep.subr.mxu0 0.0
    %2006 = vmatpush1.msra.mxu0 0.0
    %2007 = vmatprep.subr.mxu0 0.0
    %2008 = vmatpush1.msra.mxu0 0.0
    %2009 = vmatprep.subr.mxu0 0.0
    %2010 = vmatpush1.msra.mxu0 0.0
    %2011 = vmatprep.subr.mxu0 0.0
    %2012 = vmatpush1.msra.mxu0 0.0
    %2013 = vmatprep.subr.mxu0 0.0
    %2014 = vmatpush1.msra.mxu0 0.0
    %2015 = vmatprep.mubr.f32.mxu0 0.0
    %v2016 = vand.u32 %v1612, 4294901760
    %2017 = vmatmul.mubr.f32.gmra.mrb[0].mxu0 %v2016
    %v2018 = vpop.f32.mrb[0].mxu0
    %v2019 = vadd.f32 %v1937, %v2018
    %v2020 = vpop.f32.mrb[0].mxu0
    %2021 = vmatprep.mubr.f32.mxu0 0.0
    %v2022 = vand.u32 %v1615, 4294901760
    %2023 = vmatmul.mubr.f32.gmra.mrb[0].mxu0 %v2022
    %v2024 = vpop.f32.mrb[0].mxu0
    %v2025 = vadd.f32 %v1945, %v2024
    %v2026 = vpop.f32.mrb[0].mxu0
    %2027 = vdwg.mxu0
    %2028 = vmatprep.subr.mxu0 0.0
    %v2029 = vand.u32 %v1118, 4294901760
    %2030 = vmatpush1.msra.mxu0 %v2029
    %2031 = vmatprep.subr.mxu0 0.0
    %2032 = vmatpush1.msra.mxu0 0.0
    %2033 = vmatprep.subr.mxu0 0.0
    %2034 = vmatpush1.msra.mxu0 0.0
    %2035 = vmatprep.subr.mxu0 0.0
    %2036 = vmatpush1.msra.mxu0 0.0
    %2037 = vmatprep.subr.mxu0 0.0
    %2038 = vmatpush1.msra.mxu0 0.0
    %2039 = vmatprep.subr.mxu0 0.0
    %2040 = vmatpush1.msra.mxu0 0.0
    %2041 = vmatprep.subr.mxu0 0.0
    %2042 = vmatpush1.msra.mxu0 0.0
    %2043 = vmatprep.subr.mxu0 0.0
    %2044 = vmatpush1.msra.mxu0 0.0
    %2045 = vmatprep.subr.mxu0 0.0
    %2046 = vmatpush1.msra.mxu0 0.0
    %2047 = vmatprep.subr.mxu0 0.0
    %2048 = vmatpush1.msra.mxu0 0.0
    %2049 = vmatprep.subr.mxu0 0.0
    %2050 = vmatpush1.msra.mxu0 0.0
    %2051 = vmatprep.subr.mxu0 0.0
    %2052 = vmatpush1.msra.mxu0 0.0
    %2053 = vmatprep.subr.mxu0 0.0
    %2054 = vmatpush1.msra.mxu0 0.0
    %2055 = vmatprep.subr.mxu0 0.0
    %2056 = vmatpush1.msra.mxu0 0.0
    %2057 = vmatprep.subr.mxu0 0.0
    %2058 = vmatpush1.msra.mxu0 0.0
    %2059 = vmatprep.subr.mxu0 0.0
    %2060 = vmatpush1.msra.mxu0 0.0
    %2061 = vmatprep.subr.mxu0 0.0
    %2062 = vmatpush1.msra.mxu0 0.0
    %2063 = vmatprep.subr.mxu0 0.0
    %2064 = vmatpush1.msra.mxu0 0.0
    %2065 = vmatprep.subr.mxu0 0.0
    %2066 = vmatpush1.msra.mxu0 0.0
    %2067 = vmatprep.subr.mxu0 0.0
    %2068 = vmatpush1.msra.mxu0 0.0
    %2069 = vmatprep.subr.mxu0 0.0
    %2070 = vmatpush1.msra.mxu0 0.0
    %2071 = vmatprep.subr.mxu0 0.0
    %2072 = vmatpush1.msra.mxu0 0.0
    %2073 = vmatprep.subr.mxu0 0.0
    %2074 = vmatpush1.msra.mxu0 0.0
    %2075 = vmatprep.subr.mxu0 0.0
    %2076 = vmatpush1.msra.mxu0 0.0
    %2077 = vmatprep.subr.mxu0 0.0
    %2078 = vmatpush1.msra.mxu0 0.0
    %2079 = vmatprep.subr.mxu0 0.0
    %2080 = vmatpush1.msra.mxu0 0.0
    %2081 = vmatprep.subr.mxu0 0.0
    %2082 = vmatpush1.msra.mxu0 0.0
    %2083 = vmatprep.subr.mxu0 0.0
    %2084 = vmatpush1.msra.mxu0 0.0
    %2085 = vmatprep.subr.mxu0 0.0
    %2086 = vmatpush1.msra.mxu0 0.0
    %2087 = vmatprep.subr.mxu0 0.0
    %2088 = vmatpush1.msra.mxu0 0.0
    %2089 = vmatprep.subr.mxu0 0.0
    %2090 = vmatpush1.msra.mxu0 0.0
    %2091 = vmatprep.subr.mxu0 0.0
    %2092 = vmatpush1.msra.mxu0 0.0
    %2093 = vmatprep.mubr.f32.mxu0 0.0
    %v2094 = vand.u32 %v1612, 4294901760
    %2095 = vmatmul.mubr.f32.gmra.mrb[0].mxu0 %v2094
    %v2096 = vpop.f32.mrb[0].mxu0
    %v2097 = vadd.f32 %v2019, %v2096
    %v2098 = vpop.f32.mrb[0].mxu0
    %2099 = vmatprep.mubr.f32.mxu0 0.0
    %v2100 = vand.u32 %v1615, 4294901760
    %2101 = vmatmul.mubr.f32.gmra.mrb[0].mxu0 %v2100
    %v2102 = vpop.f32.mrb[0].mxu0
    %v2103 = vadd.f32 %v2025, %v2102
    %v2104 = vpop.f32.mrb[0].mxu0
    %2105 = vdwg.mxu0
    %v2106 = vsub.f32 %v29, %v2097
    %v2107 = vsub.f32 %v30, %v2103
    %v2108 = vmul.f32 %v1609, %v1609
    %v2109 = vmul.f32 %v1610, %v1610
    %v2110 = vmul.f32 %v2106, %v2106
    %v2111 = vmul.f32 %v2107, %v2107
    %v2112 = vadd.f32 %v2108, %v2110
    %v2113 = vadd.f32 %v2109, %v2111
    %v2115 = vsel %vm36, %v2112, 0
    %v2118 = vsel %vm36, %v2113, 0
    %2120 = vmatprep.subr.mxu0 0.0
    %v2121 = vand.u32 %v31, 4294901760
    %2122 = vmatpush1.msra.mxu0 %v2121
    %2123 = vmatprep.subr.mxu0 0.0
    %v2124 = vand.u32 %v32, 4294901760
    %2125 = vmatpush1.msra.mxu0 %v2124
    %2126 = vmatprep.subr.mxu0 0.0
    %v2127 = vand.u32 %v33, 4294901760
    %2128 = vmatpush1.msra.mxu0 %v2127
    %2129 = vmatprep.subr.mxu0 0.0
    %v2130 = vand.u32 %v34, 4294901760
    %2131 = vmatpush1.msra.mxu0 %v2130
    %2132 = vmatprep.subr.mxu0 0.0
    %2133 = vmatpush1.msra.mxu0 0.0
    %2134 = vmatprep.subr.mxu0 0.0
    %2135 = vmatpush1.msra.mxu0 0.0
    %2136 = vmatprep.subr.mxu0 0.0
    %2137 = vmatpush1.msra.mxu0 0.0
    %2138 = vmatprep.subr.mxu0 0.0
    %2139 = vmatpush1.msra.mxu0 0.0
    %2140 = vmatprep.subr.mxu0 0.0
    %2141 = vmatpush1.msra.mxu0 0.0
    %2142 = vmatprep.subr.mxu0 0.0
    %2143 = vmatpush1.msra.mxu0 0.0
    %2144 = vmatprep.subr.mxu0 0.0
    %2145 = vmatpush1.msra.mxu0 0.0
    %2146 = vmatprep.subr.mxu0 0.0
    %2147 = vmatpush1.msra.mxu0 0.0
    %2148 = vmatprep.subr.mxu0 0.0
    %2149 = vmatpush1.msra.mxu0 0.0
    %2150 = vmatprep.subr.mxu0 0.0
    %2151 = vmatpush1.msra.mxu0 0.0
    %2152 = vmatprep.subr.mxu0 0.0
    %2153 = vmatpush1.msra.mxu0 0.0
    %2154 = vmatprep.subr.mxu0 0.0
    %2155 = vmatpush1.msra.mxu0 0.0
    %2156 = vmatprep.subr.mxu0 0.0
    %2157 = vmatpush1.msra.mxu0 0.0
    %2158 = vmatprep.subr.mxu0 0.0
    %2159 = vmatpush1.msra.mxu0 0.0
    %2160 = vmatprep.subr.mxu0 0.0
    %2161 = vmatpush1.msra.mxu0 0.0
    %2162 = vmatprep.subr.mxu0 0.0
    %2163 = vmatpush1.msra.mxu0 0.0
    %2164 = vmatprep.subr.mxu0 0.0
    %2165 = vmatpush1.msra.mxu0 0.0
    %2166 = vmatprep.subr.mxu0 0.0
    %2167 = vmatpush1.msra.mxu0 0.0
    %2168 = vmatprep.subr.mxu0 0.0
    %2169 = vmatpush1.msra.mxu0 0.0
    %2170 = vmatprep.subr.mxu0 0.0
    %2171 = vmatpush1.msra.mxu0 0.0
    %2172 = vmatprep.subr.mxu0 0.0
    %2173 = vmatpush1.msra.mxu0 0.0
    %2174 = vmatprep.subr.mxu0 0.0
    %2175 = vmatpush1.msra.mxu0 0.0
    %2176 = vmatprep.subr.mxu0 0.0
    %2177 = vmatpush1.msra.mxu0 0.0
    %2178 = vmatprep.subr.mxu0 0.0
    %2179 = vmatpush1.msra.mxu0 0.0
    %2180 = vmatprep.subr.mxu0 0.0
    %2181 = vmatpush1.msra.mxu0 0.0
    %2182 = vmatprep.subr.mxu0 0.0
    %2183 = vmatpush1.msra.mxu0 0.0
    %2184 = vmatprep.subr.mxu0 0.0
    %2185 = vmatpush1.msra.mxu0 0.0
    %2186 = vmatprep.subr.mxu0 0.0
    %2187 = vmatpush1.msra.mxu0 0.0
    %2188 = vmatprep.mubr.f32.mxu0 0.0
    %v2189 = vand.u32 %v2115, 4294901760
    %v2190 = vsub.f32 %v2115, %v2189
    %v2191 = vand.u32 %v2190, 4294901760
    %v2192 = vsub.f32 %v2190, %v2191
    %v2193 = vand.u32 %v2192, 4294901760
    %2194 = vmatmul.mubr.f32.gmra.mrb[0].mxu0 %v2193
    %v2195 = vpop.f32.mrb[0].mxu0
    %v2196 = vadd.f32 0.0, %v2195
    %v2197 = vpop.f32.mrb[0].mxu0
    %2198 = vmatprep.mubr.f32.mxu0 0.0
    %v2199 = vand.u32 %v2118, 4294901760
    %v2200 = vsub.f32 %v2118, %v2199
    %v2201 = vand.u32 %v2200, 4294901760
    %v2202 = vsub.f32 %v2200, %v2201
    %v2203 = vand.u32 %v2202, 4294901760
    %2204 = vmatmul.mubr.f32.gmra.mrb[0].mxu0 %v2203
    %v2205 = vpop.f32.mrb[0].mxu0
    %v2206 = vadd.f32 0.0, %v2205
    %v2207 = vpop.f32.mrb[0].mxu0
    %2208 = vdwg.mxu0
    %2209 = vmatprep.subr.mxu0 0.0
    %v2210 = vand.u32 %v31, 4294901760
    %v2211 = vsub.f32 %v31, %v2210
    %v2212 = vand.u32 %v2211, 4294901760
    %v2213 = vsub.f32 %v2211, %v2212
    %v2214 = vand.u32 %v2213, 4294901760
    %2215 = vmatpush1.msra.mxu0 %v2214
    %2216 = vmatprep.subr.mxu0 0.0
    %v2217 = vand.u32 %v32, 4294901760
    %v2218 = vsub.f32 %v32, %v2217
    %v2219 = vand.u32 %v2218, 4294901760
    %v2220 = vsub.f32 %v2218, %v2219
    %v2221 = vand.u32 %v2220, 4294901760
    %2222 = vmatpush1.msra.mxu0 %v2221
    %2223 = vmatprep.subr.mxu0 0.0
    %v2224 = vand.u32 %v33, 4294901760
    %v2225 = vsub.f32 %v33, %v2224
    %v2226 = vand.u32 %v2225, 4294901760
    %v2227 = vsub.f32 %v2225, %v2226
    %v2228 = vand.u32 %v2227, 4294901760
    %2229 = vmatpush1.msra.mxu0 %v2228
    %2230 = vmatprep.subr.mxu0 0.0
    %v2231 = vand.u32 %v34, 4294901760
    %v2232 = vsub.f32 %v34, %v2231
    %v2233 = vand.u32 %v2232, 4294901760
    %v2234 = vsub.f32 %v2232, %v2233
    %v2235 = vand.u32 %v2234, 4294901760
    %2236 = vmatpush1.msra.mxu0 %v2235
    %2237 = vmatprep.subr.mxu0 0.0
    %2238 = vmatpush1.msra.mxu0 0.0
    %2239 = vmatprep.subr.mxu0 0.0
    %2240 = vmatpush1.msra.mxu0 0.0
    %2241 = vmatprep.subr.mxu0 0.0
    %2242 = vmatpush1.msra.mxu0 0.0
    %2243 = vmatprep.subr.mxu0 0.0
    %2244 = vmatpush1.msra.mxu0 0.0
    %2245 = vmatprep.subr.mxu0 0.0
    %2246 = vmatpush1.msra.mxu0 0.0
    %2247 = vmatprep.subr.mxu0 0.0
    %2248 = vmatpush1.msra.mxu0 0.0
    %2249 = vmatprep.subr.mxu0 0.0
    %2250 = vmatpush1.msra.mxu0 0.0
    %2251 = vmatprep.subr.mxu0 0.0
    %2252 = vmatpush1.msra.mxu0 0.0
    %2253 = vmatprep.subr.mxu0 0.0
    %2254 = vmatpush1.msra.mxu0 0.0
    %2255 = vmatprep.subr.mxu0 0.0
    %2256 = vmatpush1.msra.mxu0 0.0
    %2257 = vmatprep.subr.mxu0 0.0
    %2258 = vmatpush1.msra.mxu0 0.0
    %2259 = vmatprep.subr.mxu0 0.0
    %2260 = vmatpush1.msra.mxu0 0.0
    %2261 = vmatprep.subr.mxu0 0.0
    %2262 = vmatpush1.msra.mxu0 0.0
    %2263 = vmatprep.subr.mxu0 0.0
    %2264 = vmatpush1.msra.mxu0 0.0
    %2265 = vmatprep.subr.mxu0 0.0
    %2266 = vmatpush1.msra.mxu0 0.0
    %2267 = vmatprep.subr.mxu0 0.0
    %2268 = vmatpush1.msra.mxu0 0.0
    %2269 = vmatprep.subr.mxu0 0.0
    %2270 = vmatpush1.msra.mxu0 0.0
    %2271 = vmatprep.subr.mxu0 0.0
    %2272 = vmatpush1.msra.mxu0 0.0
    %2273 = vmatprep.subr.mxu0 0.0
    %2274 = vmatpush1.msra.mxu0 0.0
    %2275 = vmatprep.subr.mxu0 0.0
    %2276 = vmatpush1.msra.mxu0 0.0
    %2277 = vmatprep.subr.mxu0 0.0
    %2278 = vmatpush1.msra.mxu0 0.0
    %2279 = vmatprep.subr.mxu0 0.0
    %2280 = vmatpush1.msra.mxu0 0.0
    %2281 = vmatprep.subr.mxu0 0.0
    %2282 = vmatpush1.msra.mxu0 0.0
    %2283 = vmatprep.subr.mxu0 0.0
    %2284 = vmatpush1.msra.mxu0 0.0
    %2285 = vmatprep.subr.mxu0 0.0
    %2286 = vmatpush1.msra.mxu0 0.0
    %2287 = vmatprep.subr.mxu0 0.0
    %2288 = vmatpush1.msra.mxu0 0.0
    %2289 = vmatprep.subr.mxu0 0.0
    %2290 = vmatpush1.msra.mxu0 0.0
    %2291 = vmatprep.subr.mxu0 0.0
    %2292 = vmatpush1.msra.mxu0 0.0
    %2293 = vmatprep.mubr.f32.mxu0 0.0
    %v2294 = vand.u32 %v2115, 4294901760
    %2295 = vmatmul.mubr.f32.gmra.mrb[0].mxu0 %v2294
    %v2296 = vpop.f32.mrb[0].mxu0
    %v2297 = vadd.f32 %v2196, %v2296
    %v2298 = vpop.f32.mrb[0].mxu0
    %2299 = vmatprep.mubr.f32.mxu0 0.0
    %v2300 = vand.u32 %v2118, 4294901760
    %2301 = vmatmul.mubr.f32.gmra.mrb[0].mxu0 %v2300
    %v2302 = vpop.f32.mrb[0].mxu0
    %v2303 = vadd.f32 %v2206, %v2302
    %v2304 = vpop.f32.mrb[0].mxu0
    %2305 = vdwg.mxu0
    %2306 = vmatprep.subr.mxu0 0.0
    %v2307 = vand.u32 %v31, 4294901760
    %v2308 = vsub.f32 %v31, %v2307
    %2309 = vmatpush1.msra.mxu0 %v2308
    %2310 = vmatprep.subr.mxu0 0.0
    %v2311 = vand.u32 %v32, 4294901760
    %v2312 = vsub.f32 %v32, %v2311
    %2313 = vmatpush1.msra.mxu0 %v2312
    %2314 = vmatprep.subr.mxu0 0.0
    %v2315 = vand.u32 %v33, 4294901760
    %v2316 = vsub.f32 %v33, %v2315
    %2317 = vmatpush1.msra.mxu0 %v2316
    %2318 = vmatprep.subr.mxu0 0.0
    %v2319 = vand.u32 %v34, 4294901760
    %v2320 = vsub.f32 %v34, %v2319
    %2321 = vmatpush1.msra.mxu0 %v2320
    %2322 = vmatprep.subr.mxu0 0.0
    %2323 = vmatpush1.msra.mxu0 0.0
    %2324 = vmatprep.subr.mxu0 0.0
    %2325 = vmatpush1.msra.mxu0 0.0
    %2326 = vmatprep.subr.mxu0 0.0
    %2327 = vmatpush1.msra.mxu0 0.0
    %2328 = vmatprep.subr.mxu0 0.0
    %2329 = vmatpush1.msra.mxu0 0.0
    %2330 = vmatprep.subr.mxu0 0.0
    %2331 = vmatpush1.msra.mxu0 0.0
    %2332 = vmatprep.subr.mxu0 0.0
    %2333 = vmatpush1.msra.mxu0 0.0
    %2334 = vmatprep.subr.mxu0 0.0
    %2335 = vmatpush1.msra.mxu0 0.0
    %2336 = vmatprep.subr.mxu0 0.0
    %2337 = vmatpush1.msra.mxu0 0.0
    %2338 = vmatprep.subr.mxu0 0.0
    %2339 = vmatpush1.msra.mxu0 0.0
    %2340 = vmatprep.subr.mxu0 0.0
    %2341 = vmatpush1.msra.mxu0 0.0
    %2342 = vmatprep.subr.mxu0 0.0
    %2343 = vmatpush1.msra.mxu0 0.0
    %2344 = vmatprep.subr.mxu0 0.0
    %2345 = vmatpush1.msra.mxu0 0.0
    %2346 = vmatprep.subr.mxu0 0.0
    %2347 = vmatpush1.msra.mxu0 0.0
    %2348 = vmatprep.subr.mxu0 0.0
    %2349 = vmatpush1.msra.mxu0 0.0
    %2350 = vmatprep.subr.mxu0 0.0
    %2351 = vmatpush1.msra.mxu0 0.0
    %2352 = vmatprep.subr.mxu0 0.0
    %2353 = vmatpush1.msra.mxu0 0.0
    %2354 = vmatprep.subr.mxu0 0.0
    %2355 = vmatpush1.msra.mxu0 0.0
    %2356 = vmatprep.subr.mxu0 0.0
    %2357 = vmatpush1.msra.mxu0 0.0
    %2358 = vmatprep.subr.mxu0 0.0
    %2359 = vmatpush1.msra.mxu0 0.0
    %2360 = vmatprep.subr.mxu0 0.0
    %2361 = vmatpush1.msra.mxu0 0.0
    %2362 = vmatprep.subr.mxu0 0.0
    %2363 = vmatpush1.msra.mxu0 0.0
    %2364 = vmatprep.subr.mxu0 0.0
    %2365 = vmatpush1.msra.mxu0 0.0
    %2366 = vmatprep.subr.mxu0 0.0
    %2367 = vmatpush1.msra.mxu0 0.0
    %2368 = vmatprep.subr.mxu0 0.0
    %2369 = vmatpush1.msra.mxu0 0.0
    %2370 = vmatprep.subr.mxu0 0.0
    %2371 = vmatpush1.msra.mxu0 0.0
    %2372 = vmatprep.subr.mxu0 0.0
    %2373 = vmatpush1.msra.mxu0 0.0
    %2374 = vmatprep.subr.mxu0 0.0
    %2375 = vmatpush1.msra.mxu0 0.0
    %2376 = vmatprep.subr.mxu0 0.0
    %2377 = vmatpush1.msra.mxu0 0.0
    %2378 = vmatprep.mubr.f32.mxu0 0.0
    %v2379 = vand.u32 %v2115, 4294901760
    %v2380 = vsub.f32 %v2115, %v2379
    %2381 = vmatmul.mubr.f32.gmra.mrb[0].mxu0 %v2380
    %v2382 = vpop.f32.mrb[0].mxu0
    %v2383 = vadd.f32 %v2297, %v2382
    %v2384 = vpop.f32.mrb[0].mxu0
    %2385 = vmatprep.mubr.f32.mxu0 0.0
    %v2386 = vand.u32 %v2118, 4294901760
    %v2387 = vsub.f32 %v2118, %v2386
    %2388 = vmatmul.mubr.f32.gmra.mrb[0].mxu0 %v2387
    %v2389 = vpop.f32.mrb[0].mxu0
    %v2390 = vadd.f32 %v2303, %v2389
    %v2391 = vpop.f32.mrb[0].mxu0
    %2392 = vdwg.mxu0
    %2393 = vmatprep.subr.mxu0 0.0
    %v2394 = vand.u32 %v31, 4294901760
    %2395 = vmatpush1.msra.mxu0 %v2394
    %2396 = vmatprep.subr.mxu0 0.0
    %v2397 = vand.u32 %v32, 4294901760
    %2398 = vmatpush1.msra.mxu0 %v2397
    %2399 = vmatprep.subr.mxu0 0.0
    %v2400 = vand.u32 %v33, 4294901760
    %2401 = vmatpush1.msra.mxu0 %v2400
    %2402 = vmatprep.subr.mxu0 0.0
    %v2403 = vand.u32 %v34, 4294901760
    %2404 = vmatpush1.msra.mxu0 %v2403
    %2405 = vmatprep.subr.mxu0 0.0
    %2406 = vmatpush1.msra.mxu0 0.0
    %2407 = vmatprep.subr.mxu0 0.0
    %2408 = vmatpush1.msra.mxu0 0.0
    %2409 = vmatprep.subr.mxu0 0.0
    %2410 = vmatpush1.msra.mxu0 0.0
    %2411 = vmatprep.subr.mxu0 0.0
    %2412 = vmatpush1.msra.mxu0 0.0
    %2413 = vmatprep.subr.mxu0 0.0
    %2414 = vmatpush1.msra.mxu0 0.0
    %2415 = vmatprep.subr.mxu0 0.0
    %2416 = vmatpush1.msra.mxu0 0.0
    %2417 = vmatprep.subr.mxu0 0.0
    %2418 = vmatpush1.msra.mxu0 0.0
    %2419 = vmatprep.subr.mxu0 0.0
    %2420 = vmatpush1.msra.mxu0 0.0
    %2421 = vmatprep.subr.mxu0 0.0
    %2422 = vmatpush1.msra.mxu0 0.0
    %2423 = vmatprep.subr.mxu0 0.0
    %2424 = vmatpush1.msra.mxu0 0.0
    %2425 = vmatprep.subr.mxu0 0.0
    %2426 = vmatpush1.msra.mxu0 0.0
    %2427 = vmatprep.subr.mxu0 0.0
    %2428 = vmatpush1.msra.mxu0 0.0
    %2429 = vmatprep.subr.mxu0 0.0
    %2430 = vmatpush1.msra.mxu0 0.0
    %2431 = vmatprep.subr.mxu0 0.0
    %2432 = vmatpush1.msra.mxu0 0.0
    %2433 = vmatprep.subr.mxu0 0.0
    %2434 = vmatpush1.msra.mxu0 0.0
    %2435 = vmatprep.subr.mxu0 0.0
    %2436 = vmatpush1.msra.mxu0 0.0
    %2437 = vmatprep.subr.mxu0 0.0
    %2438 = vmatpush1.msra.mxu0 0.0
    %2439 = vmatprep.subr.mxu0 0.0
    %2440 = vmatpush1.msra.mxu0 0.0
    %2441 = vmatprep.subr.mxu0 0.0
    %2442 = vmatpush1.msra.mxu0 0.0
    %2443 = vmatprep.subr.mxu0 0.0
    %2444 = vmatpush1.msra.mxu0 0.0
    %2445 = vmatprep.subr.mxu0 0.0
    %2446 = vmatpush1.msra.mxu0 0.0
    %2447 = vmatprep.subr.mxu0 0.0
    %2448 = vmatpush1.msra.mxu0 0.0
    %2449 = vmatprep.subr.mxu0 0.0
    %2450 = vmatpush1.msra.mxu0 0.0
    %2451 = vmatprep.subr.mxu0 0.0
    %2452 = vmatpush1.msra.mxu0 0.0
    %2453 = vmatprep.subr.mxu0 0.0
    %2454 = vmatpush1.msra.mxu0 0.0
    %2455 = vmatprep.subr.mxu0 0.0
    %2456 = vmatpush1.msra.mxu0 0.0
    %2457 = vmatprep.subr.mxu0 0.0
    %2458 = vmatpush1.msra.mxu0 0.0
    %2459 = vmatprep.subr.mxu0 0.0
    %2460 = vmatpush1.msra.mxu0 0.0
    %2461 = vmatprep.mubr.f32.mxu0 0.0
    %v2462 = vand.u32 %v2115, 4294901760
    %v2463 = vsub.f32 %v2115, %v2462
    %v2464 = vand.u32 %v2463, 4294901760
    %2465 = vmatmul.mubr.f32.gmra.mrb[0].mxu0 %v2464
    %v2466 = vpop.f32.mrb[0].mxu0
    %v2467 = vadd.f32 %v2383, %v2466
    %v2468 = vpop.f32.mrb[0].mxu0
    %2469 = vmatprep.mubr.f32.mxu0 0.0
    %v2470 = vand.u32 %v2118, 4294901760
    %v2471 = vsub.f32 %v2118, %v2470
    %v2472 = vand.u32 %v2471, 4294901760
    %2473 = vmatmul.mubr.f32.gmra.mrb[0].mxu0 %v2472
    %v2474 = vpop.f32.mrb[0].mxu0
    %v2475 = vadd.f32 %v2390, %v2474
    %v2476 = vpop.f32.mrb[0].mxu0
    %2477 = vdwg.mxu0
    %2478 = vmatprep.subr.mxu0 0.0
    %v2479 = vand.u32 %v31, 4294901760
    %v2480 = vsub.f32 %v31, %v2479
    %v2481 = vand.u32 %v2480, 4294901760
    %2482 = vmatpush1.msra.mxu0 %v2481
    %2483 = vmatprep.subr.mxu0 0.0
    %v2484 = vand.u32 %v32, 4294901760
    %v2485 = vsub.f32 %v32, %v2484
    %v2486 = vand.u32 %v2485, 4294901760
    %2487 = vmatpush1.msra.mxu0 %v2486
    %2488 = vmatprep.subr.mxu0 0.0
    %v2489 = vand.u32 %v33, 4294901760
    %v2490 = vsub.f32 %v33, %v2489
    %v2491 = vand.u32 %v2490, 4294901760
    %2492 = vmatpush1.msra.mxu0 %v2491
    %2493 = vmatprep.subr.mxu0 0.0
    %v2494 = vand.u32 %v34, 4294901760
    %v2495 = vsub.f32 %v34, %v2494
    %v2496 = vand.u32 %v2495, 4294901760
    %2497 = vmatpush1.msra.mxu0 %v2496
    %2498 = vmatprep.subr.mxu0 0.0
    %2499 = vmatpush1.msra.mxu0 0.0
    %2500 = vmatprep.subr.mxu0 0.0
    %2501 = vmatpush1.msra.mxu0 0.0
    %2502 = vmatprep.subr.mxu0 0.0
    %2503 = vmatpush1.msra.mxu0 0.0
    %2504 = vmatprep.subr.mxu0 0.0
    %2505 = vmatpush1.msra.mxu0 0.0
    %2506 = vmatprep.subr.mxu0 0.0
    %2507 = vmatpush1.msra.mxu0 0.0
    %2508 = vmatprep.subr.mxu0 0.0
    %2509 = vmatpush1.msra.mxu0 0.0
    %2510 = vmatprep.subr.mxu0 0.0
    %2511 = vmatpush1.msra.mxu0 0.0
    %2512 = vmatprep.subr.mxu0 0.0
    %2513 = vmatpush1.msra.mxu0 0.0
    %2514 = vmatprep.subr.mxu0 0.0
    %2515 = vmatpush1.msra.mxu0 0.0
    %2516 = vmatprep.subr.mxu0 0.0
    %2517 = vmatpush1.msra.mxu0 0.0
    %2518 = vmatprep.subr.mxu0 0.0
    %2519 = vmatpush1.msra.mxu0 0.0
    %2520 = vmatprep.subr.mxu0 0.0
    %2521 = vmatpush1.msra.mxu0 0.0
    %2522 = vmatprep.subr.mxu0 0.0
    %2523 = vmatpush1.msra.mxu0 0.0
    %2524 = vmatprep.subr.mxu0 0.0
    %2525 = vmatpush1.msra.mxu0 0.0
    %2526 = vmatprep.subr.mxu0 0.0
    %2527 = vmatpush1.msra.mxu0 0.0
    %2528 = vmatprep.subr.mxu0 0.0
    %2529 = vmatpush1.msra.mxu0 0.0
    %2530 = vmatprep.subr.mxu0 0.0
    %2531 = vmatpush1.msra.mxu0 0.0
    %2532 = vmatprep.subr.mxu0 0.0
    %2533 = vmatpush1.msra.mxu0 0.0
    %2534 = vmatprep.subr.mxu0 0.0
    %2535 = vmatpush1.msra.mxu0 0.0
    %2536 = vmatprep.subr.mxu0 0.0
    %2537 = vmatpush1.msra.mxu0 0.0
    %2538 = vmatprep.subr.mxu0 0.0
    %2539 = vmatpush1.msra.mxu0 0.0
    %2540 = vmatprep.subr.mxu0 0.0
    %2541 = vmatpush1.msra.mxu0 0.0
    %2542 = vmatprep.subr.mxu0 0.0
    %2543 = vmatpush1.msra.mxu0 0.0
    %2544 = vmatprep.subr.mxu0 0.0
    %2545 = vmatpush1.msra.mxu0 0.0
    %2546 = vmatprep.subr.mxu0 0.0
    %2547 = vmatpush1.msra.mxu0 0.0
    %2548 = vmatprep.subr.mxu0 0.0
    %2549 = vmatpush1.msra.mxu0 0.0
    %2550 = vmatprep.subr.mxu0 0.0
    %2551 = vmatpush1.msra.mxu0 0.0
    %2552 = vmatprep.subr.mxu0 0.0
    %2553 = vmatpush1.msra.mxu0 0.0
    %2554 = vmatprep.mubr.f32.mxu0 0.0
    %v2555 = vand.u32 %v2115, 4294901760
    %2556 = vmatmul.mubr.f32.gmra.mrb[0].mxu0 %v2555
    %v2557 = vpop.f32.mrb[0].mxu0
    %v2558 = vadd.f32 %v2467, %v2557
    %v2559 = vpop.f32.mrb[0].mxu0
    %2560 = vmatprep.mubr.f32.mxu0 0.0
    %v2561 = vand.u32 %v2118, 4294901760
    %2562 = vmatmul.mubr.f32.gmra.mrb[0].mxu0 %v2561
    %v2563 = vpop.f32.mrb[0].mxu0
    %v2564 = vadd.f32 %v2475, %v2563
    %v2565 = vpop.f32.mrb[0].mxu0
    %2566 = vdwg.mxu0
    %2567 = vmatprep.subr.mxu0 0.0
    %v2568 = vand.u32 %v31, 4294901760
    %2569 = vmatpush1.msra.mxu0 %v2568
    %2570 = vmatprep.subr.mxu0 0.0
    %v2571 = vand.u32 %v32, 4294901760
    %2572 = vmatpush1.msra.mxu0 %v2571
    %2573 = vmatprep.subr.mxu0 0.0
    %v2574 = vand.u32 %v33, 4294901760
    %2575 = vmatpush1.msra.mxu0 %v2574
    %2576 = vmatprep.subr.mxu0 0.0
    %v2577 = vand.u32 %v34, 4294901760
    %2578 = vmatpush1.msra.mxu0 %v2577
    %2579 = vmatprep.subr.mxu0 0.0
    %2580 = vmatpush1.msra.mxu0 0.0
    %2581 = vmatprep.subr.mxu0 0.0
    %2582 = vmatpush1.msra.mxu0 0.0
    %2583 = vmatprep.subr.mxu0 0.0
    %2584 = vmatpush1.msra.mxu0 0.0
    %2585 = vmatprep.subr.mxu0 0.0
    %2586 = vmatpush1.msra.mxu0 0.0
    %2587 = vmatprep.subr.mxu0 0.0
    %2588 = vmatpush1.msra.mxu0 0.0
    %2589 = vmatprep.subr.mxu0 0.0
    %2590 = vmatpush1.msra.mxu0 0.0
    %2591 = vmatprep.subr.mxu0 0.0
    %2592 = vmatpush1.msra.mxu0 0.0
    %2593 = vmatprep.subr.mxu0 0.0
    %2594 = vmatpush1.msra.mxu0 0.0
    %2595 = vmatprep.subr.mxu0 0.0
    %2596 = vmatpush1.msra.mxu0 0.0
    %2597 = vmatprep.subr.mxu0 0.0
    %2598 = vmatpush1.msra.mxu0 0.0
    %2599 = vmatprep.subr.mxu0 0.0
    %2600 = vmatpush1.msra.mxu0 0.0
    %2601 = vmatprep.subr.mxu0 0.0
    %2602 = vmatpush1.msra.mxu0 0.0
    %2603 = vmatprep.subr.mxu0 0.0
    %2604 = vmatpush1.msra.mxu0 0.0
    %2605 = vmatprep.subr.mxu0 0.0
    %2606 = vmatpush1.msra.mxu0 0.0
    %2607 = vmatprep.subr.mxu0 0.0
    %2608 = vmatpush1.msra.mxu0 0.0
    %2609 = vmatprep.subr.mxu0 0.0
    %2610 = vmatpush1.msra.mxu0 0.0
    %2611 = vmatprep.subr.mxu0 0.0
    %2612 = vmatpush1.msra.mxu0 0.0
    %2613 = vmatprep.subr.mxu0 0.0
    %2614 = vmatpush1.msra.mxu0 0.0
    %2615 = vmatprep.subr.mxu0 0.0
    %2616 = vmatpush1.msra.mxu0 0.0
    %2617 = vmatprep.subr.mxu0 0.0
    %2618 = vmatpush1.msra.mxu0 0.0
    %2619 = vmatprep.subr.mxu0 0.0
    %2620 = vmatpush1.msra.mxu0 0.0
    %2621 = vmatprep.subr.mxu0 0.0
    %2622 = vmatpush1.msra.mxu0 0.0
    %2623 = vmatprep.subr.mxu0 0.0
    %2624 = vmatpush1.msra.mxu0 0.0
    %2625 = vmatprep.subr.mxu0 0.0
    %2626 = vmatpush1.msra.mxu0 0.0
    %2627 = vmatprep.subr.mxu0 0.0
    %2628 = vmatpush1.msra.mxu0 0.0
    %2629 = vmatprep.subr.mxu0 0.0
    %2630 = vmatpush1.msra.mxu0 0.0
    %2631 = vmatprep.subr.mxu0 0.0
    %2632 = vmatpush1.msra.mxu0 0.0
    %2633 = vmatprep.subr.mxu0 0.0
    %2634 = vmatpush1.msra.mxu0 0.0
    %2635 = vmatprep.mubr.f32.mxu0 0.0
    %v2636 = vand.u32 %v2115, 4294901760
    %2637 = vmatmul.mubr.f32.gmra.mrb[0].mxu0 %v2636
    %v2638 = vpop.f32.mrb[0].mxu0
    %v2639 = vadd.f32 %v2558, %v2638
    %v2640 = vpop.f32.mrb[0].mxu0
    %2641 = vmatprep.mubr.f32.mxu0 0.0
    %v2642 = vand.u32 %v2118, 4294901760
    %2643 = vmatmul.mubr.f32.gmra.mrb[0].mxu0 %v2642
    %v2644 = vpop.f32.mrb[0].mxu0
    %v2645 = vadd.f32 %v2564, %v2644
    %v2646 = vpop.f32.mrb[0].mxu0
    %2647 = vdwg.mxu0
    %v2648 = vmul.f32 %v2639, 0.14285715
    %v2649 = vmul.f32 %v2645, 0.14285715
    %v2650 = vadd.f32 %v2648, 1e-05
    %v2651 = vadd.f32 %v2649, 1e-05
    %v2652 = vrsqrt.pop %v2650
    %v2653 = vrsqrt.pop %v2651
    %v2655 = vsel %vm1109, %v2652, 0
    %v2658 = vsel %vm1109, %v2653, 0
    %2660 = vmatprep.subr.mxu0 0.0
    %v2661 = vand.u32 %v1118, 4294901760
    %2662 = vmatpush1.msra.mxu0 %v2661
    %2663 = vmatprep.subr.mxu0 0.0
    %2664 = vmatpush1.msra.mxu0 0.0
    %2665 = vmatprep.subr.mxu0 0.0
    %2666 = vmatpush1.msra.mxu0 0.0
    %2667 = vmatprep.subr.mxu0 0.0
    %2668 = vmatpush1.msra.mxu0 0.0
    %2669 = vmatprep.subr.mxu0 0.0
    %2670 = vmatpush1.msra.mxu0 0.0
    %2671 = vmatprep.subr.mxu0 0.0
    %2672 = vmatpush1.msra.mxu0 0.0
    %2673 = vmatprep.subr.mxu0 0.0
    %2674 = vmatpush1.msra.mxu0 0.0
    %2675 = vmatprep.subr.mxu0 0.0
    %2676 = vmatpush1.msra.mxu0 0.0
    %2677 = vmatprep.subr.mxu0 0.0
    %2678 = vmatpush1.msra.mxu0 0.0
    %2679 = vmatprep.subr.mxu0 0.0
    %2680 = vmatpush1.msra.mxu0 0.0
    %2681 = vmatprep.subr.mxu0 0.0
    %2682 = vmatpush1.msra.mxu0 0.0
    %2683 = vmatprep.subr.mxu0 0.0
    %2684 = vmatpush1.msra.mxu0 0.0
    %2685 = vmatprep.subr.mxu0 0.0
    %2686 = vmatpush1.msra.mxu0 0.0
    %2687 = vmatprep.subr.mxu0 0.0
    %2688 = vmatpush1.msra.mxu0 0.0
    %2689 = vmatprep.subr.mxu0 0.0
    %2690 = vmatpush1.msra.mxu0 0.0
    %2691 = vmatprep.subr.mxu0 0.0
    %2692 = vmatpush1.msra.mxu0 0.0
    %2693 = vmatprep.subr.mxu0 0.0
    %2694 = vmatpush1.msra.mxu0 0.0
    %2695 = vmatprep.subr.mxu0 0.0
    %2696 = vmatpush1.msra.mxu0 0.0
    %2697 = vmatprep.subr.mxu0 0.0
    %2698 = vmatpush1.msra.mxu0 0.0
    %2699 = vmatprep.subr.mxu0 0.0
    %2700 = vmatpush1.msra.mxu0 0.0
    %2701 = vmatprep.subr.mxu0 0.0
    %2702 = vmatpush1.msra.mxu0 0.0
    %2703 = vmatprep.subr.mxu0 0.0
    %2704 = vmatpush1.msra.mxu0 0.0
    %2705 = vmatprep.subr.mxu0 0.0
    %2706 = vmatpush1.msra.mxu0 0.0
    %2707 = vmatprep.subr.mxu0 0.0
    %2708 = vmatpush1.msra.mxu0 0.0
    %2709 = vmatprep.subr.mxu0 0.0
    %2710 = vmatpush1.msra.mxu0 0.0
    %2711 = vmatprep.subr.mxu0 0.0
    %2712 = vmatpush1.msra.mxu0 0.0
    %2713 = vmatprep.subr.mxu0 0.0
    %2714 = vmatpush1.msra.mxu0 0.0
    %2715 = vmatprep.subr.mxu0 0.0
    %2716 = vmatpush1.msra.mxu0 0.0
    %2717 = vmatprep.subr.mxu0 0.0
    %2718 = vmatpush1.msra.mxu0 0.0
    %2719 = vmatprep.subr.mxu0 0.0
    %2720 = vmatpush1.msra.mxu0 0.0
    %2721 = vmatprep.subr.mxu0 0.0
    %2722 = vmatpush1.msra.mxu0 0.0
    %2723 = vmatprep.subr.mxu0 0.0
    %2724 = vmatpush1.msra.mxu0 0.0
    %2725 = vmatprep.mubr.f32.mxu0 0.0
    %v2726 = vand.u32 %v2655, 4294901760
    %v2727 = vsub.f32 %v2655, %v2726
    %v2728 = vand.u32 %v2727, 4294901760
    %v2729 = vsub.f32 %v2727, %v2728
    %v2730 = vand.u32 %v2729, 4294901760
    %2731 = vmatmul.mubr.f32.gmra.mrb[0].mxu0 %v2730
    %v2732 = vpop.f32.mrb[0].mxu0
    %v2733 = vadd.f32 0.0, %v2732
    %v2734 = vpop.f32.mrb[0].mxu0
    %2735 = vmatprep.mubr.f32.mxu0 0.0
    %v2736 = vand.u32 %v2658, 4294901760
    %v2737 = vsub.f32 %v2658, %v2736
    %v2738 = vand.u32 %v2737, 4294901760
    %v2739 = vsub.f32 %v2737, %v2738
    %v2740 = vand.u32 %v2739, 4294901760
    %2741 = vmatmul.mubr.f32.gmra.mrb[0].mxu0 %v2740
    %v2742 = vpop.f32.mrb[0].mxu0
    %v2743 = vadd.f32 0.0, %v2742
    %v2744 = vpop.f32.mrb[0].mxu0
    %2745 = vdwg.mxu0
    %2746 = vmatprep.subr.mxu0 0.0
    %v2747 = vand.u32 %v1118, 4294901760
    %v2748 = vsub.f32 %v1118, %v2747
    %v2749 = vand.u32 %v2748, 4294901760
    %v2750 = vsub.f32 %v2748, %v2749
    %v2751 = vand.u32 %v2750, 4294901760
    %2752 = vmatpush1.msra.mxu0 %v2751
    %2753 = vmatprep.subr.mxu0 0.0
    %2754 = vmatpush1.msra.mxu0 0.0
    %2755 = vmatprep.subr.mxu0 0.0
    %2756 = vmatpush1.msra.mxu0 0.0
    %2757 = vmatprep.subr.mxu0 0.0
    %2758 = vmatpush1.msra.mxu0 0.0
    %2759 = vmatprep.subr.mxu0 0.0
    %2760 = vmatpush1.msra.mxu0 0.0
    %2761 = vmatprep.subr.mxu0 0.0
    %2762 = vmatpush1.msra.mxu0 0.0
    %2763 = vmatprep.subr.mxu0 0.0
    %2764 = vmatpush1.msra.mxu0 0.0
    %2765 = vmatprep.subr.mxu0 0.0
    %2766 = vmatpush1.msra.mxu0 0.0
    %2767 = vmatprep.subr.mxu0 0.0
    %2768 = vmatpush1.msra.mxu0 0.0
    %2769 = vmatprep.subr.mxu0 0.0
    %2770 = vmatpush1.msra.mxu0 0.0
    %2771 = vmatprep.subr.mxu0 0.0
    %2772 = vmatpush1.msra.mxu0 0.0
    %2773 = vmatprep.subr.mxu0 0.0
    %2774 = vmatpush1.msra.mxu0 0.0
    %2775 = vmatprep.subr.mxu0 0.0
    %2776 = vmatpush1.msra.mxu0 0.0
    %2777 = vmatprep.subr.mxu0 0.0
    %2778 = vmatpush1.msra.mxu0 0.0
    %2779 = vmatprep.subr.mxu0 0.0
    %2780 = vmatpush1.msra.mxu0 0.0
    %2781 = vmatprep.subr.mxu0 0.0
    %2782 = vmatpush1.msra.mxu0 0.0
    %2783 = vmatprep.subr.mxu0 0.0
    %2784 = vmatpush1.msra.mxu0 0.0
    %2785 = vmatprep.subr.mxu0 0.0
    %2786 = vmatpush1.msra.mxu0 0.0
    %2787 = vmatprep.subr.mxu0 0.0
    %2788 = vmatpush1.msra.mxu0 0.0
    %2789 = vmatprep.subr.mxu0 0.0
    %2790 = vmatpush1.msra.mxu0 0.0
    %2791 = vmatprep.subr.mxu0 0.0
    %2792 = vmatpush1.msra.mxu0 0.0
    %2793 = vmatprep.subr.mxu0 0.0
    %2794 = vmatpush1.msra.mxu0 0.0
    %2795 = vmatprep.subr.mxu0 0.0
    %2796 = vmatpush1.msra.mxu0 0.0
    %2797 = vmatprep.subr.mxu0 0.0
    %2798 = vmatpush1.msra.mxu0 0.0
    %2799 = vmatprep.subr.mxu0 0.0
    %2800 = vmatpush1.msra.mxu0 0.0
    %2801 = vmatprep.subr.mxu0 0.0
    %2802 = vmatpush1.msra.mxu0 0.0
    %2803 = vmatprep.subr.mxu0 0.0
    %2804 = vmatpush1.msra.mxu0 0.0
    %2805 = vmatprep.subr.mxu0 0.0
    %2806 = vmatpush1.msra.mxu0 0.0
    %2807 = vmatprep.subr.mxu0 0.0
    %2808 = vmatpush1.msra.mxu0 0.0
    %2809 = vmatprep.subr.mxu0 0.0
    %2810 = vmatpush1.msra.mxu0 0.0
    %2811 = vmatprep.subr.mxu0 0.0
    %2812 = vmatpush1.msra.mxu0 0.0
    %2813 = vmatprep.subr.mxu0 0.0
    %2814 = vmatpush1.msra.mxu0 0.0
    %2815 = vmatprep.mubr.f32.mxu0 0.0
    %v2816 = vand.u32 %v2655, 4294901760
    %2817 = vmatmul.mubr.f32.gmra.mrb[0].mxu0 %v2816
    %v2818 = vpop.f32.mrb[0].mxu0
    %v2819 = vadd.f32 %v2733, %v2818
    %v2820 = vpop.f32.mrb[0].mxu0
    %2821 = vmatprep.mubr.f32.mxu0 0.0
    %v2822 = vand.u32 %v2658, 4294901760
    %2823 = vmatmul.mubr.f32.gmra.mrb[0].mxu0 %v2822
    %v2824 = vpop.f32.mrb[0].mxu0
    %v2825 = vadd.f32 %v2743, %v2824
    %v2826 = vpop.f32.mrb[0].mxu0
    %2827 = vdwg.mxu0
    %2828 = vmatprep.subr.mxu0 0.0
    %v2829 = vand.u32 %v1118, 4294901760
    %v2830 = vsub.f32 %v1118, %v2829
    %2831 = vmatpush1.msra.mxu0 %v2830
    %2832 = vmatprep.subr.mxu0 0.0
    %2833 = vmatpush1.msra.mxu0 0.0
    %2834 = vmatprep.subr.mxu0 0.0
    %2835 = vmatpush1.msra.mxu0 0.0
    %2836 = vmatprep.subr.mxu0 0.0
    %2837 = vmatpush1.msra.mxu0 0.0
    %2838 = vmatprep.subr.mxu0 0.0
    %2839 = vmatpush1.msra.mxu0 0.0
    %2840 = vmatprep.subr.mxu0 0.0
    %2841 = vmatpush1.msra.mxu0 0.0
    %2842 = vmatprep.subr.mxu0 0.0
    %2843 = vmatpush1.msra.mxu0 0.0
    %2844 = vmatprep.subr.mxu0 0.0
    %2845 = vmatpush1.msra.mxu0 0.0
    %2846 = vmatprep.subr.mxu0 0.0
    %2847 = vmatpush1.msra.mxu0 0.0
    %2848 = vmatprep.subr.mxu0 0.0
    %2849 = vmatpush1.msra.mxu0 0.0
    %2850 = vmatprep.subr.mxu0 0.0
    %2851 = vmatpush1.msra.mxu0 0.0
    %2852 = vmatprep.subr.mxu0 0.0
    %2853 = vmatpush1.msra.mxu0 0.0
    %2854 = vmatprep.subr.mxu0 0.0
    %2855 = vmatpush1.msra.mxu0 0.0
    %2856 = vmatprep.subr.mxu0 0.0
    %2857 = vmatpush1.msra.mxu0 0.0
    %2858 = vmatprep.subr.mxu0 0.0
    %2859 = vmatpush1.msra.mxu0 0.0
    %2860 = vmatprep.subr.mxu0 0.0
    %2861 = vmatpush1.msra.mxu0 0.0
    %2862 = vmatprep.subr.mxu0 0.0
    %2863 = vmatpush1.msra.mxu0 0.0
    %2864 = vmatprep.subr.mxu0 0.0
    %2865 = vmatpush1.msra.mxu0 0.0
    %2866 = vmatprep.subr.mxu0 0.0
    %2867 = vmatpush1.msra.mxu0 0.0
    %2868 = vmatprep.subr.mxu0 0.0
    %2869 = vmatpush1.msra.mxu0 0.0
    %2870 = vmatprep.subr.mxu0 0.0
    %2871 = vmatpush1.msra.mxu0 0.0
    %2872 = vmatprep.subr.mxu0 0.0
    %2873 = vmatpush1.msra.mxu0 0.0
    %2874 = vmatprep.subr.mxu0 0.0
    %2875 = vmatpush1.msra.mxu0 0.0
    %2876 = vmatprep.subr.mxu0 0.0
    %2877 = vmatpush1.msra.mxu0 0.0
    %2878 = vmatprep.subr.mxu0 0.0
    %2879 = vmatpush1.msra.mxu0 0.0
    %2880 = vmatprep.subr.mxu0 0.0
    %2881 = vmatpush1.msra.mxu0 0.0
    %2882 = vmatprep.subr.mxu0 0.0
    %2883 = vmatpush1.msra.mxu0 0.0
    %2884 = vmatprep.subr.mxu0 0.0
    %2885 = vmatpush1.msra.mxu0 0.0
    %2886 = vmatprep.subr.mxu0 0.0
    %2887 = vmatpush1.msra.mxu0 0.0
    %2888 = vmatprep.subr.mxu0 0.0
    %2889 = vmatpush1.msra.mxu0 0.0
    %2890 = vmatprep.subr.mxu0 0.0
    %2891 = vmatpush1.msra.mxu0 0.0
    %2892 = vmatprep.subr.mxu0 0.0
    %2893 = vmatpush1.msra.mxu0 0.0
    %2894 = vmatprep.mubr.f32.mxu0 0.0
    %v2895 = vand.u32 %v2655, 4294901760
    %v2896 = vsub.f32 %v2655, %v2895
    %2897 = vmatmul.mubr.f32.gmra.mrb[0].mxu0 %v2896
    %v2898 = vpop.f32.mrb[0].mxu0
    %v2899 = vadd.f32 %v2819, %v2898
    %v2900 = vpop.f32.mrb[0].mxu0
    %2901 = vmatprep.mubr.f32.mxu0 0.0
    %v2902 = vand.u32 %v2658, 4294901760
    %v2903 = vsub.f32 %v2658, %v2902
    %2904 = vmatmul.mubr.f32.gmra.mrb[0].mxu0 %v2903
    %v2905 = vpop.f32.mrb[0].mxu0
    %v2906 = vadd.f32 %v2825, %v2905
    %v2907 = vpop.f32.mrb[0].mxu0
    %2908 = vdwg.mxu0
    %2909 = vmatprep.subr.mxu0 0.0
    %v2910 = vand.u32 %v1118, 4294901760
    %2911 = vmatpush1.msra.mxu0 %v2910
    %2912 = vmatprep.subr.mxu0 0.0
    %2913 = vmatpush1.msra.mxu0 0.0
    %2914 = vmatprep.subr.mxu0 0.0
    %2915 = vmatpush1.msra.mxu0 0.0
    %2916 = vmatprep.subr.mxu0 0.0
    %2917 = vmatpush1.msra.mxu0 0.0
    %2918 = vmatprep.subr.mxu0 0.0
    %2919 = vmatpush1.msra.mxu0 0.0
    %2920 = vmatprep.subr.mxu0 0.0
    %2921 = vmatpush1.msra.mxu0 0.0
    %2922 = vmatprep.subr.mxu0 0.0
    %2923 = vmatpush1.msra.mxu0 0.0
    %2924 = vmatprep.subr.mxu0 0.0
    %2925 = vmatpush1.msra.mxu0 0.0
    %2926 = vmatprep.subr.mxu0 0.0
    %2927 = vmatpush1.msra.mxu0 0.0
    %2928 = vmatprep.subr.mxu0 0.0
    %2929 = vmatpush1.msra.mxu0 0.0
    %2930 = vmatprep.subr.mxu0 0.0
    %2931 = vmatpush1.msra.mxu0 0.0
    %2932 = vmatprep.subr.mxu0 0.0
    %2933 = vmatpush1.msra.mxu0 0.0
    %2934 = vmatprep.subr.mxu0 0.0
    %2935 = vmatpush1.msra.mxu0 0.0
    %2936 = vmatprep.subr.mxu0 0.0
    %2937 = vmatpush1.msra.mxu0 0.0
    %2938 = vmatprep.subr.mxu0 0.0
    %2939 = vmatpush1.msra.mxu0 0.0
    %2940 = vmatprep.subr.mxu0 0.0
    %2941 = vmatpush1.msra.mxu0 0.0
    %2942 = vmatprep.subr.mxu0 0.0
    %2943 = vmatpush1.msra.mxu0 0.0
    %2944 = vmatprep.subr.mxu0 0.0
    %2945 = vmatpush1.msra.mxu0 0.0
    %2946 = vmatprep.subr.mxu0 0.0
    %2947 = vmatpush1.msra.mxu0 0.0
    %2948 = vmatprep.subr.mxu0 0.0
    %2949 = vmatpush1.msra.mxu0 0.0
    %2950 = vmatprep.subr.mxu0 0.0
    %2951 = vmatpush1.msra.mxu0 0.0
    %2952 = vmatprep.subr.mxu0 0.0
    %2953 = vmatpush1.msra.mxu0 0.0
    %2954 = vmatprep.subr.mxu0 0.0
    %2955 = vmatpush1.msra.mxu0 0.0
    %2956 = vmatprep.subr.mxu0 0.0
    %2957 = vmatpush1.msra.mxu0 0.0
    %2958 = vmatprep.subr.mxu0 0.0
    %2959 = vmatpush1.msra.mxu0 0.0
    %2960 = vmatprep.subr.mxu0 0.0
    %2961 = vmatpush1.msra.mxu0 0.0
    %2962 = vmatprep.subr.mxu0 0.0
    %2963 = vmatpush1.msra.mxu0 0.0
    %2964 = vmatprep.subr.mxu0 0.0
    %2965 = vmatpush1.msra.mxu0 0.0
    %2966 = vmatprep.subr.mxu0 0.0
    %2967 = vmatpush1.msra.mxu0 0.0
    %2968 = vmatprep.subr.mxu0 0.0
    %2969 = vmatpush1.msra.mxu0 0.0
    %2970 = vmatprep.subr.mxu0 0.0
    %2971 = vmatpush1.msra.mxu0 0.0
    %2972 = vmatprep.subr.mxu0 0.0
    %2973 = vmatpush1.msra.mxu0 0.0
    %2974 = vmatprep.mubr.f32.mxu0 0.0
    %v2975 = vand.u32 %v2655, 4294901760
    %v2976 = vsub.f32 %v2655, %v2975
    %v2977 = vand.u32 %v2976, 4294901760
    %2978 = vmatmul.mubr.f32.gmra.mrb[0].mxu0 %v2977
    %v2979 = vpop.f32.mrb[0].mxu0
    %v2980 = vadd.f32 %v2899, %v2979
    %v2981 = vpop.f32.mrb[0].mxu0
    %2982 = vmatprep.mubr.f32.mxu0 0.0
    %v2983 = vand.u32 %v2658, 4294901760
    %v2984 = vsub.f32 %v2658, %v2983
    %v2985 = vand.u32 %v2984, 4294901760
    %2986 = vmatmul.mubr.f32.gmra.mrb[0].mxu0 %v2985
    %v2987 = vpop.f32.mrb[0].mxu0
    %v2988 = vadd.f32 %v2906, %v2987
    %v2989 = vpop.f32.mrb[0].mxu0
    %2990 = vdwg.mxu0
    %2991 = vmatprep.subr.mxu0 0.0
    %v2992 = vand.u32 %v1118, 4294901760
    %v2993 = vsub.f32 %v1118, %v2992
    %v2994 = vand.u32 %v2993, 4294901760
    %2995 = vmatpush1.msra.mxu0 %v2994
    %2996 = vmatprep.subr.mxu0 0.0
    %2997 = vmatpush1.msra.mxu0 0.0
    %2998 = vmatprep.subr.mxu0 0.0
    %2999 = vmatpush1.msra.mxu0 0.0
    %3000 = vmatprep.subr.mxu0 0.0
    %3001 = vmatpush1.msra.mxu0 0.0
    %3002 = vmatprep.subr.mxu0 0.0
    %3003 = vmatpush1.msra.mxu0 0.0
    %3004 = vmatprep.subr.mxu0 0.0
    %3005 = vmatpush1.msra.mxu0 0.0
    %3006 = vmatprep.subr.mxu0 0.0
    %3007 = vmatpush1.msra.mxu0 0.0
    %3008 = vmatprep.subr.mxu0 0.0
    %3009 = vmatpush1.msra.mxu0 0.0
    %3010 = vmatprep.subr.mxu0 0.0
    %3011 = vmatpush1.msra.mxu0 0.0
    %3012 = vmatprep.subr.mxu0 0.0
    %3013 = vmatpush1.msra.mxu0 0.0
    %3014 = vmatprep.subr.mxu0 0.0
    %3015 = vmatpush1.msra.mxu0 0.0
    %3016 = vmatprep.subr.mxu0 0.0
    %3017 = vmatpush1.msra.mxu0 0.0
    %3018 = vmatprep.subr.mxu0 0.0
    %3019 = vmatpush1.msra.mxu0 0.0
    %3020 = vmatprep.subr.mxu0 0.0
    %3021 = vmatpush1.msra.mxu0 0.0
    %3022 = vmatprep.subr.mxu0 0.0
    %3023 = vmatpush1.msra.mxu0 0.0
    %3024 = vmatprep.subr.mxu0 0.0
    %3025 = vmatpush1.msra.mxu0 0.0
    %3026 = vmatprep.subr.mxu0 0.0
    %3027 = vmatpush1.msra.mxu0 0.0
    %3028 = vmatprep.subr.mxu0 0.0
    %3029 = vmatpush1.msra.mxu0 0.0
    %3030 = vmatprep.subr.mxu0 0.0
    %3031 = vmatpush1.msra.mxu0 0.0
    %3032 = vmatprep.subr.mxu0 0.0
    %3033 = vmatpush1.msra.mxu0 0.0
    %3034 = vmatprep.subr.mxu0 0.0
    %3035 = vmatpush1.msra.mxu0 0.0
    %3036 = vmatprep.subr.mxu0 0.0
    %3037 = vmatpush1.msra.mxu0 0.0
    %3038 = vmatprep.subr.mxu0 0.0
    %3039 = vmatpush1.msra.mxu0 0.0
    %3040 = vmatprep.subr.mxu0 0.0
    %3041 = vmatpush1.msra.mxu0 0.0
    %3042 = vmatprep.subr.mxu0 0.0
    %3043 = vmatpush1.msra.mxu0 0.0
    %3044 = vmatprep.subr.mxu0 0.0
    %3045 = vmatpush1.msra.mxu0 0.0
    %3046 = vmatprep.subr.mxu0 0.0
    %3047 = vmatpush1.msra.mxu0 0.0
    %3048 = vmatprep.subr.mxu0 0.0
    %3049 = vmatpush1.msra.mxu0 0.0
    %3050 = vmatprep.subr.mxu0 0.0
    %3051 = vmatpush1.msra.mxu0 0.0
    %3052 = vmatprep.subr.mxu0 0.0
    %3053 = vmatpush1.msra.mxu0 0.0
    %3054 = vmatprep.subr.mxu0 0.0
    %3055 = vmatpush1.msra.mxu0 0.0
    %3056 = vmatprep.subr.mxu0 0.0
    %3057 = vmatpush1.msra.mxu0 0.0
    %3058 = vmatprep.mubr.f32.mxu0 0.0
    %v3059 = vand.u32 %v2655, 4294901760
    %3060 = vmatmul.mubr.f32.gmra.mrb[0].mxu0 %v3059
    %v3061 = vpop.f32.mrb[0].mxu0
    %v3062 = vadd.f32 %v2980, %v3061
    %v3063 = vpop.f32.mrb[0].mxu0
    %3064 = vmatprep.mubr.f32.mxu0 0.0
    %v3065 = vand.u32 %v2658, 4294901760
    %3066 = vmatmul.mubr.f32.gmra.mrb[0].mxu0 %v3065
    %v3067 = vpop.f32.mrb[0].mxu0
    %v3068 = vadd.f32 %v2988, %v3067
    %v3069 = vpop.f32.mrb[0].mxu0
    %3070 = vdwg.mxu0
    %3071 = vmatprep.subr.mxu0 0.0
    %v3072 = vand.u32 %v1118, 4294901760
    %3073 = vmatpush1.msra.mxu0 %v3072
    %3074 = vmatprep.subr.mxu0 0.0
    %3075 = vmatpush1.msra.mxu0 0.0
    %3076 = vmatprep.subr.mxu0 0.0
    %3077 = vmatpush1.msra.mxu0 0.0
    %3078 = vmatprep.subr.mxu0 0.0
    %3079 = vmatpush1.msra.mxu0 0.0
    %3080 = vmatprep.subr.mxu0 0.0
    %3081 = vmatpush1.msra.mxu0 0.0
    %3082 = vmatprep.subr.mxu0 0.0
    %3083 = vmatpush1.msra.mxu0 0.0
    %3084 = vmatprep.subr.mxu0 0.0
    %3085 = vmatpush1.msra.mxu0 0.0
    %3086 = vmatprep.subr.mxu0 0.0
    %3087 = vmatpush1.msra.mxu0 0.0
    %3088 = vmatprep.subr.mxu0 0.0
    %3089 = vmatpush1.msra.mxu0 0.0
    %3090 = vmatprep.subr.mxu0 0.0
    %3091 = vmatpush1.msra.mxu0 0.0
    %3092 = vmatprep.subr.mxu0 0.0
    %3093 = vmatpush1.msra.mxu0 0.0
    %3094 = vmatprep.subr.mxu0 0.0
    %3095 = vmatpush1.msra.mxu0 0.0
    %3096 = vmatprep.subr.mxu0 0.0
    %3097 = vmatpush1.msra.mxu0 0.0
    %3098 = vmatprep.subr.mxu0 0.0
    %3099 = vmatpush1.msra.mxu0 0.0
    %3100 = vmatprep.subr.mxu0 0.0
    %3101 = vmatpush1.msra.mxu0 0.0
    %3102 = vmatprep.subr.mxu0 0.0
    %3103 = vmatpush1.msra.mxu0 0.0
    %3104 = vmatprep.subr.mxu0 0.0
    %3105 = vmatpush1.msra.mxu0 0.0
    %3106 = vmatprep.subr.mxu0 0.0
    %3107 = vmatpush1.msra.mxu0 0.0
    %3108 = vmatprep.subr.mxu0 0.0
    %3109 = vmatpush1.msra.mxu0 0.0
    %3110 = vmatprep.subr.mxu0 0.0
    %3111 = vmatpush1.msra.mxu0 0.0
    %3112 = vmatprep.subr.mxu0 0.0
    %3113 = vmatpush1.msra.mxu0 0.0
    %3114 = vmatprep.subr.mxu0 0.0
    %3115 = vmatpush1.msra.mxu0 0.0
    %3116 = vmatprep.subr.mxu0 0.0
    %3117 = vmatpush1.msra.mxu0 0.0
    %3118 = vmatprep.subr.mxu0 0.0
    %3119 = vmatpush1.msra.mxu0 0.0
    %3120 = vmatprep.subr.mxu0 0.0
    %3121 = vmatpush1.msra.mxu0 0.0
    %3122 = vmatprep.subr.mxu0 0.0
    %3123 = vmatpush1.msra.mxu0 0.0
    %3124 = vmatprep.subr.mxu0 0.0
    %3125 = vmatpush1.msra.mxu0 0.0
    %3126 = vmatprep.subr.mxu0 0.0
    %3127 = vmatpush1.msra.mxu0 0.0
    %3128 = vmatprep.subr.mxu0 0.0
    %3129 = vmatpush1.msra.mxu0 0.0
    %3130 = vmatprep.subr.mxu0 0.0
    %3131 = vmatpush1.msra.mxu0 0.0
    %3132 = vmatprep.subr.mxu0 0.0
    %3133 = vmatpush1.msra.mxu0 0.0
    %3134 = vmatprep.subr.mxu0 0.0
    %3135 = vmatpush1.msra.mxu0 0.0
    %3136 = vmatprep.mubr.f32.mxu0 0.0
    %v3137 = vand.u32 %v2655, 4294901760
    %3138 = vmatmul.mubr.f32.gmra.mrb[0].mxu0 %v3137
    %v3139 = vpop.f32.mrb[0].mxu0
    %v3140 = vadd.f32 %v3062, %v3139
    %v3141 = vpop.f32.mrb[0].mxu0
    %3142 = vmatprep.mubr.f32.mxu0 0.0
    %v3143 = vand.u32 %v2658, 4294901760
    %3144 = vmatmul.mubr.f32.gmra.mrb[0].mxu0 %v3143
    %v3145 = vpop.f32.mrb[0].mxu0
    %v3146 = vadd.f32 %v3068, %v3145
    %v3147 = vpop.f32.mrb[0].mxu0
    %3148 = vdwg.mxu0
    %v3149 = vld [vmem:[%s4] sm:$0x1]
    %v3150 = vld [vmem:[%s5] sm:$0x1]
    %v3151 = vmul.f32 %v1609, %v3140
    %v3152 = vmul.f32 %v1610, %v3146
    %v3154 = vlaneseq
    %v3155 = vshrl.u32 %v3154, 7
    %v3156 = vsub.s32 0, %v3155
    %v3157 = vrot.slane %v3149, %v3156
    %v3159 = vmul.f32 %v3151, %v3157
    %v3160 = vmul.f32 %v3152, %v3157
    %v3162 = vlaneseq
    %v3163 = vshrl.u32 %v3162, 7
    %v3164 = vsub.s32 0, %v3163
    %v3165 = vrot.slane %v3150, %v3164
    %v3167 = vadd.f32 %v3159, %v3165
    %v3168 = vadd.f32 %v3160, %v3165
    %3169 = vst.msk [vmem:[#allocation2] sm:$0xff] %vm36, %v3167
    %3170 = vst.msk [vmem:[#allocation2 + $0x8] sm:$0xff] %vm36, %v3168
    %v3171 = vmul.f32 %v2106, %v3140
    %v3172 = vmul.f32 %v2107, %v3146
    %v3173 = vmul.f32 %v3171, %v3157
    %v3174 = vmul.f32 %v3172, %v3157
    %3175 = vst.msk [vmem:[#allocation4] sm:$0xff] %vm36, %v3173
    %3176 = vst.msk [vmem:[#allocation4 + $0x8] sm:$0xff] %vm36, %v3174
    // Predicated region
    $region26: #{tpu_custom_call.1} parent=1 // pred_check
      _
    $region27: #{tpu_custom_call.1} parent=1 // pred_check_branch
      %3178 = sbr.rel (0) target = $region29
    $region28: #{tpu_custom_call.1} parent=1 // pred_region
      %s3180 = ssub.s32 256, 256
      %3181 = vsyncadd [#allocation3], %s3180
      %s3182 = sshll.u32 [#allocation2], 4
      %s3183 = int_to_ptr.vmem [resolvable:$true] %s3182
      %3188 = dma.vmem_to_hbm [thread:$0]  %s3183, 256, %s6, [#allocation3], 128, 128, 8
    $region29: #{tpu_custom_call.1} parent=1 // pred_fallthru
      _
    // Predicated region
    $region30: #{tpu_custom_call.1} parent=1 // pred_check
      _
    $region31: #{tpu_custom_call.1} parent=1 // pred_check_branch
      %3190 = sbr.rel (0) target = $region33
    $region32: #{tpu_custom_call.1} parent=1 // pred_region
      %s3192 = ssub.s32 256, 256
      %3193 = vsyncadd [#allocation5], %s3192
      %s3194 = sshll.u32 [#allocation4], 4
      %s3195 = int_to_ptr.vmem [resolvable:$true] %s3194
      %3200 = dma.vmem_to_hbm [thread:$0]  %s3195, 256, %s7, [#allocation5], 128, 128, 8
    $region33: #{tpu_custom_call.1} parent=1 // pred_fallthru
      _
    // Predicated region
    $region34: #{tpu_custom_call.1} parent=1 // pred_check
      _
    $region35: #{tpu_custom_call.1} parent=1 // pred_check_branch
      %3202 = sbr.rel (0) target = $region37
    $region36: #{tpu_custom_call.1} parent=1 // pred_region
      %3203 = dma.done [#allocation3], 256
    $region37: #{tpu_custom_call.1} parent=1 // pred_fallthru
      _
    // Predicated region
    $region38: #{tpu_custom_call.1} parent=1 // pred_check
      _
    $region39: #{tpu_custom_call.1} parent=1 // pred_check_branch
      %3205 = sbr.rel (0) target = $region41
    $region40: #{tpu_custom_call.1} parent=1 // pred_region
      %3206 = dma.done [#allocation5], 256
    $region41: #{tpu_custom_call.1} parent=1 // pred_fallthru
      _
    %3207 = vsyncpa [#allocation3], 1
    %3208 = vsyncpa [#allocation5], 1

</llo_original>
